<compile_context>
chip_gen: v5e
topology: v5e:2x2
jax: 0.10.0
libtpu: 0.0.40
codegen_flags: <defaults>
</compile_context>

<pallas_src>
import functools
import math

import jax
import jax.numpy as jnp
from jax.experimental import pallas as pl
from jax.experimental.pallas import tpu as pltpu


_VMEM_LIMIT = 32 * 1024 * 1024  # safe scoped limit on v5e/v6e (128 MiB) and v7x (64 MiB)
_LN_EPS = 1e-5                  # torch.nn.LayerNorm default


def _pick_row_tile(m, pref=256):
    """Largest multiple-of-8 row tile <= pref that divides m, preferring >= 2
    blocks so both v7x TensorCores get work on the 'parallel' grid axis."""
    if m <= 8 or m % 8 != 0:
        return m
    best = 8
    t = 16
    while t <= min(pref, m):
        if m % t == 0:
            best = t
        t += 8
    if best == m:                     # only one block -> split in two if possible
        half = m // 2
        if half % 8 == 0:
            best = half
    return best


def _layer_norm(y, eps):
    mu = jnp.mean(y, axis=-1, keepdims=True)
    var = jnp.mean(jnp.square(y - mu), axis=-1, keepdims=True)
    return (y - mu) * jax.lax.rsqrt(var + eps)


# --------------------------------------------------------------------------
# Pallas kernels
# --------------------------------------------------------------------------
def _mha_kernel(xq_ref, xkv_ref, m_ref, wq_ref, bq_ref, wkv_ref, bkv_ref,
                wo_ref, bo_ref, out_ref, attn_ref, *, n_heads, d, scale, eps):
    """Fully fused Multi_Head_Attention for one batch element.

    xq_ref : [Lq, Dq]   bf16   decoder stream (also the residual)
    xkv_ref: [Lk, Dkv]  bf16   K/V source (== xq for self-attention)
    m_ref  : [Lq, Lk]   int8   nonzero == masked out
    wq_ref : [Dq, H*d]  bf16   ; bq_ref : [1, H*d]  f32
    wkv_ref: [Dkv,2H*d] bf16   ; bkv_ref: [1, 2H*d] f32   (W_K | W_V packed)
    wo_ref : [H*d, Dq]  bf16   ; bo_ref : [1, Dq]   f32
    out_ref: [Lq, Dq]   bf16   ; attn_ref: [H, Lq, Lk] f32
    """
    hd = n_heads * d
    xq = xq_ref[...]

    # ---- Q projection and fused K/V projection (MXU, f32 accumulate) --------
    q = jnp.dot(xq, wq_ref[...], preferred_element_type=jnp.float32) + bq_ref[...]
    kv = jnp.dot(xkv_ref[...], wkv_ref[...],
                 preferred_element_type=jnp.float32) + bkv_ref[...]
    q = (q * scale).astype(jnp.bfloat16)          # fold 1/sqrt(d) into q
    kv = kv.astype(jnp.bfloat16)

    masked = m_ref[...].astype(jnp.float32) > 0.5  # loaded once, shared by heads

    # ---- scaled dot-product attention over all heads -------------------------
    ctxs = []
    for h in range(n_heads):                       # static unroll (n_heads small)
        qh = q[:, h * d:(h + 1) * d]
        kh = kv[:, h * d:(h + 1) * d]
        vh = kv[:, hd + h * d:hd + (h + 1) * d]
        s = jnp.dot(qh, kh.T, preferred_element_type=jnp.float32)
        s = jnp.where(masked, -1000000000.0, s)
        mx = jnp.max(s, axis=-1, keepdims=True)
        e = jnp.exp(s - mx)
        denom = jnp.sum(e, axis=-1, keepdims=True)
        attn = e * pl.reciprocal(denom, approx=True)
        attn_ref[h, :, :] = attn
        ctxs.append(jnp.dot(attn.astype(jnp.bfloat16), vh,
                            preferred_element_type=jnp.float32))

    # single lane-dense (128-multiple) context store instead of per-head 64-lane
    context = jnp.concatenate(ctxs, axis=-1).astype(jnp.bfloat16)   # [Lq, H*d]

    # ---- W_O + dropout(identity) + residual + LayerNorm ----------------------
    y = jnp.dot(context, wo_ref[...], preferred_element_type=jnp.float32)
    y = y + bo_ref[...] + xq.astype(jnp.float32)
    out_ref[...] = _layer_norm(y, eps).astype(out_ref.dtype)


def _ffn_kernel(x_ref, w1_ref, b1_ref, w2_ref, b2_ref, o_ref, *, eps):
    """Fused conv1(k=1) + ReLU + conv2(k=1) + residual + LayerNorm per row tile."""
    x = x_ref[...]                                                   # bf16 [tm, D]
    h = jnp.dot(x, w1_ref[...], preferred_element_type=jnp.float32) + b1_ref[...]
    h = jnp.maximum(h, 0.0).astype(jnp.bfloat16)                     # bf16 hidden
    y = jnp.dot(h, w2_ref[...], preferred_element_type=jnp.float32) + b2_ref[...]
    y = y + x.astype(jnp.float32)                                    # residual
    o_ref[...] = _layer_norm(y, eps)


# --------------------------------------------------------------------------
# Module forward passes (thin wrappers around pallas_call)
# --------------------------------------------------------------------------
def multi_head_attention(p, xq, xkv, attn_mask_i8, n_heads, qkv_dim):
    """xq: [B, Lq, Dq] bf16, xkv: [B, Lk, Dkv] bf16, attn_mask_i8: [B, Lq, Lk] int8.

    Returns (out [B, Lq, Dq] bf16, attn [B, H, Lq, Lk] f32)."""
    B, Lq, Dq = xq.shape
    _, Lk, Dkv = xkv.shape
    hd = n_heads * qkv_dim
    scale = 1.0 / math.sqrt(qkv_dim)

    out, attn = pl.pallas_call(
        functools.partial(_mha_kernel, n_heads=n_heads, d=qkv_dim,
                          scale=scale, eps=_LN_EPS),
        grid=(B,),
        in_specs=[
            pl.BlockSpec((None, Lq, Dq), lambda b: (b, 0, 0)),     # xq
            pl.BlockSpec((None, Lk, Dkv), lambda b: (b, 0, 0)),    # xkv
            pl.BlockSpec((None, Lq, Lk), lambda b: (b, 0, 0)),     # mask (int8)
            pl.BlockSpec((Dq, hd), lambda b: (0, 0)),              # W_Q (resident)
            pl.BlockSpec((1, hd), lambda b: (0, 0)),               # b_Q
            pl.BlockSpec((Dkv, 2 * hd), lambda b: (0, 0)),         # W_KV (resident)
            pl.BlockSpec((1, 2 * hd), lambda b: (0, 0)),           # b_KV
            pl.BlockSpec((hd, Dq), lambda b: (0, 0)),              # W_O (resident)
            pl.BlockSpec((1, Dq), lambda b: (0, 0)),               # b_O
        ],
        out_specs=[
            pl.BlockSpec((None, Lq, Dq), lambda b: (b, 0, 0)),
            pl.BlockSpec((None, n_heads, Lq, Lk), lambda b: (b, 0, 0, 0)),
        ],
        out_shape=[
            jax.ShapeDtypeStruct((B, Lq, Dq), jnp.bfloat16),
            jax.ShapeDtypeStruct((B, n_heads, Lq, Lk), jnp.float32),
        ],
        compiler_params=pltpu.CompilerParams(
            dimension_semantics=("parallel",),
            vmem_limit_bytes=_VMEM_LIMIT),
    )(xq, xkv, attn_mask_i8,
      p["W_Q"], p["b_Q"], p["W_KV"], p["b_KV"], p["W_O"], p["b_O"])
    return out, attn


def poswise_feed_forward(p, x):
    """LayerNorm(conv2(ReLU(conv1(x))) + x); conv k=1 == feature-dim linear."""
    lead = x.shape[:-1]
    d = x.shape[-1]
    dff = p["W1"].shape[-1]
    x2 = x.reshape(-1, d)
    m = x2.shape[0]
    tm = _pick_row_tile(m)
    out = pl.pallas_call(
        functools.partial(_ffn_kernel, eps=_LN_EPS),
        grid=(m // tm,),
        in_specs=[
            pl.BlockSpec((tm, d), lambda i: (i, 0)),
            pl.BlockSpec((d, dff), lambda i: (0, 0)),      # W1 resident
            pl.BlockSpec((1, dff), lambda i: (0, 0)),
            pl.BlockSpec((dff, d), lambda i: (0, 0)),      # W2 resident
            pl.BlockSpec((1, d), lambda i: (0, 0)),
        ],
        out_specs=pl.BlockSpec((tm, d), lambda i: (i, 0)),
        out_shape=jax.ShapeDtypeStruct((m, d), jnp.float32),
        compiler_params=pltpu.CompilerParams(
            dimension_semantics=("parallel",),
            vmem_limit_bytes=_VMEM_LIMIT),
    )(x2, p["W1"], p["b1"], p["W2"], p["b2"])
    return out.reshape(*lead, d)


def decoder_layer(params, dec_inputs, enc_outputs, dec_self_attn_mask,
                  dec_enc_attn_mask, n_heads, qkv_dim=64):
    # Cast activations to bf16 once; keep all inter-kernel activations bf16.
    x = dec_inputs.astype(jnp.bfloat16)
    enc = enc_outputs.astype(jnp.bfloat16)
    self_mask = dec_self_attn_mask.astype(jnp.int8)
    enc_mask = dec_enc_attn_mask.astype(jnp.int8)

    dec1, dec_self_attn = multi_head_attention(
        params["self_attn"], x, x, self_mask, n_heads, qkv_dim)
    dec2, dec_enc_attn = multi_head_attention(
        params["enc_attn"], dec1, enc, enc_mask, n_heads, qkv_dim)
    dec_out = poswise_feed_forward(params["pos_ffn"], dec2)
    return dec_out, dec_self_attn, dec_enc_attn


# --------------------------------------------------------------------------
# Deterministic parameter construction + one-time weight packing
# --------------------------------------------------------------------------
def _init_mha_params(key, q_dim, k_dim, qkv_dim, n_heads):
    ks = jax.random.split(key, 4)
    hd = qkv_dim * n_heads
    return {
        "W_Q": 0.02 * jax.random.normal(ks[0], (q_dim, hd), jnp.float32),
        "b_Q": jnp.zeros((hd,), jnp.float32),
        "W_K": 0.02 * jax.random.normal(ks[1], (k_dim, hd), jnp.float32),
        "b_K": jnp.zeros((hd,), jnp.float32),
        "W_V": 0.02 * jax.random.normal(ks[2], (k_dim, hd), jnp.float32),
        "b_V": jnp.zeros((hd,), jnp.float32),
        "W_O": 0.02 * jax.random.normal(ks[3], (hd, q_dim), jnp.float32),
        "b_O": jnp.zeros((q_dim,), jnp.float32),
    }


def _init_ffn_params(key, embed_dim, d_ff):
    k1, k2 = jax.random.split(key)
    return {
        "W1": 0.02 * jax.random.normal(k1, (embed_dim, d_ff), jnp.float32),
        "b1": jnp.zeros((d_ff,), jnp.float32),
        "W2": 0.02 * jax.random.normal(k2, (d_ff, embed_dim), jnp.float32),
        "b2": jnp.zeros((embed_dim,), jnp.float32),
    }


def init_decoder_layer_params(key, embed_dim, n_heads, enc_dim=2048, d_ff=2048,
                              qkv_dim=64):
    k1, k2, k3 = jax.random.split(key, 3)
    return {
        "self_attn": _init_mha_params(k1, embed_dim, embed_dim, qkv_dim, n_heads),
        "enc_attn": _init_mha_params(k2, embed_dim, enc_dim, qkv_dim, n_heads),
        "pos_ffn": _init_ffn_params(k3, embed_dim, d_ff),
    }


def _prepare_mha_params(p):
    """Concatenate K/V weights and cast everything ONCE (not per forward call)."""
    return {
        "W_Q": p["W_Q"].astype(jnp.bfloat16),
        "b_Q": p["b_Q"].reshape(1, -1).astype(jnp.float32),
        "W_KV": jnp.concatenate([p["W_K"], p["W_V"]], axis=1).astype(jnp.bfloat16),
        "b_KV": jnp.concatenate([p["b_K"], p["b_V"]]).reshape(1, -1).astype(jnp.float32),
        "W_O": p["W_O"].astype(jnp.bfloat16),
        "b_O": p["b_O"].reshape(1, -1).astype(jnp.float32),
    }


def _prepare_ffn_params(p):
    return {
        "W1": p["W1"].astype(jnp.bfloat16),
        "b1": p["b1"].reshape(1, -1).astype(jnp.float32),
        "W2": p["W2"].astype(jnp.bfloat16),
        "b2": p["b2"].reshape(1, -1).astype(jnp.float32),
    }


def prepare_decoder_layer_params(params):
    return {
        "self_attn": _prepare_mha_params(params["self_attn"]),
        "enc_attn": _prepare_mha_params(params["enc_attn"]),
        "pos_ffn": _prepare_ffn_params(params["pos_ffn"]),
    }


# --------------------------------------------------------------------------
# Main
# --------------------------------------------------------------------------
if __name__ == "__main__":
    # Small but faithful shapes: QKVdim=64, K_dim(enc)=2048, d_ff=2048 are
    # hard-coded in the PyTorch DecoderLayer; batch/seq kept small.
    B = 2
    Lq = 8            # max_decode_length
    Lk_enc = 16       # num_pixels (196 in the docstring, shrunk for the demo)
    embed_dim = 128
    n_heads = 2
    qkv_dim = 64
    enc_dim = 2048
    d_ff = 2048

    root = jax.random.PRNGKey(0)
    kp, kx, ke = jax.random.split(root, 3)

    raw_params = init_decoder_layer_params(kp, embed_dim, n_heads,
                                           enc_dim=enc_dim, d_ff=d_ff,
                                           qkv_dim=qkv_dim)
    params = prepare_decoder_layer_params(raw_params)   # pack/cast weights once

    dec_inputs = jax.random.normal(kx, (B, Lq, embed_dim), jnp.float32)
    enc_outputs = jax.random.normal(ke, (B, Lk_enc, enc_dim), jnp.float32)

    # causal mask for decoder self-attention (True == masked out)
    causal = jnp.triu(jnp.ones((Lq, Lq), dtype=bool), k=1)
    dec_self_attn_mask = jnp.broadcast_to(causal, (B, Lq, Lq))
    # no masking for encoder-decoder attention
    dec_enc_attn_mask = jnp.zeros((B, Lq, Lk_enc), dtype=bool)

    fwd = jax.jit(lambda p, di, eo, m1, m2: decoder_layer(
        p, di, eo, m1, m2, n_heads, qkv_dim))

    dec_out, self_attn, enc_attn = fwd(params, dec_inputs, enc_outputs,
                                       dec_self_attn_mask, dec_enc_attn_mask)

    jax.block_until_ready((dec_out, self_attn, enc_attn))

    assert dec_out.shape == (B, Lq, embed_dim)
    assert self_attn.shape == (B, n_heads, Lq, Lq)
    assert enc_attn.shape == (B, n_heads, Lq, Lk_enc)
    assert bool(jnp.all(jnp.isfinite(dec_out)))
    assert bool(jnp.all(jnp.isfinite(self_attn)))
    assert bool(jnp.all(jnp.isfinite(enc_attn)))
    print("KERNEL_OK")
</pallas_src>

<mosaic_0001>
module attributes {stable_mosaic.version = 11 : i64} {
  func.func @_mha_kernel(%arg0: i32, %arg1: memref<1x8x128xbf16, #tpu.memory_space<vmem>>, %arg2: memref<1x8x128xbf16, #tpu.memory_space<vmem>>, %arg3: memref<1x8x8xi8, #tpu.memory_space<vmem>>, %arg4: memref<128x128xbf16, #tpu.memory_space<vmem>>, %arg5: memref<1x128xf32, #tpu.memory_space<vmem>>, %arg6: memref<128x256xbf16, #tpu.memory_space<vmem>>, %arg7: memref<1x256xf32, #tpu.memory_space<vmem>>, %arg8: memref<128x128xbf16, #tpu.memory_space<vmem>>, %arg9: memref<1x128xf32, #tpu.memory_space<vmem>>, %arg10: memref<1x8x128xbf16, #tpu.memory_space<vmem>>, %arg11: memref<1x2x8x8xf32, #tpu.memory_space<vmem>>) attributes {dimension_semantics = [#tpu.dimension_semantics<parallel>], iteration_bounds = array<i64: 2>, scalar_prefetch = 0 : i64, scratch_operands = 0 : i64, tpu.core_type = #tpu.core_type<tc>, window_params = [{transform_indices = @transform_0, window_bounds = array<i64: 1, 8, 128>}, {transform_indices = @transform_1, window_bounds = array<i64: 1, 8, 128>}, {transform_indices = @transform_2, window_bounds = array<i64: 1, 8, 8>}, {pipeline_mode = #tpu.pipeline_mode<synchronous>, transform_indices = @transform_3, window_bounds = array<i64: 128, 128>}, {pipeline_mode = #tpu.pipeline_mode<synchronous>, transform_indices = @transform_4, window_bounds = array<i64: 1, 128>}, {pipeline_mode = #tpu.pipeline_mode<synchronous>, transform_indices = @transform_5, window_bounds = array<i64: 128, 256>}, {pipeline_mode = #tpu.pipeline_mode<synchronous>, transform_indices = @transform_6, window_bounds = array<i64: 1, 256>}, {pipeline_mode = #tpu.pipeline_mode<synchronous>, transform_indices = @transform_7, window_bounds = array<i64: 128, 128>}, {pipeline_mode = #tpu.pipeline_mode<synchronous>, transform_indices = @transform_8, window_bounds = array<i64: 1, 128>}, {transform_indices = @transform_9, window_bounds = array<i64: 1, 8, 128>}, {transform_indices = @transform_10, window_bounds = array<i64: 1, 2, 8, 8>}]} {
    %c0 = arith.constant 0 : index
    %c0_0 = arith.constant 0 : index
    %c0_1 = arith.constant 0 : index
    %0 = vector.load %arg1[%c0, %c0_0, %c0_1] : memref<1x8x128xbf16, #tpu.memory_space<vmem>>, vector<1x8x128xbf16>
    %1 = vector.shape_cast %0 : vector<1x8x128xbf16> to vector<8x128xbf16>
    %c0_2 = arith.constant 0 : index
    %c0_3 = arith.constant 0 : index
    %2 = vector.load %arg4[%c0_2, %c0_3] : memref<128x128xbf16, #tpu.memory_space<vmem>>, vector<128x128xbf16>
    %cst = arith.constant dense<0.000000e+00> : vector<8x128xf32>
    %3 = tpu.matmul %1, %2, %cst {dimension_numbers = #tpu.dot_dimension_numbers<[1], [0], [0], [1], [0, 0, 1, 1], [], []>} : vector<8x128xbf16>, vector<128x128xbf16>, vector<8x128xf32> -> vector<8x128xf32>
    %c0_4 = arith.constant 0 : index
    %c0_5 = arith.constant 0 : index
    %4 = vector.load %arg5[%c0_4, %c0_5] : memref<1x128xf32, #tpu.memory_space<vmem>>, vector<1x128xf32>
    %5 = vector.broadcast %4 : vector<1x128xf32> to vector<8x128xf32>
    %6 = arith.addf %3, %5 : vector<8x128xf32>
    %c0_6 = arith.constant 0 : index
    %c0_7 = arith.constant 0 : index
    %c0_8 = arith.constant 0 : index
    %7 = vector.load %arg2[%c0_6, %c0_7, %c0_8] : memref<1x8x128xbf16, #tpu.memory_space<vmem>>, vector<1x8x128xbf16>
    %8 = vector.shape_cast %7 : vector<1x8x128xbf16> to vector<8x128xbf16>
    %c0_9 = arith.constant 0 : index
    %c0_10 = arith.constant 0 : index
    %9 = vector.load %arg6[%c0_9, %c0_10] : memref<128x256xbf16, #tpu.memory_space<vmem>>, vector<128x256xbf16>
    %cst_11 = arith.constant dense<0.000000e+00> : vector<8x256xf32>
    %10 = tpu.matmul %8, %9, %cst_11 {dimension_numbers = #tpu.dot_dimension_numbers<[1], [0], [0], [1], [0, 0, 1, 1], [], []>} : vector<8x128xbf16>, vector<128x256xbf16>, vector<8x256xf32> -> vector<8x256xf32>
    %c0_12 = arith.constant 0 : index
    %c0_13 = arith.constant 0 : index
    %11 = vector.load %arg7[%c0_12, %c0_13] : memref<1x256xf32, #tpu.memory_space<vmem>>, vector<1x256xf32>
    %12 = vector.broadcast %11 : vector<1x256xf32> to vector<8x256xf32>
    %13 = arith.addf %10, %12 : vector<8x256xf32>
    %cst_14 = arith.constant 1.250000e-01 : f32
    %14 = vector.broadcast %cst_14 : f32 to vector<8x128xf32>
    %15 = arith.mulf %6, %14 : vector<8x128xf32>
    %16 = arith.truncf %15 : vector<8x128xf32> to vector<8x128xbf16>
    %17 = arith.truncf %13 : vector<8x256xf32> to vector<8x256xbf16>
    %c0_15 = arith.constant 0 : index
    %c0_16 = arith.constant 0 : index
    %c0_17 = arith.constant 0 : index
    %18 = vector.load %arg3[%c0_15, %c0_16, %c0_17] : memref<1x8x8xi8, #tpu.memory_space<vmem>>, vector<1x8x8xi8>
    %19 = vector.shape_cast %18 : vector<1x8x8xi8> to vector<8x8xi8>
    %20 = arith.sitofp %19 : vector<8x8xi8> to vector<8x8xf32>
    %cst_18 = arith.constant 5.000000e-01 : f32
    %21 = vector.broadcast %cst_18 : f32 to vector<8x8xf32>
    %22 = arith.cmpf ogt, %20, %21 : vector<8x8xf32>
    %23 = vector.extract_strided_slice %16 {offsets = [0, 0], sizes = [8, 64], strides = [1, 1]} : vector<8x128xbf16> to vector<8x64xbf16>
    %24 = vector.extract_strided_slice %17 {offsets = [0, 0], sizes = [8, 64], strides = [1, 1]} : vector<8x256xbf16> to vector<8x64xbf16>
    %25 = vector.extract_strided_slice %17 {offsets = [0, 128], sizes = [8, 64], strides = [1, 1]} : vector<8x256xbf16> to vector<8x64xbf16>
    %26 = tpu.transpose %24, [1, 0] : vector<8x64xbf16> -> vector<64x8xbf16>
    %cst_19 = arith.constant dense<0.000000e+00> : vector<8x8xf32>
    %27 = tpu.matmul %23, %26, %cst_19 {dimension_numbers = #tpu.dot_dimension_numbers<[1], [0], [0], [1], [0, 0, 1, 1], [], []>} : vector<8x64xbf16>, vector<64x8xbf16>, vector<8x8xf32> -> vector<8x8xf32>
    %cst_20 = arith.constant -1.000000e+09 : f32
    %28 = vector.broadcast %cst_20 : f32 to vector<8x8xf32>
    %29 = arith.select %22, %28, %27 : vector<8x8xi1>, vector<8x8xf32>
    %cst_21 = arith.constant dense<0xFF800000> : vector<8xf32>
    %30 = vector.multi_reduction <maximumf>, %29, %cst_21 [1] : vector<8x8xf32> to vector<8xf32>
    %31 = vector.shape_cast %30 : vector<8xf32> to vector<8x1xf32>
    %32 = vector.broadcast %31 : vector<8x1xf32> to vector<8x8xf32>
    %33 = arith.subf %29, %32 : vector<8x8xf32>
    %34 = math.exp %33 : vector<8x8xf32>
    %cst_22 = arith.constant dense<0.000000e+00> : vector<8xf32>
    %35 = vector.multi_reduction <add>, %34, %cst_22 [1] : vector<8x8xf32> to vector<8xf32>
    %36 = vector.shape_cast %35 : vector<8xf32> to vector<8x1xf32>
    %37 = tpu.reciprocal %36 {approx = true} : vector<8x1xf32> -> vector<8x1xf32>
    %38 = vector.broadcast %37 : vector<8x1xf32> to vector<8x8xf32>
    %39 = arith.mulf %34, %38 : vector<8x8xf32>
    %c0_23 = arith.constant 0 : index
    %c0_24 = arith.constant 0 : index
    %c0_25 = arith.constant 0 : index
    %c0_26 = arith.constant 0 : index
    %40 = vector.load %arg11[%c0_23, %c0_24, %c0_25, %c0_26] : memref<1x2x8x8xf32, #tpu.memory_space<vmem>>, vector<1x1x8x8xf32>
    %41 = vector.shape_cast %40 : vector<1x1x8x8xf32> to vector<8x8xf32>
    %42 = vector.shape_cast %39 : vector<8x8xf32> to vector<1x1x8x8xf32>
    tpu.vector_store %arg11[%c0_23, %c0_24, %c0_25, %c0_26], %42 {strides = array<i32>} : memref<1x2x8x8xf32, #tpu.memory_space<vmem>>, vector<1x1x8x8xf32>,
    %43 = arith.truncf %39 : vector<8x8xf32> to vector<8x8xbf16>
    %cst_27 = arith.constant dense<0.000000e+00> : vector<8x64xf32>
    %44 = tpu.matmul %43, %25, %cst_27 {dimension_numbers = #tpu.dot_dimension_numbers<[1], [0], [0], [1], [0, 0, 1, 1], [], []>} : vector<8x8xbf16>, vector<8x64xbf16>, vector<8x64xf32> -> vector<8x64xf32>
    %45 = vector.extract_strided_slice %16 {offsets = [0, 64], sizes = [8, 64], strides = [1, 1]} : vector<8x128xbf16> to vector<8x64xbf16>
    %46 = vector.extract_strided_slice %17 {offsets = [0, 64], sizes = [8, 64], strides = [1, 1]} : vector<8x256xbf16> to vector<8x64xbf16>
    %47 = vector.extract_strided_slice %17 {offsets = [0, 192], sizes = [8, 64], strides = [1, 1]} : vector<8x256xbf16> to vector<8x64xbf16>
    %48 = tpu.transpose %46, [1, 0] : vector<8x64xbf16> -> vector<64x8xbf16>
    %cst_28 = arith.constant dense<0.000000e+00> : vector<8x8xf32>
    %49 = tpu.matmul %45, %48, %cst_28 {dimension_numbers = #tpu.dot_dimension_numbers<[1], [0], [0], [1], [0, 0, 1, 1], [], []>} : vector<8x64xbf16>, vector<64x8xbf16>, vector<8x8xf32> -> vector<8x8xf32>
    %cst_29 = arith.constant -1.000000e+09 : f32
    %50 = vector.broadcast %cst_29 : f32 to vector<8x8xf32>
    %51 = arith.select %22, %50, %49 : vector<8x8xi1>, vector<8x8xf32>
    %cst_30 = arith.constant dense<0xFF800000> : vector<8xf32>
    %52 = vector.multi_reduction <maximumf>, %51, %cst_30 [1] : vector<8x8xf32> to vector<8xf32>
    %53 = vector.shape_cast %52 : vector<8xf32> to vector<8x1xf32>
    %54 = vector.broadcast %53 : vector<8x1xf32> to vector<8x8xf32>
    %55 = arith.subf %51, %54 : vector<8x8xf32>
    %56 = math.exp %55 : vector<8x8xf32>
    %cst_31 = arith.constant dense<0.000000e+00> : vector<8xf32>
    %57 = vector.multi_reduction <add>, %56, %cst_31 [1] : vector<8x8xf32> to vector<8xf32>
    %58 = vector.shape_cast %57 : vector<8xf32> to vector<8x1xf32>
    %59 = tpu.reciprocal %58 {approx = true} : vector<8x1xf32> -> vector<8x1xf32>
    %60 = vector.broadcast %59 : vector<8x1xf32> to vector<8x8xf32>
    %61 = arith.mulf %56, %60 : vector<8x8xf32>
    %c0_32 = arith.constant 0 : index
    %c1 = arith.constant 1 : index
    %c0_33 = arith.constant 0 : index
    %c0_34 = arith.constant 0 : index
    %62 = vector.load %arg11[%c0_32, %c1, %c0_33, %c0_34] : memref<1x2x8x8xf32, #tpu.memory_space<vmem>>, vector<1x1x8x8xf32>
    %63 = vector.shape_cast %62 : vector<1x1x8x8xf32> to vector<8x8xf32>
    %64 = vector.shape_cast %61 : vector<8x8xf32> to vector<1x1x8x8xf32>
    tpu.vector_store %arg11[%c0_32, %c1, %c0_33, %c0_34], %64 {strides = array<i32>} : memref<1x2x8x8xf32, #tpu.memory_space<vmem>>, vector<1x1x8x8xf32>,
    %65 = arith.truncf %61 : vector<8x8xf32> to vector<8x8xbf16>
    %cst_35 = arith.constant dense<0.000000e+00> : vector<8x64xf32>
    %66 = tpu.matmul %65, %47, %cst_35 {dimension_numbers = #tpu.dot_dimension_numbers<[1], [0], [0], [1], [0, 0, 1, 1], [], []>} : vector<8x8xbf16>, vector<8x64xbf16>, vector<8x64xf32> -> vector<8x64xf32>
    %67 = tpu.concatenate %44, %66 in 1 : vector<8x64xf32>, vector<8x64xf32> -> vector<8x128xf32>
    %68 = arith.truncf %67 : vector<8x128xf32> to vector<8x128xbf16>
    %c0_36 = arith.constant 0 : index
    %c0_37 = arith.constant 0 : index
    %69 = vector.load %arg8[%c0_36, %c0_37] : memref<128x128xbf16, #tpu.memory_space<vmem>>, vector<128x128xbf16>
    %cst_38 = arith.constant dense<0.000000e+00> : vector<8x128xf32>
    %70 = tpu.matmul %68, %69, %cst_38 {dimension_numbers = #tpu.dot_dimension_numbers<[1], [0], [0], [1], [0, 0, 1, 1], [], []>} : vector<8x128xbf16>, vector<128x128xbf16>, vector<8x128xf32> -> vector<8x128xf32>
    %c0_39 = arith.constant 0 : index
    %c0_40 = arith.constant 0 : index
    %71 = vector.load %arg9[%c0_39, %c0_40] : memref<1x128xf32, #tpu.memory_space<vmem>>, vector<1x128xf32>
    %72 = vector.broadcast %71 : vector<1x128xf32> to vector<8x128xf32>
    %73 = arith.addf %70, %72 : vector<8x128xf32>
    %74 = arith.extf %1 : vector<8x128xbf16> to vector<8x128xf32>
    %75 = arith.addf %73, %74 : vector<8x128xf32>
    %cst_41 = arith.constant dense<0.000000e+00> : vector<8xf32>
    %76 = vector.multi_reduction <add>, %75, %cst_41 [1] : vector<8x128xf32> to vector<8xf32>
    %77 = vector.shape_cast %76 : vector<8xf32> to vector<8x1xf32>
    %cst_42 = arith.constant 1.280000e+02 : f32
    %78 = vector.broadcast %cst_42 : f32 to vector<8x1xf32>
    %79 = arith.divf %77, %78 : vector<8x1xf32>
    %80 = vector.broadcast %79 : vector<8x1xf32> to vector<8x128xf32>
    %81 = arith.subf %75, %80 : vector<8x128xf32>
    %82 = arith.mulf %81, %81 : vector<8x128xf32>
    %cst_43 = arith.constant dense<0.000000e+00> : vector<8xf32>
    %83 = vector.multi_reduction <add>, %82, %cst_43 [1] : vector<8x128xf32> to vector<8xf32>
    %84 = vector.shape_cast %83 : vector<8xf32> to vector<8x1xf32>
    %cst_44 = arith.constant 1.280000e+02 : f32
    %85 = vector.broadcast %cst_44 : f32 to vector<8x1xf32>
    %86 = arith.divf %84, %85 : vector<8x1xf32>
    %87 = vector.broadcast %79 : vector<8x1xf32> to vector<8x128xf32>
    %88 = arith.subf %75, %87 : vector<8x128xf32>
    %cst_45 = arith.constant 9.99999974E-6 : f32
    %89 = vector.broadcast %cst_45 : f32 to vector<8x1xf32>
    %90 = arith.addf %86, %89 : vector<8x1xf32>
    %91 = math.rsqrt %90 : vector<8x1xf32>
    %92 = vector.broadcast %91 : vector<8x1xf32> to vector<8x128xf32>
    %93 = arith.mulf %88, %92 : vector<8x128xf32>
    %94 = arith.truncf %93 : vector<8x128xf32> to vector<8x128xbf16>
    %c0_46 = arith.constant 0 : index
    %c0_47 = arith.constant 0 : index
    %c0_48 = arith.constant 0 : index
    %95 = vector.load %arg10[%c0_46, %c0_47, %c0_48] : memref<1x8x128xbf16, #tpu.memory_space<vmem>>, vector<1x8x128xbf16>
    %96 = vector.shape_cast %95 : vector<1x8x128xbf16> to vector<8x128xbf16>
    %97 = vector.shape_cast %94 : vector<8x128xbf16> to vector<1x8x128xbf16>
    tpu.vector_store %arg10[%c0_46, %c0_47, %c0_48], %97 {strides = array<i32>} : memref<1x8x128xbf16, #tpu.memory_space<vmem>>, vector<1x8x128xbf16>,
    return
  }
  func.func @transform_0(%arg0: i32) -> (i32, i32, i32) {
    %c0_i32 = arith.constant 0 : i32
    %c0_i32_0 = arith.constant 0 : i32
    %c0_i32_1 = arith.constant 0 : i32
    return %arg0, %c0_i32, %c0_i32_0 : i32, i32, i32
  }
  func.func @transform_1(%arg0: i32) -> (i32, i32, i32) {
    %c0_i32 = arith.constant 0 : i32
    %c0_i32_0 = arith.constant 0 : i32
    %c0_i32_1 = arith.constant 0 : i32
    return %arg0, %c0_i32, %c0_i32_0 : i32, i32, i32
  }
  func.func @transform_2(%arg0: i32) -> (i32, i32, i32) {
    %c0_i32 = arith.constant 0 : i32
    %c0_i32_0 = arith.constant 0 : i32
    %c0_i32_1 = arith.constant 0 : i32
    return %arg0, %c0_i32, %c0_i32_0 : i32, i32, i32
  }
  func.func @transform_3(%arg0: i32) -> (i32, i32) {
    %c0_i32 = arith.constant 0 : i32
    %c0_i32_0 = arith.constant 0 : i32
    %c0_i32_1 = arith.constant 0 : i32
    return %c0_i32, %c0_i32_0 : i32, i32
  }
  func.func @transform_4(%arg0: i32) -> (i32, i32) {
    %c0_i32 = arith.constant 0 : i32
    %c0_i32_0 = arith.constant 0 : i32
    %c0_i32_1 = arith.constant 0 : i32
    return %c0_i32, %c0_i32_0 : i32, i32
  }
  func.func @transform_5(%arg0: i32) -> (i32, i32) {
    %c0_i32 = arith.constant 0 : i32
    %c0_i32_0 = arith.constant 0 : i32
    %c0_i32_1 = arith.constant 0 : i32
    return %c0_i32, %c0_i32_0 : i32, i32
  }
  func.func @transform_6(%arg0: i32) -> (i32, i32) {
    %c0_i32 = arith.constant 0 : i32
    %c0_i32_0 = arith.constant 0 : i32
    %c0_i32_1 = arith.constant 0 : i32
    return %c0_i32, %c0_i32_0 : i32, i32
  }
  func.func @transform_7(%arg0: i32) -> (i32, i32) {
    %c0_i32 = arith.constant 0 : i32
    %c0_i32_0 = arith.constant 0 : i32
    %c0_i32_1 = arith.constant 0 : i32
    return %c0_i32, %c0_i32_0 : i32, i32
  }
  func.func @transform_8(%arg0: i32) -> (i32, i32) {
    %c0_i32 = arith.constant 0 : i32
    %c0_i32_0 = arith.constant 0 : i32
    %c0_i32_1 = arith.constant 0 : i32
    return %c0_i32, %c0_i32_0 : i32, i32
  }
  func.func @transform_9(%arg0: i32) -> (i32, i32, i32) {
    %c0_i32 = arith.constant 0 : i32
    %c0_i32_0 = arith.constant 0 : i32
    %c0_i32_1 = arith.constant 0 : i32
    return %arg0, %c0_i32, %c0_i32_0 : i32, i32, i32
  }
  func.func @transform_10(%arg0: i32) -> (i32, i32, i32, i32) {
    %c0_i32 = arith.constant 0 : i32
    %c0_i32_0 = arith.constant 0 : i32
    %c0_i32_1 = arith.constant 0 : i32
    %c0_i32_2 = arith.constant 0 : i32
    return %arg0, %c0_i32, %c0_i32_0, %c0_i32_1 : i32, i32, i32, i32
  }
}

module attributes {stable_mosaic.version = 11 : i64} {
  func.func @_ffn_kernel(%arg0: i32, %arg1: memref<8x128xbf16, #tpu.memory_space<vmem>>, %arg2: memref<128x2048xbf16, #tpu.memory_space<vmem>>, %arg3: memref<1x2048xf32, #tpu.memory_space<vmem>>, %arg4: memref<2048x128xbf16, #tpu.memory_space<vmem>>, %arg5: memref<1x128xf32, #tpu.memory_space<vmem>>, %arg6: memref<8x128xf32, #tpu.memory_space<vmem>>) attributes {dimension_semantics = [#tpu.dimension_semantics<parallel>], iteration_bounds = array<i64: 2>, scalar_prefetch = 0 : i64, scratch_operands = 0 : i64, tpu.core_type = #tpu.core_type<tc>, window_params = [{transform_indices = @transform_0, window_bounds = array<i64: 8, 128>}, {pipeline_mode = #tpu.pipeline_mode<synchronous>, transform_indices = @transform_1, window_bounds = array<i64: 128, 2048>}, {pipeline_mode = #tpu.pipeline_mode<synchronous>, transform_indices = @transform_2, window_bounds = array<i64: 1, 2048>}, {pipeline_mode = #tpu.pipeline_mode<synchronous>, transform_indices = @transform_3, window_bounds = array<i64: 2048, 128>}, {pipeline_mode = #tpu.pipeline_mode<synchronous>, transform_indices = @transform_4, window_bounds = array<i64: 1, 128>}, {transform_indices = @transform_5, window_bounds = array<i64: 8, 128>}]} {
    %c0 = arith.constant 0 : index
    %c0_0 = arith.constant 0 : index
    %0 = vector.load %arg1[%c0, %c0_0] : memref<8x128xbf16, #tpu.memory_space<vmem>>, vector<8x128xbf16>
    %c0_1 = arith.constant 0 : index
    %c0_2 = arith.constant 0 : index
    %1 = vector.load %arg2[%c0_1, %c0_2] : memref<128x2048xbf16, #tpu.memory_space<vmem>>, vector<128x2048xbf16>
    %cst = arith.constant dense<0.000000e+00> : vector<8x2048xf32>
    %2 = tpu.matmul %0, %1, %cst {dimension_numbers = #tpu.dot_dimension_numbers<[1], [0], [0], [1], [0, 0, 1, 1], [], []>} : vector<8x128xbf16>, vector<128x2048xbf16>, vector<8x2048xf32> -> vector<8x2048xf32>
    %c0_3 = arith.constant 0 : index
    %c0_4 = arith.constant 0 : index
    %3 = vector.load %arg3[%c0_3, %c0_4] : memref<1x2048xf32, #tpu.memory_space<vmem>>, vector<1x2048xf32>
    %4 = vector.broadcast %3 : vector<1x2048xf32> to vector<8x2048xf32>
    %5 = arith.addf %2, %4 : vector<8x2048xf32>
    %cst_5 = arith.constant 0.000000e+00 : f32
    %6 = vector.broadcast %cst_5 : f32 to vector<8x2048xf32>
    %7 = arith.maximumf %5, %6 : vector<8x2048xf32>
    %8 = arith.truncf %7 : vector<8x2048xf32> to vector<8x2048xbf16>
    %c0_6 = arith.constant 0 : index
    %c0_7 = arith.constant 0 : index
    %9 = vector.load %arg4[%c0_6, %c0_7] : memref<2048x128xbf16, #tpu.memory_space<vmem>>, vector<2048x128xbf16>
    %cst_8 = arith.constant dense<0.000000e+00> : vector<8x128xf32>
    %10 = tpu.matmul %8, %9, %cst_8 {dimension_numbers = #tpu.dot_dimension_numbers<[1], [0], [0], [1], [0, 0, 1, 1], [], []>} : vector<8x2048xbf16>, vector<2048x128xbf16>, vector<8x128xf32> -> vector<8x128xf32>
    %c0_9 = arith.constant 0 : index
    %c0_10 = arith.constant 0 : index
    %11 = vector.load %arg5[%c0_9, %c0_10] : memref<1x128xf32, #tpu.memory_space<vmem>>, vector<1x128xf32>
    %12 = vector.broadcast %11 : vector<1x128xf32> to vector<8x128xf32>
    %13 = arith.addf %10, %12 : vector<8x128xf32>
    %14 = arith.extf %0 : vector<8x128xbf16> to vector<8x128xf32>
    %15 = arith.addf %13, %14 : vector<8x128xf32>
    %cst_11 = arith.constant dense<0.000000e+00> : vector<8xf32>
    %16 = vector.multi_reduction <add>, %15, %cst_11 [1] : vector<8x128xf32> to vector<8xf32>
    %17 = vector.shape_cast %16 : vector<8xf32> to vector<8x1xf32>
    %cst_12 = arith.constant 1.280000e+02 : f32
    %18 = vector.broadcast %cst_12 : f32 to vector<8x1xf32>
    %19 = arith.divf %17, %18 : vector<8x1xf32>
    %20 = vector.broadcast %19 : vector<8x1xf32> to vector<8x128xf32>
    %21 = arith.subf %15, %20 : vector<8x128xf32>
    %22 = arith.mulf %21, %21 : vector<8x128xf32>
    %cst_13 = arith.constant dense<0.000000e+00> : vector<8xf32>
    %23 = vector.multi_reduction <add>, %22, %cst_13 [1] : vector<8x128xf32> to vector<8xf32>
    %24 = vector.shape_cast %23 : vector<8xf32> to vector<8x1xf32>
    %cst_14 = arith.constant 1.280000e+02 : f32
    %25 = vector.broadcast %cst_14 : f32 to vector<8x1xf32>
    %26 = arith.divf %24, %25 : vector<8x1xf32>
    %27 = vector.broadcast %19 : vector<8x1xf32> to vector<8x128xf32>
    %28 = arith.subf %15, %27 : vector<8x128xf32>
    %cst_15 = arith.constant 9.99999974E-6 : f32
    %29 = vector.broadcast %cst_15 : f32 to vector<8x1xf32>
    %30 = arith.addf %26, %29 : vector<8x1xf32>
    %31 = math.rsqrt %30 : vector<8x1xf32>
    %32 = vector.broadcast %31 : vector<8x1xf32> to vector<8x128xf32>
    %33 = arith.mulf %28, %32 : vector<8x128xf32>
    %c0_16 = arith.constant 0 : index
    %c0_17 = arith.constant 0 : index
    %34 = vector.load %arg6[%c0_16, %c0_17] : memref<8x128xf32, #tpu.memory_space<vmem>>, vector<8x128xf32>
    tpu.vector_store %arg6[%c0_16, %c0_17], %33 {strides = array<i32>} : memref<8x128xf32, #tpu.memory_space<vmem>>, vector<8x128xf32>,
    return
  }
  func.func @transform_0(%arg0: i32) -> (i32, i32) {
    %c0_i32 = arith.constant 0 : i32
    %c0_i32_0 = arith.constant 0 : i32
    return %arg0, %c0_i32 : i32, i32
  }
  func.func @transform_1(%arg0: i32) -> (i32, i32) {
    %c0_i32 = arith.constant 0 : i32
    %c0_i32_0 = arith.constant 0 : i32
    %c0_i32_1 = arith.constant 0 : i32
    return %c0_i32, %c0_i32_0 : i32, i32
  }
  func.func @transform_2(%arg0: i32) -> (i32, i32) {
    %c0_i32 = arith.constant 0 : i32
    %c0_i32_0 = arith.constant 0 : i32
    %c0_i32_1 = arith.constant 0 : i32
    return %c0_i32, %c0_i32_0 : i32, i32
  }
  func.func @transform_3(%arg0: i32) -> (i32, i32) {
    %c0_i32 = arith.constant 0 : i32
    %c0_i32_0 = arith.constant 0 : i32
    %c0_i32_1 = arith.constant 0 : i32
    return %c0_i32, %c0_i32_0 : i32, i32
  }
  func.func @transform_4(%arg0: i32) -> (i32, i32) {
    %c0_i32 = arith.constant 0 : i32
    %c0_i32_0 = arith.constant 0 : i32
    %c0_i32_1 = arith.constant 0 : i32
    return %c0_i32, %c0_i32_0 : i32, i32
  }
  func.func @transform_5(%arg0: i32) -> (i32, i32) {
    %c0_i32 = arith.constant 0 : i32
    %c0_i32_0 = arith.constant 0 : i32
    return %arg0, %c0_i32 : i32, i32
  }
}

module attributes {stable_mosaic.version = 11 : i64} {
  func.func @_mha_kernel(%arg0: i32, %arg1: memref<1x8x128xbf16, #tpu.memory_space<vmem>>, %arg2: memref<1x16x2048xbf16, #tpu.memory_space<vmem>>, %arg3: memref<1x8x16xi8, #tpu.memory_space<vmem>>, %arg4: memref<128x128xbf16, #tpu.memory_space<vmem>>, %arg5: memref<1x128xf32, #tpu.memory_space<vmem>>, %arg6: memref<2048x256xbf16, #tpu.memory_space<vmem>>, %arg7: memref<1x256xf32, #tpu.memory_space<vmem>>, %arg8: memref<128x128xbf16, #tpu.memory_space<vmem>>, %arg9: memref<1x128xf32, #tpu.memory_space<vmem>>, %arg10: memref<1x8x128xbf16, #tpu.memory_space<vmem>>, %arg11: memref<1x2x8x16xf32, #tpu.memory_space<vmem>>) attributes {dimension_semantics = [#tpu.dimension_semantics<parallel>], iteration_bounds = array<i64: 2>, scalar_prefetch = 0 : i64, scratch_operands = 0 : i64, tpu.core_type = #tpu.core_type<tc>, window_params = [{transform_indices = @transform_0, window_bounds = array<i64: 1, 8, 128>}, {transform_indices = @transform_1, window_bounds = array<i64: 1, 16, 2048>}, {transform_indices = @transform_2, window_bounds = array<i64: 1, 8, 16>}, {pipeline_mode = #tpu.pipeline_mode<synchronous>, transform_indices = @transform_3, window_bounds = array<i64: 128, 128>}, {pipeline_mode = #tpu.pipeline_mode<synchronous>, transform_indices = @transform_4, window_bounds = array<i64: 1, 128>}, {pipeline_mode = #tpu.pipeline_mode<synchronous>, transform_indices = @transform_5, window_bounds = array<i64: 2048, 256>}, {pipeline_mode = #tpu.pipeline_mode<synchronous>, transform_indices = @transform_6, window_bounds = array<i64: 1, 256>}, {pipeline_mode = #tpu.pipeline_mode<synchronous>, transform_indices = @transform_7, window_bounds = array<i64: 128, 128>}, {pipeline_mode = #tpu.pipeline_mode<synchronous>, transform_indices = @transform_8, window_bounds = array<i64: 1, 128>}, {transform_indices = @transform_9, window_bounds = array<i64: 1, 8, 128>}, {transform_indices = @transform_10, window_bounds = array<i64: 1, 2, 8, 16>}]} {
    %c0 = arith.constant 0 : index
    %c0_0 = arith.constant 0 : index
    %c0_1 = arith.constant 0 : index
    %0 = vector.load %arg1[%c0, %c0_0, %c0_1] : memref<1x8x128xbf16, #tpu.memory_space<vmem>>, vector<1x8x128xbf16>
    %1 = vector.shape_cast %0 : vector<1x8x128xbf16> to vector<8x128xbf16>
    %c0_2 = arith.constant 0 : index
    %c0_3 = arith.constant 0 : index
    %2 = vector.load %arg4[%c0_2, %c0_3] : memref<128x128xbf16, #tpu.memory_space<vmem>>, vector<128x128xbf16>
    %cst = arith.constant dense<0.000000e+00> : vector<8x128xf32>
    %3 = tpu.matmul %1, %2, %cst {dimension_numbers = #tpu.dot_dimension_numbers<[1], [0], [0], [1], [0, 0, 1, 1], [], []>} : vector<8x128xbf16>, vector<128x128xbf16>, vector<8x128xf32> -> vector<8x128xf32>
    %c0_4 = arith.constant 0 : index
    %c0_5 = arith.constant 0 : index
    %4 = vector.load %arg5[%c0_4, %c0_5] : memref<1x128xf32, #tpu.memory_space<vmem>>, vector<1x128xf32>
    %5 = vector.broadcast %4 : vector<1x128xf32> to vector<8x128xf32>
    %6 = arith.addf %3, %5 : vector<8x128xf32>
    %c0_6 = arith.constant 0 : index
    %c0_7 = arith.constant 0 : index
    %c0_8 = arith.constant 0 : index
    %7 = vector.load %arg2[%c0_6, %c0_7, %c0_8] : memref<1x16x2048xbf16, #tpu.memory_space<vmem>>, vector<1x16x2048xbf16>
    %8 = vector.shape_cast %7 : vector<1x16x2048xbf16> to vector<16x2048xbf16>
    %c0_9 = arith.constant 0 : index
    %c0_10 = arith.constant 0 : index
    %9 = vector.load %arg6[%c0_9, %c0_10] : memref<2048x256xbf16, #tpu.memory_space<vmem>>, vector<2048x256xbf16>
    %cst_11 = arith.constant dense<0.000000e+00> : vector<16x256xf32>
    %10 = tpu.matmul %8, %9, %cst_11 {dimension_numbers = #tpu.dot_dimension_numbers<[1], [0], [0], [1], [0, 0, 1, 1], [], []>} : vector<16x2048xbf16>, vector<2048x256xbf16>, vector<16x256xf32> -> vector<16x256xf32>
    %c0_12 = arith.constant 0 : index
    %c0_13 = arith.constant 0 : index
    %11 = vector.load %arg7[%c0_12, %c0_13] : memref<1x256xf32, #tpu.memory_space<vmem>>, vector<1x256xf32>
    %12 = vector.broadcast %11 : vector<1x256xf32> to vector<16x256xf32>
    %13 = arith.addf %10, %12 : vector<16x256xf32>
    %cst_14 = arith.constant 1.250000e-01 : f32
    %14 = vector.broadcast %cst_14 : f32 to vector<8x128xf32>
    %15 = arith.mulf %6, %14 : vector<8x128xf32>
    %16 = arith.truncf %15 : vector<8x128xf32> to vector<8x128xbf16>
    %17 = arith.truncf %13 : vector<16x256xf32> to vector<16x256xbf16>
    %c0_15 = arith.constant 0 : index
    %c0_16 = arith.constant 0 : index
    %c0_17 = arith.constant 0 : index
    %18 = vector.load %arg3[%c0_15, %c0_16, %c0_17] : memref<1x8x16xi8, #tpu.memory_space<vmem>>, vector<1x8x16xi8>
    %19 = vector.shape_cast %18 : vector<1x8x16xi8> to vector<8x16xi8>
    %20 = arith.sitofp %19 : vector<8x16xi8> to vector<8x16xf32>
    %cst_18 = arith.constant 5.000000e-01 : f32
    %21 = vector.broadcast %cst_18 : f32 to vector<8x16xf32>
    %22 = arith.cmpf ogt, %20, %21 : vector<8x16xf32>
    %23 = vector.extract_strided_slice %16 {offsets = [0, 0], sizes = [8, 64], strides = [1, 1]} : vector<8x128xbf16> to vector<8x64xbf16>
    %24 = vector.extract_strided_slice %17 {offsets = [0, 0], sizes = [16, 64], strides = [1, 1]} : vector<16x256xbf16> to vector<16x64xbf16>
    %25 = vector.extract_strided_slice %17 {offsets = [0, 128], sizes = [16, 64], strides = [1, 1]} : vector<16x256xbf16> to vector<16x64xbf16>
    %26 = tpu.transpose %24, [1, 0] : vector<16x64xbf16> -> vector<64x16xbf16>
    %cst_19 = arith.constant dense<0.000000e+00> : vector<8x16xf32>
    %27 = tpu.matmul %23, %26, %cst_19 {dimension_numbers = #tpu.dot_dimension_numbers<[1], [0], [0], [1], [0, 0, 1, 1], [], []>} : vector<8x64xbf16>, vector<64x16xbf16>, vector<8x16xf32> -> vector<8x16xf32>
    %cst_20 = arith.constant -1.000000e+09 : f32
    %28 = vector.broadcast %cst_20 : f32 to vector<8x16xf32>
    %29 = arith.select %22, %28, %27 : vector<8x16xi1>, vector<8x16xf32>
    %cst_21 = arith.constant dense<0xFF800000> : vector<8xf32>
    %30 = vector.multi_reduction <maximumf>, %29, %cst_21 [1] : vector<8x16xf32> to vector<8xf32>
    %31 = vector.shape_cast %30 : vector<8xf32> to vector<8x1xf32>
    %32 = vector.broadcast %31 : vector<8x1xf32> to vector<8x16xf32>
    %33 = arith.subf %29, %32 : vector<8x16xf32>
    %34 = math.exp %33 : vector<8x16xf32>
    %cst_22 = arith.constant dense<0.000000e+00> : vector<8xf32>
    %35 = vector.multi_reduction <add>, %34, %cst_22 [1] : vector<8x16xf32> to vector<8xf32>
    %36 = vector.shape_cast %35 : vector<8xf32> to vector<8x1xf32>
    %37 = tpu.reciprocal %36 {approx = true} : vector<8x1xf32> -> vector<8x1xf32>
    %38 = vector.broadcast %37 : vector<8x1xf32> to vector<8x16xf32>
    %39 = arith.mulf %34, %38 : vector<8x16xf32>
    %c0_23 = arith.constant 0 : index
    %c0_24 = arith.constant 0 : index
    %c0_25 = arith.constant 0 : index
    %c0_26 = arith.constant 0 : index
    %40 = vector.load %arg11[%c0_23, %c0_24, %c0_25, %c0_26] : memref<1x2x8x16xf32, #tpu.memory_space<vmem>>, vector<1x1x8x16xf32>
    %41 = vector.shape_cast %40 : vector<1x1x8x16xf32> to vector<8x16xf32>
    %42 = vector.shape_cast %39 : vector<8x16xf32> to vector<1x1x8x16xf32>
    tpu.vector_store %arg11[%c0_23, %c0_24, %c0_25, %c0_26], %42 {strides = array<i32>} : memref<1x2x8x16xf32, #tpu.memory_space<vmem>>, vector<1x1x8x16xf32>,
    %43 = arith.truncf %39 : vector<8x16xf32> to vector<8x16xbf16>
    %cst_27 = arith.constant dense<0.000000e+00> : vector<8x64xf32>
    %44 = tpu.matmul %43, %25, %cst_27 {dimension_numbers = #tpu.dot_dimension_numbers<[1], [0], [0], [1], [0, 0, 1, 1], [], []>} : vector<8x16xbf16>, vector<16x64xbf16>, vector<8x64xf32> -> vector<8x64xf32>
    %45 = vector.extract_strided_slice %16 {offsets = [0, 64], sizes = [8, 64], strides = [1, 1]} : vector<8x128xbf16> to vector<8x64xbf16>
    %46 = vector.extract_strided_slice %17 {offsets = [0, 64], sizes = [16, 64], strides = [1, 1]} : vector<16x256xbf16> to vector<16x64xbf16>
    %47 = vector.extract_strided_slice %17 {offsets = [0, 192], sizes = [16, 64], strides = [1, 1]} : vector<16x256xbf16> to vector<16x64xbf16>
    %48 = tpu.transpose %46, [1, 0] : vector<16x64xbf16> -> vector<64x16xbf16>
    %cst_28 = arith.constant dense<0.000000e+00> : vector<8x16xf32>
    %49 = tpu.matmul %45, %48, %cst_28 {dimension_numbers = #tpu.dot_dimension_numbers<[1], [0], [0], [1], [0, 0, 1, 1], [], []>} : vector<8x64xbf16>, vector<64x16xbf16>, vector<8x16xf32> -> vector<8x16xf32>
    %cst_29 = arith.constant -1.000000e+09 : f32
    %50 = vector.broadcast %cst_29 : f32 to vector<8x16xf32>
    %51 = arith.select %22, %50, %49 : vector<8x16xi1>, vector<8x16xf32>
    %cst_30 = arith.constant dense<0xFF800000> : vector<8xf32>
    %52 = vector.multi_reduction <maximumf>, %51, %cst_30 [1] : vector<8x16xf32> to vector<8xf32>
    %53 = vector.shape_cast %52 : vector<8xf32> to vector<8x1xf32>
    %54 = vector.broadcast %53 : vector<8x1xf32> to vector<8x16xf32>
    %55 = arith.subf %51, %54 : vector<8x16xf32>
    %56 = math.exp %55 : vector<8x16xf32>
    %cst_31 = arith.constant dense<0.000000e+00> : vector<8xf32>
    %57 = vector.multi_reduction <add>, %56, %cst_31 [1] : vector<8x16xf32> to vector<8xf32>
    %58 = vector.shape_cast %57 : vector<8xf32> to vector<8x1xf32>
    %59 = tpu.reciprocal %58 {approx = true} : vector<8x1xf32> -> vector<8x1xf32>
    %60 = vector.broadcast %59 : vector<8x1xf32> to vector<8x16xf32>
    %61 = arith.mulf %56, %60 : vector<8x16xf32>
    %c0_32 = arith.constant 0 : index
    %c1 = arith.constant 1 : index
    %c0_33 = arith.constant 0 : index
    %c0_34 = arith.constant 0 : index
    %62 = vector.load %arg11[%c0_32, %c1, %c0_33, %c0_34] : memref<1x2x8x16xf32, #tpu.memory_space<vmem>>, vector<1x1x8x16xf32>
    %63 = vector.shape_cast %62 : vector<1x1x8x16xf32> to vector<8x16xf32>
    %64 = vector.shape_cast %61 : vector<8x16xf32> to vector<1x1x8x16xf32>
    tpu.vector_store %arg11[%c0_32, %c1, %c0_33, %c0_34], %64 {strides = array<i32>} : memref<1x2x8x16xf32, #tpu.memory_space<vmem>>, vector<1x1x8x16xf32>,
    %65 = arith.truncf %61 : vector<8x16xf32> to vector<8x16xbf16>
    %cst_35 = arith.constant dense<0.000000e+00> : vector<8x64xf32>
    %66 = tpu.matmul %65, %47, %cst_35 {dimension_numbers = #tpu.dot_dimension_numbers<[1], [0], [0], [1], [0, 0, 1, 1], [], []>} : vector<8x16xbf16>, vector<16x64xbf16>, vector<8x64xf32> -> vector<8x64xf32>
    %67 = tpu.concatenate %44, %66 in 1 : vector<8x64xf32>, vector<8x64xf32> -> vector<8x128xf32>
    %68 = arith.truncf %67 : vector<8x128xf32> to vector<8x128xbf16>
    %c0_36 = arith.constant 0 : index
    %c0_37 = arith.constant 0 : index
    %69 = vector.load %arg8[%c0_36, %c0_37] : memref<128x128xbf16, #tpu.memory_space<vmem>>, vector<128x128xbf16>
    %cst_38 = arith.constant dense<0.000000e+00> : vector<8x128xf32>
    %70 = tpu.matmul %68, %69, %cst_38 {dimension_numbers = #tpu.dot_dimension_numbers<[1], [0], [0], [1], [0, 0, 1, 1], [], []>} : vector<8x128xbf16>, vector<128x128xbf16>, vector<8x128xf32> -> vector<8x128xf32>
    %c0_39 = arith.constant 0 : index
    %c0_40 = arith.constant 0 : index
    %71 = vector.load %arg9[%c0_39, %c0_40] : memref<1x128xf32, #tpu.memory_space<vmem>>, vector<1x128xf32>
    %72 = vector.broadcast %71 : vector<1x128xf32> to vector<8x128xf32>
    %73 = arith.addf %70, %72 : vector<8x128xf32>
    %74 = arith.extf %1 : vector<8x128xbf16> to vector<8x128xf32>
    %75 = arith.addf %73, %74 : vector<8x128xf32>
    %cst_41 = arith.constant dense<0.000000e+00> : vector<8xf32>
    %76 = vector.multi_reduction <add>, %75, %cst_41 [1] : vector<8x128xf32> to vector<8xf32>
    %77 = vector.shape_cast %76 : vector<8xf32> to vector<8x1xf32>
    %cst_42 = arith.constant 1.280000e+02 : f32
    %78 = vector.broadcast %cst_42 : f32 to vector<8x1xf32>
    %79 = arith.divf %77, %78 : vector<8x1xf32>
    %80 = vector.broadcast %79 : vector<8x1xf32> to vector<8x128xf32>
    %81 = arith.subf %75, %80 : vector<8x128xf32>
    %82 = arith.mulf %81, %81 : vector<8x128xf32>
    %cst_43 = arith.constant dense<0.000000e+00> : vector<8xf32>
    %83 = vector.multi_reduction <add>, %82, %cst_43 [1] : vector<8x128xf32> to vector<8xf32>
    %84 = vector.shape_cast %83 : vector<8xf32> to vector<8x1xf32>
    %cst_44 = arith.constant 1.280000e+02 : f32
    %85 = vector.broadcast %cst_44 : f32 to vector<8x1xf32>
    %86 = arith.divf %84, %85 : vector<8x1xf32>
    %87 = vector.broadcast %79 : vector<8x1xf32> to vector<8x128xf32>
    %88 = arith.subf %75, %87 : vector<8x128xf32>
    %cst_45 = arith.constant 9.99999974E-6 : f32
    %89 = vector.broadcast %cst_45 : f32 to vector<8x1xf32>
    %90 = arith.addf %86, %89 : vector<8x1xf32>
    %91 = math.rsqrt %90 : vector<8x1xf32>
    %92 = vector.broadcast %91 : vector<8x1xf32> to vector<8x128xf32>
    %93 = arith.mulf %88, %92 : vector<8x128xf32>
    %94 = arith.truncf %93 : vector<8x128xf32> to vector<8x128xbf16>
    %c0_46 = arith.constant 0 : index
    %c0_47 = arith.constant 0 : index
    %c0_48 = arith.constant 0 : index
    %95 = vector.load %arg10[%c0_46, %c0_47, %c0_48] : memref<1x8x128xbf16, #tpu.memory_space<vmem>>, vector<1x8x128xbf16>
    %96 = vector.shape_cast %95 : vector<1x8x128xbf16> to vector<8x128xbf16>
    %97 = vector.shape_cast %94 : vector<8x128xbf16> to vector<1x8x128xbf16>
    tpu.vector_store %arg10[%c0_46, %c0_47, %c0_48], %97 {strides = array<i32>} : memref<1x8x128xbf16, #tpu.memory_space<vmem>>, vector<1x8x128xbf16>,
    return
  }
  func.func @transform_0(%arg0: i32) -> (i32, i32, i32) {
    %c0_i32 = arith.constant 0 : i32
    %c0_i32_0 = arith.constant 0 : i32
    %c0_i32_1 = arith.constant 0 : i32
    return %arg0, %c0_i32, %c0_i32_0 : i32, i32, i32
  }
  func.func @transform_1(%arg0: i32) -> (i32, i32, i32) {
    %c0_i32 = arith.constant 0 : i32
    %c0_i32_0 = arith.constant 0 : i32
    %c0_i32_1 = arith.constant 0 : i32
    return %arg0, %c0_i32, %c0_i32_0 : i32, i32, i32
  }
  func.func @transform_2(%arg0: i32) -> (i32, i32, i32) {
    %c0_i32 = arith.constant 0 : i32
    %c0_i32_0 = arith.constant 0 : i32
    %c0_i32_1 = arith.constant 0 : i32
    return %arg0, %c0_i32, %c0_i32_0 : i32, i32, i32
  }
  func.func @transform_3(%arg0: i32) -> (i32, i32) {
    %c0_i32 = arith.constant 0 : i32
    %c0_i32_0 = arith.constant 0 : i32
    %c0_i32_1 = arith.constant 0 : i32
    return %c0_i32, %c0_i32_0 : i32, i32
  }
  func.func @transform_4(%arg0: i32) -> (i32, i32) {
    %c0_i32 = arith.constant 0 : i32
    %c0_i32_0 = arith.constant 0 : i32
    %c0_i32_1 = arith.constant 0 : i32
    return %c0_i32, %c0_i32_0 : i32, i32
  }
  func.func @transform_5(%arg0: i32) -> (i32, i32) {
    %c0_i32 = arith.constant 0 : i32
    %c0_i32_0 = arith.constant 0 : i32
    %c0_i32_1 = arith.constant 0 : i32
    return %c0_i32, %c0_i32_0 : i32, i32
  }
  func.func @transform_6(%arg0: i32) -> (i32, i32) {
    %c0_i32 = arith.constant 0 : i32
    %c0_i32_0 = arith.constant 0 : i32
    %c0_i32_1 = arith.constant 0 : i32
    return %c0_i32, %c0_i32_0 : i32, i32
  }
  func.func @transform_7(%arg0: i32) -> (i32, i32) {
    %c0_i32 = arith.constant 0 : i32
    %c0_i32_0 = arith.constant 0 : i32
    %c0_i32_1 = arith.constant 0 : i32
    return %c0_i32, %c0_i32_0 : i32, i32
  }
  func.func @transform_8(%arg0: i32) -> (i32, i32) {
    %c0_i32 = arith.constant 0 : i32
    %c0_i32_0 = arith.constant 0 : i32
    %c0_i32_1 = arith.constant 0 : i32
    return %c0_i32, %c0_i32_0 : i32, i32
  }
  func.func @transform_9(%arg0: i32) -> (i32, i32, i32) {
    %c0_i32 = arith.constant 0 : i32
    %c0_i32_0 = arith.constant 0 : i32
    %c0_i32_1 = arith.constant 0 : i32
    return %arg0, %c0_i32, %c0_i32_0 : i32, i32, i32
  }
  func.func @transform_10(%arg0: i32) -> (i32, i32, i32, i32) {
    %c0_i32 = arith.constant 0 : i32
    %c0_i32_0 = arith.constant 0 : i32
    %c0_i32_1 = arith.constant 0 : i32
    %c0_i32_2 = arith.constant 0 : i32
    return %arg0, %c0_i32, %c0_i32_0, %c0_i32_1 : i32, i32, i32, i32
  }
}

</mosaic_0001>

<llo_original>
// kernel: _lambda_.3
$region0: #{_lambda_.3}
  #allocation0 [shape = 'u32[]', space=smem, size = 0x4, offset = 0x4, fixed_abs, tag = 'smem constant byte address 0x4 - core index']
  #allocation1 [shape = 'u32[72,128]{1,0:T(1,128)}', space=vmem, size = 0x9000, scoped, tag = 'internal scratch']
  %s0 = inlined_call_operand.vmem [shape: bf16[2,8,128], index: 0, kind: input, shape index: {}, may-alias: {0,1}]
  %s1 = inlined_call_operand.vmem [shape: bf16[2,8,128], index: 1, kind: input, shape index: {}, may-alias: {0,1}]
  %s2 = inlined_call_operand.vmem [shape: s8[2,8,8], index: 2, kind: input, shape index: {}]
  %s3 = inlined_call_operand.hbm [shape: bf16[128,128], index: 3, kind: input, shape index: {}]
  %s4 = inlined_call_operand.vmem [shape: f32[1,128], index: 4, kind: input, shape index: {}]
  %s5 = inlined_call_operand.hbm [shape: bf16[128,256], index: 5, kind: input, shape index: {}]
  %s6 = inlined_call_operand.vmem [shape: f32[1,256], index: 6, kind: input, shape index: {}]
  %s7 = inlined_call_operand.hbm [shape: bf16[128,128], index: 7, kind: input, shape index: {}]
  %s8 = inlined_call_operand.vmem [shape: f32[1,128], index: 8, kind: input, shape index: {}]
  %s9 = inlined_call_operand.vmem [shape: bf16[2,8,128], index: 9, kind: output, shape index: {0}]
  %s10 = inlined_call_operand.hbm [shape: f32[2,2,8,8], index: 10, kind: output, shape index: {1}]
  %11 = xla_tuple %s9, %s10
  %s12 = sld [smem:[#allocation0]]
  $region89: #{_lambda_.3} parent=0
    _
  %s14 = ssub.s32 1, %s12
  %s15 = scalar_select 0, %s14, %s12
  $region1: #{_lambda_.3} parent=0
    #allocation2 [shape = 'u8[32768]{0}', space=vmem, size = 0x8000, scoped, tag = 'input window, operand 3, single buffered']
    #allocation3 [shape = 's32[2]{0}', space=sflag, size = 0x8, scoped, tag = 'scoped memory for _lambda_.3']
    #allocation4 [shape = 's32[2]{0}', space=sflag, size = 0x8, scoped, tag = 'scoped memory for _lambda_.3']
    #allocation5 [shape = 'u8[65536]{0}', space=vmem, size = 0x10000, scoped, tag = 'input window, operand 5, single buffered']
    #allocation6 [shape = 's32[1]{0}', space=sflag, size = 0x4, scoped, tag = 'scoped memory for _lambda_.3']
    #allocation7 [shape = 'u8[32768]{0}', space=vmem, size = 0x8000, scoped, tag = 'input window, operand 7, single buffered']
    #allocation8 [shape = 'u8[16384]{0}', space=vmem, size = 0x4000, scoped, tag = 'output window, operand 1']
    %16 = vsyncpa [#allocation3], 0
    %17 = vsyncpa [#allocation6], 0
    %18 = vsyncpa [#allocation4], 0
    %s19 = scalar_lea.sflag [#allocation4], 1
    %20 = vsyncpa %s19, 0
    loop: start=0, step=1, limit=4
    $region2: #{_lambda_.3} parent=1 // loop_pre_header
      _
    $region3: #{_lambda_.3} parent=1 // loop_header
      %s22 = sphi 0, %s26
      %p23 = scmp.ge.s32.totalorder %s22, 4
      %s32 = sphi 0, %s34
      %s35 = sphi 0, %s32
      %s36 = sphi 0, %s35
      %s52 = sphi 0, %s36
      %s58 = sphi 0, %s60
      %s61 = sphi 0, %s58
      %s62 = sphi 0, %s61
      %s78 = sphi 0, %s62
      %s84 = sphi 0, %s86
      %s87 = sphi 0, %s84
      %s88 = sphi 0, %s87
      %s104 = sphi 0, %s88
      %s108 = sphi 0, %s108
      %s110 = sphi 0, %s108
      %s111 = sphi 0, %s110
      %s125 = sphi 0, %s111
      %s129 = sphi 0, %s129
      %s131 = sphi 0, %s129
      %s132 = sphi 0, %s131
      %s146 = sphi 0, %s132
      %s150 = sphi 0, %s150
      %s152 = sphi 0, %s150
      %s153 = sphi 0, %s152
      %s167 = sphi 0, %s153
      %s171 = sphi 0, %s171
      %s173 = sphi 0, %s171
      %s174 = sphi 0, %s173
      %s188 = sphi 0, %s174
      %s192 = sphi 0, %s192
      %s194 = sphi 0, %s192
      %s195 = sphi 0, %s194
      %s209 = sphi 0, %s195
      %s213 = sphi 0, %s213
      %s215 = sphi 0, %s213
      %s216 = sphi 0, %s215
      %s230 = sphi 0, %s216
      %s236 = sphi 0, %s238
      %s239 = sphi 0, %s236
      %s240 = sphi 0, %s239
      %s256 = sphi 0, %s240
      %s262 = sphi 0, %s264
      %s265 = sphi 0, %s262
      %s266 = sphi 0, %s265
      %s282 = sphi 0, %s266
    $region4: #{_lambda_.3} parent=1 // loop_header_branch
      %25 = sbr.rel (%p23) target = $region8
    $region5: #{_lambda_.3} parent=1 // loop_body
      %s27 = ssub.s32 %s22, 1
      %s28 = ssub.s32 %s22, 2
      %s29 = sadd.s32 %s22, 1
      %s30 = ssub.s32 %s22, %s29
      %p31 = scmp.eq.s32.totalorder %s30, 0
      %s33 = sadd.s32 %s32, 1
      %s34 = scalar_select %p31, %s32, %s33
      %p37 = pneg %p31
      %p38 = scmp.eq.s32.totalorder %s22, 1
      %p39 = por %p37, %p38
      %p40 = scmp.ne.s32.totalorder %s32, %s35
      %p41 = scmp.eq.s32.totalorder %s22, 0
      %p42 = por %p40, %p41
      %p43 = scmp.ne.s32.totalorder %s32, %s35
      %p44 = scmp.eq.s32.totalorder %s27, 1
      %p45 = por %p43, %p44
      %p46 = scmp.ne.s32.totalorder %s35, %s36
      %p47 = scmp.eq.s32.totalorder %s27, 0
      %p48 = por %p46, %p47
      %p49 = scmp.ne.s32.totalorder %s35, %s36
      %p50 = scmp.eq.s32.totalorder %s28, 1
      %p51 = por %p49, %p50
      %p53 = scmp.ne.s32.totalorder %s36, %s52
      %p54 = scmp.eq.s32.totalorder %s28, 0
      %p55 = por %p53, %p54
      %s56 = ssub.s32 %s22, %s29
      %p57 = scmp.eq.s32.totalorder %s56, 0
      %s59 = sadd.s32 %s58, 1
      %s60 = scalar_select %p57, %s58, %s59
      %p63 = pneg %p57
      %p64 = scmp.eq.s32.totalorder %s22, 1
      %p65 = por %p63, %p64
      %p66 = scmp.ne.s32.totalorder %s58, %s61
      %p67 = scmp.eq.s32.totalorder %s22, 0
      %p68 = por %p66, %p67
      %p69 = scmp.ne.s32.totalorder %s58, %s61
      %p70 = scmp.eq.s32.totalorder %s27, 1
      %p71 = por %p69, %p70
      %p72 = scmp.ne.s32.totalorder %s61, %s62
      %p73 = scmp.eq.s32.totalorder %s27, 0
      %p74 = por %p72, %p73
      %p75 = scmp.ne.s32.totalorder %s61, %s62
      %p76 = scmp.eq.s32.totalorder %s28, 1
      %p77 = por %p75, %p76
      %p79 = scmp.ne.s32.totalorder %s62, %s78
      %p80 = scmp.eq.s32.totalorder %s28, 0
      %p81 = por %p79, %p80
      %s82 = ssub.s32 %s22, %s29
      %p83 = scmp.eq.s32.totalorder %s82, 0
      %s85 = sadd.s32 %s84, 1
      %s86 = scalar_select %p83, %s84, %s85
      %p89 = pneg %p83
      %p90 = scmp.eq.s32.totalorder %s22, 1
      %p91 = por %p89, %p90
      %p92 = scmp.ne.s32.totalorder %s84, %s87
      %p93 = scmp.eq.s32.totalorder %s22, 0
      %p94 = por %p92, %p93
      %p95 = scmp.ne.s32.totalorder %s84, %s87
      %p96 = scmp.eq.s32.totalorder %s27, 1
      %p97 = por %p95, %p96
      %p98 = scmp.ne.s32.totalorder %s87, %s88
      %p99 = scmp.eq.s32.totalorder %s27, 0
      %p100 = por %p98, %p99
      %p101 = scmp.ne.s32.totalorder %s87, %s88
      %p102 = scmp.eq.s32.totalorder %s28, 1
      %p103 = por %p101, %p102
      %p105 = scmp.ne.s32.totalorder %s88, %s104
      %p106 = scmp.eq.s32.totalorder %s28, 0
      %p107 = por %p105, %p106
      %s109 = sadd.s32 %s108, 1
      %p112 = scmp.eq.s32.totalorder %s22, 1
      %p113 = scmp.ne.s32.totalorder %s108, %s110
      %p114 = scmp.eq.s32.totalorder %s22, 0
      %p115 = por %p113, %p114
      %p116 = scmp.ne.s32.totalorder %s108, %s110
      %p117 = scmp.eq.s32.totalorder %s27, 1
      %p118 = por %p116, %p117
      %p119 = scmp.ne.s32.totalorder %s110, %s111
      %p120 = scmp.eq.s32.totalorder %s27, 0
      %p121 = por %p119, %p120
      %p122 = scmp.ne.s32.totalorder %s110, %s111
      %p123 = scmp.eq.s32.totalorder %s28, 1
      %p124 = por %p122, %p123
      %p126 = scmp.ne.s32.totalorder %s111, %s125
      %p127 = scmp.eq.s32.totalorder %s28, 0
      %p128 = por %p126, %p127
      %s130 = sadd.s32 %s129, 1
      %p133 = scmp.eq.s32.totalorder %s22, 1
      %p134 = scmp.ne.s32.totalorder %s129, %s131
      %p135 = scmp.eq.s32.totalorder %s22, 0
      %p136 = por %p134, %p135
      %p137 = scmp.ne.s32.totalorder %s129, %s131
      %p138 = scmp.eq.s32.totalorder %s27, 1
      %p139 = por %p137, %p138
      %p140 = scmp.ne.s32.totalorder %s131, %s132
      %p141 = scmp.eq.s32.totalorder %s27, 0
      %p142 = por %p140, %p141
      %p143 = scmp.ne.s32.totalorder %s131, %s132
      %p144 = scmp.eq.s32.totalorder %s28, 1
      %p145 = por %p143, %p144
      %p147 = scmp.ne.s32.totalorder %s132, %s146
      %p148 = scmp.eq.s32.totalorder %s28, 0
      %p149 = por %p147, %p148
      %s151 = sadd.s32 %s150, 1
      %p154 = scmp.eq.s32.totalorder %s22, 1
      %p155 = scmp.ne.s32.totalorder %s150, %s152
      %p156 = scmp.eq.s32.totalorder %s22, 0
      %p157 = por %p155, %p156
      %p158 = scmp.ne.s32.totalorder %s150, %s152
      %p159 = scmp.eq.s32.totalorder %s27, 1
      %p160 = por %p158, %p159
      %p161 = scmp.ne.s32.totalorder %s152, %s153
      %p162 = scmp.eq.s32.totalorder %s27, 0
      %p163 = por %p161, %p162
      %p164 = scmp.ne.s32.totalorder %s152, %s153
      %p165 = scmp.eq.s32.totalorder %s28, 1
      %p166 = por %p164, %p165
      %p168 = scmp.ne.s32.totalorder %s153, %s167
      %p169 = scmp.eq.s32.totalorder %s28, 0
      %p170 = por %p168, %p169
      %s172 = sadd.s32 %s171, 1
      %p175 = scmp.eq.s32.totalorder %s22, 1
      %p176 = scmp.ne.s32.totalorder %s171, %s173
      %p177 = scmp.eq.s32.totalorder %s22, 0
      %p178 = por %p176, %p177
      %p179 = scmp.ne.s32.totalorder %s171, %s173
      %p180 = scmp.eq.s32.totalorder %s27, 1
      %p181 = por %p179, %p180
      %p182 = scmp.ne.s32.totalorder %s173, %s174
      %p183 = scmp.eq.s32.totalorder %s27, 0
      %p184 = por %p182, %p183
      %p185 = scmp.ne.s32.totalorder %s173, %s174
      %p186 = scmp.eq.s32.totalorder %s28, 1
      %p187 = por %p185, %p186
      %p189 = scmp.ne.s32.totalorder %s174, %s188
      %p190 = scmp.eq.s32.totalorder %s28, 0
      %p191 = por %p189, %p190
      %s193 = sadd.s32 %s192, 1
      %p196 = scmp.eq.s32.totalorder %s22, 1
      %p197 = scmp.ne.s32.totalorder %s192, %s194
      %p198 = scmp.eq.s32.totalorder %s22, 0
      %p199 = por %p197, %p198
      %p200 = scmp.ne.s32.totalorder %s192, %s194
      %p201 = scmp.eq.s32.totalorder %s27, 1
      %p202 = por %p200, %p201
      %p203 = scmp.ne.s32.totalorder %s194, %s195
      %p204 = scmp.eq.s32.totalorder %s27, 0
      %p205 = por %p203, %p204
      %p206 = scmp.ne.s32.totalorder %s194, %s195
      %p207 = scmp.eq.s32.totalorder %s28, 1
      %p208 = por %p206, %p207
      %p210 = scmp.ne.s32.totalorder %s195, %s209
      %p211 = scmp.eq.s32.totalorder %s28, 0
      %p212 = por %p210, %p211
      %s214 = sadd.s32 %s213, 1
      %p217 = scmp.eq.s32.totalorder %s22, 1
      %p218 = scmp.ne.s32.totalorder %s213, %s215
      %p219 = scmp.eq.s32.totalorder %s22, 0
      %p220 = por %p218, %p219
      %p221 = scmp.ne.s32.totalorder %s213, %s215
      %p222 = scmp.eq.s32.totalorder %s27, 1
      %p223 = por %p221, %p222
      %p224 = scmp.ne.s32.totalorder %s215, %s216
      %p225 = scmp.eq.s32.totalorder %s27, 0
      %p226 = por %p224, %p225
      %p227 = scmp.ne.s32.totalorder %s215, %s216
      %p228 = scmp.eq.s32.totalorder %s28, 1
      %p229 = por %p227, %p228
      %p231 = scmp.ne.s32.totalorder %s216, %s230
      %p232 = scmp.eq.s32.totalorder %s28, 0
      %p233 = por %p231, %p232
      %s234 = ssub.s32 %s22, %s29
      %p235 = scmp.eq.s32.totalorder %s234, 0
      %s237 = sadd.s32 %s236, 1
      %s238 = scalar_select %p235, %s236, %s237
      %p241 = pneg %p235
      %p242 = scmp.eq.s32.totalorder %s22, 1
      %p243 = por %p241, %p242
      %p244 = scmp.ne.s32.totalorder %s236, %s239
      %p245 = scmp.eq.s32.totalorder %s22, 0
      %p246 = por %p244, %p245
      %p247 = scmp.ne.s32.totalorder %s236, %s239
      %p248 = scmp.eq.s32.totalorder %s27, 1
      %p249 = por %p247, %p248
      %p250 = scmp.ne.s32.totalorder %s239, %s240
      %p251 = scmp.eq.s32.totalorder %s27, 0
      %p252 = por %p250, %p251
      %p253 = scmp.ne.s32.totalorder %s239, %s240
      %p254 = scmp.eq.s32.totalorder %s28, 1
      %p255 = por %p253, %p254
      %p257 = scmp.ne.s32.totalorder %s240, %s256
      %p258 = scmp.eq.s32.totalorder %s28, 0
      %p259 = por %p257, %p258
      %s260 = ssub.s32 %s22, %s29
      %p261 = scmp.eq.s32.totalorder %s260, 0
      %s263 = sadd.s32 %s262, 1
      %s264 = scalar_select %p261, %s262, %s263
      %p267 = pneg %p261
      %p268 = scmp.eq.s32.totalorder %s22, 1
      %p269 = por %p267, %p268
      %p270 = scmp.ne.s32.totalorder %s262, %s265
      %p271 = scmp.eq.s32.totalorder %s22, 0
      %p272 = por %p270, %p271
      %p273 = scmp.ne.s32.totalorder %s262, %s265
      %p274 = scmp.eq.s32.totalorder %s27, 1
      %p275 = por %p273, %p274
      %p276 = scmp.ne.s32.totalorder %s265, %s266
      %p277 = scmp.eq.s32.totalorder %s27, 0
      %p278 = por %p276, %p277
      %p279 = scmp.ne.s32.totalorder %s265, %s266
      %p280 = scmp.eq.s32.totalorder %s28, 1
      %p281 = por %p279, %p280
      %p283 = scmp.ne.s32.totalorder %s266, %s282
      %p284 = scmp.eq.s32.totalorder %s28, 0
      %p285 = por %p283, %p284
      %p286 = scmp.le.s32.totalorder 1, %s22
      %p287 = scmp.lt.s32.totalorder %s22, 3
      %p288 = pnand %p286, %p287
      %p289 = pneg %p288
      // Predicated region
      $region9: #{_lambda_.3} parent=5 // pred_check
        _
      $region10: #{_lambda_.3} parent=5 // pred_check_branch
        %291 = sbr.rel (%p288) target = $region12
      $region11: #{_lambda_.3} parent=5 // pred_region
        %s292 = ssub.s32 %s22, 1
        // Predicated region
        $region13: #{_lambda_.3} parent=11 // pred_check
          %p293 = pneg %p121
        $region14: #{_lambda_.3} parent=11 // pred_check_branch
          %295 = sbr.rel (%p293) target = $region16
        $region15: #{_lambda_.3} parent=11 // pred_region
          %297 = vsyncadd [#allocation3], 0
          %s298 = sshll.u32 %s3, 4
          %s299 = int_to_ptr.hbm [resolvable:$true] %s298
          %s300 = sshll.u32 [#allocation2], 4
          %s301 = int_to_ptr.vmem [resolvable:$true] %s300
          %306 = dma.hbm_to_vmem [thread:$0]  %s299, 1024, %s301, [#allocation3], 64, 64, 4
        $region16: #{_lambda_.3} parent=11 // pred_fallthru
          _
        // Predicated region
        $region17: #{_lambda_.3} parent=11 // pred_check
          %p307 = pneg %p142
        $region18: #{_lambda_.3} parent=11 // pred_check_branch
          %309 = sbr.rel (%p307) target = $region20
        $region19: #{_lambda_.3} parent=11 // pred_region
          _
        $region20: #{_lambda_.3} parent=11 // pred_fallthru
          _
        // Predicated region
        $region21: #{_lambda_.3} parent=11 // pred_check
          %p310 = pneg %p163
        $region22: #{_lambda_.3} parent=11 // pred_check_branch
          %312 = sbr.rel (%p310) target = $region24
        $region23: #{_lambda_.3} parent=11 // pred_region
          %314 = vsyncadd [#allocation6], 0
          %s315 = sshll.u32 %s5, 4
          %s316 = int_to_ptr.hbm [resolvable:$true] %s315
          %s317 = sshll.u32 [#allocation5], 4
          %s318 = int_to_ptr.vmem [resolvable:$true] %s317
          %323 = dma.hbm_to_vmem [thread:$0]  %s316, 2048, %s318, [#allocation6], 128, 128, 8
        $region24: #{_lambda_.3} parent=11 // pred_fallthru
          _
        // Predicated region
        $region25: #{_lambda_.3} parent=11 // pred_check
          %p324 = pneg %p184
        $region26: #{_lambda_.3} parent=11 // pred_check_branch
          %326 = sbr.rel (%p324) target = $region28
        $region27: #{_lambda_.3} parent=11 // pred_region
          _
        $region28: #{_lambda_.3} parent=11 // pred_fallthru
          _
        // Predicated region
        $region29: #{_lambda_.3} parent=11 // pred_check
          %p327 = pneg %p205
        $region30: #{_lambda_.3} parent=11 // pred_check_branch
          %329 = sbr.rel (%p327) target = $region32
        $region31: #{_lambda_.3} parent=11 // pred_region
          %331 = vsyncadd [#allocation6], 0
          %s332 = sshll.u32 %s7, 4
          %s333 = int_to_ptr.hbm [resolvable:$true] %s332
          %s334 = sshll.u32 [#allocation7], 4
          %s335 = int_to_ptr.vmem [resolvable:$true] %s334
          %340 = dma.hbm_to_vmem [thread:$0]  %s333, 1024, %s335, [#allocation6], 64, 64, 4
        $region32: #{_lambda_.3} parent=11 // pred_fallthru
          _
        // Predicated region
        $region33: #{_lambda_.3} parent=11 // pred_check
          %p341 = pneg %p226
        $region34: #{_lambda_.3} parent=11 // pred_check_branch
          %343 = sbr.rel (%p341) target = $region36
        $region35: #{_lambda_.3} parent=11 // pred_region
          _
        $region36: #{_lambda_.3} parent=11 // pred_fallthru
          _
      $region12: #{_lambda_.3} parent=5 // pred_fallthru
        _
      %p344 = scmp.lt.s32.totalorder %s22, 2
      // Predicated region
      $region37: #{_lambda_.3} parent=5 // pred_check
        %p345 = pneg %p344
      $region38: #{_lambda_.3} parent=5 // pred_check_branch
        %347 = sbr.rel (%p345) target = $region40
      $region39: #{_lambda_.3} parent=5 // pred_region
        // Predicated region
        $region41: #{_lambda_.3} parent=39 // pred_check
          %p348 = pneg %p42
        $region42: #{_lambda_.3} parent=39 // pred_check_branch
          %350 = sbr.rel (%p348) target = $region44
        $region43: #{_lambda_.3} parent=39 // pred_region
          %p351 = scmp.lt.s32.totalorder %s22, 1
          %s352 = scalar_select %p351, %s22, 1
          %s353 = smul.addr %s352, 4
          %s354 = scalar_lea.vmem %s0, %s353
        $region44: #{_lambda_.3} parent=39 // pred_fallthru
          _
        // Predicated region
        $region45: #{_lambda_.3} parent=39 // pred_check
          %p355 = pneg %p68
        $region46: #{_lambda_.3} parent=39 // pred_check_branch
          %357 = sbr.rel (%p355) target = $region48
        $region47: #{_lambda_.3} parent=39 // pred_region
          %p358 = scmp.lt.s32.totalorder %s22, 1
          %s359 = scalar_select %p358, %s22, 1
          %s360 = smul.addr %s359, 4
          %s361 = scalar_lea.vmem %s1, %s360
        $region48: #{_lambda_.3} parent=39 // pred_fallthru
          _
        // Predicated region
        $region49: #{_lambda_.3} parent=39 // pred_check
          %p362 = pneg %p94
        $region50: #{_lambda_.3} parent=39 // pred_check_branch
          %364 = sbr.rel (%p362) target = $region52
        $region51: #{_lambda_.3} parent=39 // pred_region
          %p365 = scmp.lt.s32.totalorder %s22, 1
          %s366 = scalar_select %p365, %s22, 1
          %s367 = smul.addr %s366, 2
          %s368 = scalar_lea.vmem %s2, %s367
        $region52: #{_lambda_.3} parent=39 // pred_fallthru
          _
      $region40: #{_lambda_.3} parent=5 // pred_fallthru
        _
      %p369 = scmp.le.s32.totalorder 1, %s22
      %p370 = scmp.lt.s32.totalorder %s22, 3
      %p371 = pnand %p369, %p370
      %p372 = pneg %p371
      // Predicated region
      $region53: #{_lambda_.3} parent=5 // pred_check
        _
      $region54: #{_lambda_.3} parent=5 // pred_check_branch
        %374 = sbr.rel (%p371) target = $region56
      $region55: #{_lambda_.3} parent=5 // pred_region
        %s375 = ssub.s32 %s22, 1
        // Predicated region
        $region57: #{_lambda_.3} parent=55 // pred_check
          %p376 = pneg %p121
        $region58: #{_lambda_.3} parent=55 // pred_check_branch
          %378 = sbr.rel (%p376) target = $region60
        $region59: #{_lambda_.3} parent=55 // pred_region
          %380 = dma.done [#allocation3], 1024
        $region60: #{_lambda_.3} parent=55 // pred_fallthru
          _
        // Predicated region
        $region61: #{_lambda_.3} parent=55 // pred_check
          %p381 = pneg %p163
        $region62: #{_lambda_.3} parent=55 // pred_check_branch
          %383 = sbr.rel (%p381) target = $region64
        $region63: #{_lambda_.3} parent=55 // pred_region
          %385 = dma.done [#allocation6], 2048
        $region64: #{_lambda_.3} parent=55 // pred_fallthru
          _
        // Predicated region
        $region65: #{_lambda_.3} parent=55 // pred_check
          %p386 = pneg %p205
        $region66: #{_lambda_.3} parent=55 // pred_check_branch
          %388 = sbr.rel (%p386) target = $region68
        $region67: #{_lambda_.3} parent=55 // pred_region
          %390 = dma.done [#allocation6], 1024
        $region68: #{_lambda_.3} parent=55 // pred_fallthru
          _
        %p391 = scmp.lt.s32.totalorder %s27, 1
        %s392 = scalar_select %p391, %s27, 1
        %s393 = smul.addr %s392, 4
        %s394 = scalar_lea.vmem %s0, %s393
        %p395 = pneg %p48
        %p396 = pneg %p45
        %p397 = scmp.lt.s32.totalorder %s27, 1
        %s398 = scalar_select %p397, %s27, 1
        %s399 = smul.addr %s398, 4
        %s400 = scalar_lea.vmem %s1, %s399
        %p401 = pneg %p74
        %p402 = pneg %p71
        %p403 = scmp.lt.s32.totalorder %s27, 1
        %s404 = scalar_select %p403, %s27, 1
        %s405 = smul.addr %s404, 2
        %s406 = scalar_lea.vmem %s2, %s405
        %p407 = pneg %p100
        %p408 = pneg %p97
        %p409 = pneg %p121
        %p410 = pneg %p118
        %p411 = pneg %p142
        %p412 = pneg %p139
        %p413 = pneg %p163
        %p414 = pneg %p160
        %p415 = pneg %p184
        %p416 = pneg %p181
        %p417 = pneg %p205
        %p418 = pneg %p202
        %p419 = pneg %p226
        %p420 = pneg %p223
        %p421 = pneg %p252
        %p422 = pneg %p249
        %p423 = scmp.lt.s32.totalorder %s27, 1
        %s424 = scalar_select %p423, %s27, 1
        %s425 = smul.addr %s424, 4
        %s426 = scalar_lea.vmem %s9, %s425
        %p427 = pneg %p278
        %p428 = pneg %p275
        %s429 = sand.u32 %s265, 1
        %s430 = scalar_lea.sflag [#allocation4], %s429
        %s431 = sand.u32 %s265, 1
        %s432 = smul.addr %s431, 16
        %s433 = scalar_lea.vmem [#allocation8], %s432
        %p434 = scmp.lt.s32.totalorder %s27, 1
        %s435 = scalar_select %p434, %s27, 1
        %s436 = smul.addr %s435, 4
        %s437 = scalar_lea.vmem %s0, %s436
        %p438 = scmp.lt.s32.totalorder %s27, 1
        %s439 = scalar_select %p438, %s27, 1
        %s440 = smul.addr %s439, 4
        %s441 = scalar_lea.vmem %s1, %s440
        %p442 = scmp.lt.s32.totalorder %s27, 1
        %s443 = scalar_select %p442, %s27, 1
        %s444 = smul.addr %s443, 2
        %s445 = scalar_lea.vmem %s2, %s444
        %p446 = scmp.lt.s32.totalorder %s27, 1
        %s447 = scalar_select %p446, %s27, 1
        %s448 = smul.addr %s447, 4
        %s449 = scalar_lea.vmem %s9, %s448
        %v451 = vld [vmem:[%s437] sm:$0xf]
        %v452 = vld [vmem:[#allocation2] sm:$0xf]
        %v453 = vld [vmem:[#allocation2 + $0x4] sm:$0xf]
        %v454 = vld [vmem:[#allocation2 + $0x8] sm:$0xf]
        %v455 = vld [vmem:[#allocation2 + $0xc] sm:$0xf]
        %v456 = vld [vmem:[#allocation2 + $0x10] sm:$0xf]
        %v457 = vld [vmem:[#allocation2 + $0x14] sm:$0xf]
        %v458 = vld [vmem:[#allocation2 + $0x18] sm:$0xf]
        %v459 = vld [vmem:[#allocation2 + $0x1c] sm:$0xf]
        %v460 = vld [vmem:[#allocation2 + $0x20] sm:$0xf]
        %v461 = vld [vmem:[#allocation2 + $0x24] sm:$0xf]
        %v462 = vld [vmem:[#allocation2 + $0x28] sm:$0xf]
        %v463 = vld [vmem:[#allocation2 + $0x2c] sm:$0xf]
        %v464 = vld [vmem:[#allocation2 + $0x30] sm:$0xf]
        %v465 = vld [vmem:[#allocation2 + $0x34] sm:$0xf]
        %v466 = vld [vmem:[#allocation2 + $0x38] sm:$0xf]
        %v467 = vld [vmem:[#allocation2 + $0x3c] sm:$0xf]
        %v468 = vld [vmem:[%s4] sm:$0x1]
        %v470 = vperm.slane %v468, 0
        %v488 = vunpack.c.l.b16 %v452
        %v489 = vunpack.c.l.b16 %v453
        %v490 = vunpack.c.l.b16 %v454
        %v491 = vunpack.c.l.b16 %v455
        %v492 = vunpack.c.l.b16 %v456
        %v493 = vunpack.c.l.b16 %v457
        %v494 = vunpack.c.l.b16 %v458
        %v495 = vunpack.c.l.b16 %v459
        %v496 = vunpack.c.l.b16 %v460
        %v497 = vunpack.c.l.b16 %v461
        %v498 = vunpack.c.l.b16 %v462
        %v499 = vunpack.c.l.b16 %v463
        %v500 = vunpack.c.l.b16 %v464
        %v501 = vunpack.c.l.b16 %v465
        %v502 = vunpack.c.l.b16 %v466
        %v503 = vunpack.c.l.b16 %v467
        %v504 = vpack.c.b16 %v489, %v488
        %v505 = vpack.c.b16 %v491, %v490
        %v506 = vpack.c.b16 %v493, %v492
        %v507 = vpack.c.b16 %v495, %v494
        %v508 = vpack.c.b16 %v497, %v496
        %v509 = vpack.c.b16 %v499, %v498
        %v510 = vpack.c.b16 %v501, %v500
        %v511 = vpack.c.b16 %v503, %v502
        %520 = vmatpush.bf16.msra.mxu0 %v511
        %521 = vmatpush.bf16.msra.mxu0 %v510
        %522 = vmatpush.bf16.msra.mxu0 %v509
        %523 = vmatpush.bf16.msra.mxu0 %v508
        %524 = vmatpush.bf16.msra.mxu0 %v507
        %525 = vmatpush.bf16.msra.mxu0 %v506
        %526 = vmatpush.bf16.msra.mxu0 %v505
        %527 = vmatpush.bf16.msra.mxu0 %v504
        %528 = vmatmul.bf16.gmra.mxu0 %v451
        %v529 = vpop.f32.mrf.mxu0
        %v530 = vadd.f32 %v470, %v529
        %v531 = vpop.f32.mrf.mxu0
        %532 = vdwg.mxu0
        %v533 = vld [vmem:[%s441] sm:$0xf]
        %v534 = vld [vmem:[#allocation5] sm:$0xff]
        %v535 = vld [vmem:[#allocation5 + $0x8] sm:$0xff]
        %v536 = vld [vmem:[#allocation5 + $0x10] sm:$0xff]
        %v537 = vld [vmem:[#allocation5 + $0x18] sm:$0xff]
        %v538 = vld [vmem:[#allocation5 + $0x20] sm:$0xff]
        %v539 = vld [vmem:[#allocation5 + $0x28] sm:$0xff]
        %v540 = vld [vmem:[#allocation5 + $0x30] sm:$0xff]
        %v541 = vld [vmem:[#allocation5 + $0x38] sm:$0xff]
        %v542 = vld [vmem:[#allocation5 + $0x40] sm:$0xff]
        %v543 = vld [vmem:[#allocation5 + $0x48] sm:$0xff]
        %v544 = vld [vmem:[#allocation5 + $0x50] sm:$0xff]
        %v545 = vld [vmem:[#allocation5 + $0x58] sm:$0xff]
        %v546 = vld [vmem:[#allocation5 + $0x60] sm:$0xff]
        %v547 = vld [vmem:[#allocation5 + $0x68] sm:$0xff]
        %v548 = vld [vmem:[#allocation5 + $0x70] sm:$0xff]
        %v549 = vld [vmem:[#allocation5 + $0x78] sm:$0xff]
        %v550 = vld [vmem:[%s6] sm:$0x3]
        %v552 = vperm.slane %v550, 0
        %v553 = vperm.slane %v550, 1
        %v572 = vunpack.c.l.b16 %v534
        %v573 = vunpack.c.h.b16 %v534
        %v574 = vunpack.c.l.b16 %v535
        %v575 = vunpack.c.h.b16 %v535
        %v576 = vunpack.c.l.b16 %v536
        %v577 = vunpack.c.h.b16 %v536
        %v578 = vunpack.c.l.b16 %v537
        %v579 = vunpack.c.h.b16 %v537
        %v580 = vunpack.c.l.b16 %v538
        %v581 = vunpack.c.h.b16 %v538
        %v582 = vunpack.c.l.b16 %v539
        %v583 = vunpack.c.h.b16 %v539
        %v584 = vunpack.c.l.b16 %v540
        %v585 = vunpack.c.h.b16 %v540
        %v586 = vunpack.c.l.b16 %v541
        %v587 = vunpack.c.h.b16 %v541
        %v588 = vunpack.c.l.b16 %v542
        %v589 = vunpack.c.h.b16 %v542
        %v590 = vunpack.c.l.b16 %v543
        %v591 = vunpack.c.h.b16 %v543
        %v592 = vunpack.c.l.b16 %v544
        %v593 = vunpack.c.h.b16 %v544
        %v594 = vunpack.c.l.b16 %v545
        %v595 = vunpack.c.h.b16 %v545
        %v596 = vunpack.c.l.b16 %v546
        %v597 = vunpack.c.h.b16 %v546
        %v598 = vunpack.c.l.b16 %v547
        %v599 = vunpack.c.h.b16 %v547
        %v600 = vunpack.c.l.b16 %v548
        %v601 = vunpack.c.h.b16 %v548
        %v602 = vunpack.c.l.b16 %v549
        %v603 = vunpack.c.h.b16 %v549
        %v604 = vpack.c.b16 %v574, %v572
        %v605 = vpack.c.b16 %v575, %v573
        %v606 = vpack.c.b16 %v578, %v576
        %v607 = vpack.c.b16 %v579, %v577
        %v608 = vpack.c.b16 %v582, %v580
        %v609 = vpack.c.b16 %v583, %v581
        %v610 = vpack.c.b16 %v586, %v584
        %v611 = vpack.c.b16 %v587, %v585
        %v612 = vpack.c.b16 %v590, %v588
        %v613 = vpack.c.b16 %v591, %v589
        %v614 = vpack.c.b16 %v594, %v592
        %v615 = vpack.c.b16 %v595, %v593
        %v616 = vpack.c.b16 %v598, %v596
        %v617 = vpack.c.b16 %v599, %v597
        %v618 = vpack.c.b16 %v602, %v600
        %v619 = vpack.c.b16 %v603, %v601
        %636 = vmatpush.bf16.msra.mxu0 %v618
        %637 = vmatpush.bf16.msra.mxu0 %v616
        %638 = vmatpush.bf16.msra.mxu0 %v614
        %639 = vmatpush.bf16.msra.mxu0 %v612
        %640 = vmatpush.bf16.msra.mxu0 %v610
        %641 = vmatpush.bf16.msra.mxu0 %v608
        %642 = vmatpush.bf16.msra.mxu0 %v606
        %643 = vmatpush.bf16.msra.mxu0 %v604
        %644 = vmatmul.bf16.gmra.mxu0 %v533
        %v645 = vpop.f32.mrf.mxu0
        %v646 = vadd.f32 %v552, %v645
        %v647 = vpop.f32.mrf.mxu0
        %648 = vdwg.mxu0
        %649 = vmatpush.bf16.msra.mxu0 %v619
        %650 = vmatpush.bf16.msra.mxu0 %v617
        %651 = vmatpush.bf16.msra.mxu0 %v615
        %652 = vmatpush.bf16.msra.mxu0 %v613
        %653 = vmatpush.bf16.msra.mxu0 %v611
        %654 = vmatpush.bf16.msra.mxu0 %v609
        %655 = vmatpush.bf16.msra.mxu0 %v607
        %656 = vmatpush.bf16.msra.mxu0 %v605
        %657 = vmatmul.bf16.gmra.mxu0 %v533
        %v658 = vpop.f32.mrf.mxu0
        %v659 = vadd.f32 %v553, %v658
        %v660 = vpop.f32.mrf.mxu0
        %661 = vdwg.mxu0
        %v662 = vmul.f32 %v530, 0.125
        %v663 = vpack.c.bf16 %v662, %v662
        %v664 = vpack.c.bf16 %v659, %v646
        %v665 = vld [vmem:[%s445] sm:$0x3]
        %v666 = vunpack.c.0.s8 %v665
        %v667 = vcvt.s32.f32 %v666
        %vm668 = vcmp.gt.f32.partialorder %v667, 0.5
        %vm669 = vcmask 523264
        %v671 = vsel %vm669, %v663, 0
        %v674 = vsel %vm669, %v664, 0
        %676 = vmatpush.bf16.xpose.msra.mxu0 0
        %677 = vmatpush.bf16.xpose.msra.mxu0 0
        %678 = vmatpush.bf16.xpose.msra.mxu0 0
        %679 = vmatpush.bf16.xpose.msra.mxu0 0
        %680 = vmatpush.bf16.xpose.msra.mxu0 0
        %681 = vmatpush.bf16.xpose.msra.mxu0 0
        %682 = vmatpush.bf16.xpose.msra.mxu0 0
        %683 = vmatpush.bf16.xpose.msra.mxu0 %v674
        %684 = vmatmul.bf16.gmra.mxu0 %v671
        %v685 = vpop.f32.mrf.mxu0
        %v686 = vadd.f32 0.0, %v685
        %v687 = vpop.f32.mrf.mxu0
        %688 = vdwg.mxu0
        %v689 = vsel %vm668, -1e+09, %v686
        %vm690 = vcmask 64512
        %v691 = vsel %vm690, %v689, -inf
        %692 = vmax.xlane.f32.xlu0 %v691
        %v693 = vpop.xlane.xlu0 %692
        %v694 = vsub.f32 %v689, %v693
        %v695 = vmul.f32 %v694, 1.442695
        %v696 = vpow.pop %v695
        %v697 = vsel %vm690, %v696, 0.0
        %698 = vadd.xlane.f32.xlu0 %v697
        %v699 = vpop.xlane.xlu0 %698
        %v700 = vrcp.pop %v699
        %v701 = vmul.f32 %v696, %v700
        %702 = vst.msk [vmem:[%s433] sm:$0xff] %vm690, %v701
        %v703 = vpack.c.bf16 %v701, %v701
        %v705 = vunpack.c.h.b16 %v664
        %v706 = vpack.c.b16 %v705, %v705
        %v708 = vsel %vm690, %v703, 0
        %vm710 = vcmask 1043456
        %v712 = vsel %vm710, %v706, 0
        %714 = vmatpush.bf16.msra.mxu0 0
        %715 = vmatpush.bf16.msra.mxu0 0
        %716 = vmatpush.bf16.msra.mxu0 0
        %717 = vmatpush.bf16.msra.mxu0 0
        %718 = vmatpush.bf16.msra.mxu0 0
        %719 = vmatpush.bf16.msra.mxu0 0
        %720 = vmatpush.bf16.msra.mxu0 0
        %721 = vmatpush.bf16.msra.mxu0 %v712
        %722 = vmatmul.bf16.gmra.mxu0 %v708
        %v723 = vpop.f32.mrf.mxu0
        %v724 = vadd.f32 0.0, %v723
        %v725 = vpop.f32.mrf.mxu0
        %726 = vdwg.mxu0
        %v728 = vunpack.c.l.b16 %v663
        %v729 = vpack.c.b16 %v728, %v728
        %730 = vrot.lane.b32.xlu0 %v729, 64
        %v731 = vpop.permute.xlu0 %730
        %v732 = vunpack.c.l.b16 %v664
        %v733 = vpack.c.b16 %v732, %v732
        %734 = vrot.lane.b32.xlu0 %v733, 64
        %v735 = vpop.permute.xlu0 %734
        %v737 = vsel %vm669, %v731, 0
        %v740 = vsel %vm669, %v735, 0
        %742 = vmatpush.bf16.xpose.msra.mxu0 0
        %743 = vmatpush.bf16.xpose.msra.mxu0 0
        %744 = vmatpush.bf16.xpose.msra.mxu0 0
        %745 = vmatpush.bf16.xpose.msra.mxu0 0
        %746 = vmatpush.bf16.xpose.msra.mxu0 0
        %747 = vmatpush.bf16.xpose.msra.mxu0 0
        %748 = vmatpush.bf16.xpose.msra.mxu0 0
        %749 = vmatpush.bf16.xpose.msra.mxu0 %v740
        %750 = vmatmul.bf16.gmra.mxu0 %v737
        %v751 = vpop.f32.mrf.mxu0
        %v752 = vadd.f32 0.0, %v751
        %v753 = vpop.f32.mrf.mxu0
        %754 = vdwg.mxu0
        %v755 = vsel %vm668, -1e+09, %v752
        %v756 = vsel %vm690, %v755, -inf
        %757 = vmax.xlane.f32.xlu0 %v756
        %v758 = vpop.xlane.xlu0 %757
        %v759 = vsub.f32 %v755, %v758
        %v760 = vmul.f32 %v759, 1.442695
        %v761 = vpow.pop %v760
        %v762 = vsel %vm690, %v761, 0.0
        %763 = vadd.xlane.f32.xlu0 %v762
        %v764 = vpop.xlane.xlu0 %763
        %v765 = vrcp.pop %v764
        %v766 = vmul.f32 %v761, %v765
        %s767 = scalar_lea.vmem %s433, 8 [#allocation8]
        %768 = vst.msk [vmem:[%s767] sm:$0xff] %vm690, %v766
        %v769 = vpack.c.bf16 %v766, %v766
        %770 = vrot.lane.b32.xlu0 %v706, 64
        %v771 = vpop.permute.xlu0 %770
        %v773 = vsel %vm690, %v769, 0
        %v776 = vsel %vm710, %v771, 0
        %778 = vmatpush.bf16.msra.mxu0 0
        %779 = vmatpush.bf16.msra.mxu0 0
        %780 = vmatpush.bf16.msra.mxu0 0
        %781 = vmatpush.bf16.msra.mxu0 0
        %782 = vmatpush.bf16.msra.mxu0 0
        %783 = vmatpush.bf16.msra.mxu0 0
        %784 = vmatpush.bf16.msra.mxu0 0
        %785 = vmatpush.bf16.msra.mxu0 %v776
        %786 = vmatmul.bf16.gmra.mxu0 %v773
        %v787 = vpop.f32.mrf.mxu0
        %v788 = vadd.f32 0.0, %v787
        %v789 = vpop.f32.mrf.mxu0
        %790 = vdwg.mxu0
        %792 = vrot.lane.b32.xlu0 %v788, 64
        %v793 = vpop.permute.xlu0 %792
        %v795 = vsel %vm669, %v724, %v793
        %v796 = vpack.c.bf16 %v795, %v795
        %v797 = vld [vmem:[#allocation7] sm:$0xf]
        %v798 = vld [vmem:[#allocation7 + $0x4] sm:$0xf]
        %v799 = vld [vmem:[#allocation7 + $0x8] sm:$0xf]
        %v800 = vld [vmem:[#allocation7 + $0xc] sm:$0xf]
        %v801 = vld [vmem:[#allocation7 + $0x10] sm:$0xf]
        %v802 = vld [vmem:[#allocation7 + $0x14] sm:$0xf]
        %v803 = vld [vmem:[#allocation7 + $0x18] sm:$0xf]
        %v804 = vld [vmem:[#allocation7 + $0x1c] sm:$0xf]
        %v805 = vld [vmem:[#allocation7 + $0x20] sm:$0xf]
        %v806 = vld [vmem:[#allocation7 + $0x24] sm:$0xf]
        %v807 = vld [vmem:[#allocation7 + $0x28] sm:$0xf]
        %v808 = vld [vmem:[#allocation7 + $0x2c] sm:$0xf]
        %v809 = vld [vmem:[#allocation7 + $0x30] sm:$0xf]
        %v810 = vld [vmem:[#allocation7 + $0x34] sm:$0xf]
        %v811 = vld [vmem:[#allocation7 + $0x38] sm:$0xf]
        %v812 = vld [vmem:[#allocation7 + $0x3c] sm:$0xf]
        %v813 = vld [vmem:[%s8] sm:$0x1]
        %v815 = vperm.slane %v813, 0
        %v833 = vunpack.c.l.b16 %v797
        %v834 = vunpack.c.l.b16 %v798
        %v835 = vunpack.c.l.b16 %v799
        %v836 = vunpack.c.l.b16 %v800
        %v837 = vunpack.c.l.b16 %v801
        %v838 = vunpack.c.l.b16 %v802
        %v839 = vunpack.c.l.b16 %v803
        %v840 = vunpack.c.l.b16 %v804
        %v841 = vunpack.c.l.b16 %v805
        %v842 = vunpack.c.l.b16 %v806
        %v843 = vunpack.c.l.b16 %v807
        %v844 = vunpack.c.l.b16 %v808
        %v845 = vunpack.c.l.b16 %v809
        %v846 = vunpack.c.l.b16 %v810
        %v847 = vunpack.c.l.b16 %v811
        %v848 = vunpack.c.l.b16 %v812
        %v849 = vpack.c.b16 %v834, %v833
        %v850 = vpack.c.b16 %v836, %v835
        %v851 = vpack.c.b16 %v838, %v837
        %v852 = vpack.c.b16 %v840, %v839
        %v853 = vpack.c.b16 %v842, %v841
        %v854 = vpack.c.b16 %v844, %v843
        %v855 = vpack.c.b16 %v846, %v845
        %v856 = vpack.c.b16 %v848, %v847
        %865 = vmatpush.bf16.msra.mxu0 %v856
        %866 = vmatpush.bf16.msra.mxu0 %v855
        %867 = vmatpush.bf16.msra.mxu0 %v854
        %868 = vmatpush.bf16.msra.mxu0 %v853
        %869 = vmatpush.bf16.msra.mxu0 %v852
        %870 = vmatpush.bf16.msra.mxu0 %v851
        %871 = vmatpush.bf16.msra.mxu0 %v850
        %872 = vmatpush.bf16.msra.mxu0 %v849
        %873 = vmatmul.bf16.gmra.mxu0 %v796
        %v874 = vpop.f32.mrf.mxu0
        %v875 = vadd.f32 %v815, %v874
        %v876 = vpop.f32.mrf.mxu0
        %877 = vdwg.mxu0
        %v878 = vunpack.c.l.bf16 %v451
        %v879 = vadd.f32 %v875, %v878
        %880 = vadd.xlane.f32.xlu0 %v879
        %v881 = vpop.xlane.xlu0 %880
        %v882 = vrcp.pop 128.0
        %v883 = vmul.f32 128.0, %v882
        %v884 = vsub.f32 1.0, %v883
        %v885 = vmul.f32 %v882, %v884
        %v886 = vadd.f32 %v882, %v885
        %vm887 = vweird.f32 %v882
        %v888 = vsel %vm887, %v882, %v886
        %v889 = vmul.f32 %v881, %v888
        %v890 = vsub.f32 %v879, %v889
        %v891 = vmul.f32 %v890, %v890
        %892 = vadd.xlane.f32.xlu0 %v891
        %v893 = vpop.xlane.xlu0 %892
        %v894 = vmul.f32 %v893, %v888
        %v895 = vadd.f32 %v894, 1e-05
        %v896 = vrsqrt.pop %v895
        %v897 = vmul.f32 %v896, %v895
        %v898 = vmul.f32 %v897, %v896
        %v899 = vmul.f32 0.5, %v898
        %v900 = vsub.f32 1.5, %v899
        %v901 = vmul.f32 %v896, %v900
        %vm902 = vweird.f32 %v895
        %vm903 = vweird.f32 %v896
        %vm904 = vmor %vm902, %vm903
        %v905 = vsel %vm904, %v896, %v901
        %v906 = vmul.f32 %v890, %v905
        %v907 = vpack.c.bf16 %v906, %v906
        %908 = vst [vmem:[%s449] sm:$0xf] %v907
        %p909 = scmp.lt.s32.totalorder %s27, 1
        %s910 = scalar_select %p909, %s27, 1
        %s911 = smul.addr %s910, 4
        %s912 = scalar_lea.vmem %s9, %s911
        %s913 = sand.u32 %s265, 1
        %s914 = scalar_lea.sflag [#allocation4], %s913
        %s915 = sand.u32 %s265, 1
        %s916 = smul.addr %s915, 16
        %s917 = scalar_lea.vmem [#allocation8], %s916
        // Predicated region
        $region69: #{_lambda_.3} parent=55 // pred_check
          %p918 = pneg %p249
        $region70: #{_lambda_.3} parent=55 // pred_check_branch
          %920 = sbr.rel (%p918) target = $region72
        $region71: #{_lambda_.3} parent=55 // pred_region
          _
        $region72: #{_lambda_.3} parent=55 // pred_fallthru
          _
        // Predicated region
        $region73: #{_lambda_.3} parent=55 // pred_check
          %p921 = pneg %p275
        $region74: #{_lambda_.3} parent=55 // pred_check_branch
          %923 = sbr.rel (%p921) target = $region76
        $region75: #{_lambda_.3} parent=55 // pred_region
          %925 = vsyncadd %s914, 0
          %s926 = smul.addr %s27, 2
          %s927 = smul.addr %s926, 8
          %s928 = scalar_lea.hbm %s10, %s927
          %s929 = sshll.u32 %s917, 4
          %s930 = int_to_ptr.vmem [resolvable:$true] %s929
          %s931 = sshll.u32 %s928, 4
          %s932 = int_to_ptr.hbm [resolvable:$true] %s931
          %937 = dma.vmem_to_hbm [thread:$0]  %s930, 256, %s932, %s914, 128, 128, 8
        $region76: #{_lambda_.3} parent=55 // pred_fallthru
          _
      $region56: #{_lambda_.3} parent=5 // pred_fallthru
        _
      %p938 = scmp.le.s32.totalorder 2, %s22
      // Predicated region
      $region77: #{_lambda_.3} parent=5 // pred_check
        %p939 = pneg %p938
      $region78: #{_lambda_.3} parent=5 // pred_check_branch
        %941 = sbr.rel (%p939) target = $region80
      $region79: #{_lambda_.3} parent=5 // pred_region
        %s942 = ssub.s32 %s22, 2
        // Predicated region
        $region81: #{_lambda_.3} parent=79 // pred_check
          %p943 = pneg %p255
        $region82: #{_lambda_.3} parent=79 // pred_check_branch
          %945 = sbr.rel (%p943) target = $region84
        $region83: #{_lambda_.3} parent=79 // pred_region
          %p946 = scmp.lt.s32.totalorder %s28, 1
          %s947 = scalar_select %p946, %s28, 1
          %s948 = smul.addr %s947, 4
          %s949 = scalar_lea.vmem %s9, %s948
        $region84: #{_lambda_.3} parent=79 // pred_fallthru
          _
        // Predicated region
        $region85: #{_lambda_.3} parent=79 // pred_check
          %p950 = pneg %p281
        $region86: #{_lambda_.3} parent=79 // pred_check_branch
          %952 = sbr.rel (%p950) target = $region88
        $region87: #{_lambda_.3} parent=79 // pred_region
          %s953 = sand.u32 %s266, 1
          %s954 = scalar_lea.sflag [#allocation4], %s953
          %s955 = sand.u32 %s266, 1
          %s956 = smul.addr %s955, 16
          %s957 = scalar_lea.vmem [#allocation8], %s956
          %959 = dma.done %s954, 256
        $region88: #{_lambda_.3} parent=79 // pred_fallthru
          _
      $region80: #{_lambda_.3} parent=5 // pred_fallthru
        _
    $region6: #{_lambda_.3} parent=1 // loop_footer
      %s26 = sadd.s32 1, %s22
    $region7: #{_lambda_.3} parent=1 // loop_footer_branch
      %21 = sbr.rel target = $region3
    $region8: #{_lambda_.3} parent=1 // loop_exit
      _
    %960 = vsyncpa [#allocation3], 1
    %s961 = scalar_lea.sflag [#allocation3], 1
    %962 = vsyncpa %s961, 1
    %963 = vsyncpa [#allocation6], 1
    %964 = vsyncpa [#allocation4], 1
    %s965 = scalar_lea.sflag [#allocation4], 1
    %966 = vsyncpa %s965, 1

// kernel: _lambda_.5
$region0: #{_lambda_.5}
  #allocation0 [shape = 'u32[]', space=smem, size = 0x4, offset = 0x4, fixed_abs, tag = 'smem constant byte address 0x4 - core index']
  #allocation1 [shape = 'u32[72,128]{1,0:T(1,128)}', space=vmem, size = 0x9000, scoped, tag = 'internal scratch']
  %s0 = inlined_call_operand.vmem [shape: bf16[16,128], index: 0, kind: input, shape index: {}]
  %s1 = inlined_call_operand.hbm [shape: bf16[128,2048], index: 1, kind: input, shape index: {}]
  %s2 = inlined_call_operand.vmem [shape: f32[1,2048], index: 2, kind: input, shape index: {}]
  %s3 = inlined_call_operand.hbm [shape: bf16[2048,128], index: 3, kind: input, shape index: {}]
  %s4 = inlined_call_operand.vmem [shape: f32[1,128], index: 4, kind: input, shape index: {}]
  %s5 = inlined_call_operand.hbm [shape: f32[16,128], index: 5, kind: output, shape index: {}]
  %s6 = sld [smem:[#allocation0]]
  $region61: #{_lambda_.5} parent=0
    _
  %s8 = ssub.s32 1, %s6
  %s9 = scalar_select 0, %s8, %s6
  $region1: #{_lambda_.5} parent=0
    #allocation2 [shape = 'u8[524288]{0}', space=vmem, size = 0x80000, scoped, tag = 'input window, operand 1, single buffered']
    #allocation3 [shape = 's32[2]{0}', space=sflag, size = 0x8, scoped, tag = 'scoped memory for _lambda_.5']
    #allocation4 [shape = 's32[2]{0}', space=sflag, size = 0x8, scoped, tag = 'scoped memory for _lambda_.5']
    #allocation5 [shape = 'u8[524288]{0}', space=vmem, size = 0x80000, scoped, tag = 'input window, operand 3, single buffered']
    #allocation6 [shape = 's32[1]{0}', space=sflag, size = 0x4, scoped, tag = 'scoped memory for _lambda_.5']
    #allocation7 [shape = 'u8[8192]{0}', space=vmem, size = 0x2000, scoped, tag = 'output window, operand 0']
    %10 = vsyncpa [#allocation3], 0
    %11 = vsyncpa [#allocation6], 0
    %12 = vsyncpa [#allocation4], 0
    %s13 = scalar_lea.sflag [#allocation4], 1
    %14 = vsyncpa %s13, 0
    loop: start=0, step=1, limit=4
    $region2: #{_lambda_.5} parent=1 // loop_pre_header
      _
    $region3: #{_lambda_.5} parent=1 // loop_header
      %s16 = sphi 0, %s20
      %p17 = scmp.ge.s32.totalorder %s16, 4
      %s26 = sphi 0, %s28
      %s29 = sphi 0, %s26
      %s30 = sphi 0, %s29
      %s46 = sphi 0, %s30
      %s50 = sphi 0, %s50
      %s52 = sphi 0, %s50
      %s53 = sphi 0, %s52
      %s67 = sphi 0, %s53
      %s71 = sphi 0, %s71
      %s73 = sphi 0, %s71
      %s74 = sphi 0, %s73
      %s88 = sphi 0, %s74
      %s92 = sphi 0, %s92
      %s94 = sphi 0, %s92
      %s95 = sphi 0, %s94
      %s109 = sphi 0, %s95
      %s113 = sphi 0, %s113
      %s115 = sphi 0, %s113
      %s116 = sphi 0, %s115
      %s130 = sphi 0, %s116
      %s136 = sphi 0, %s138
      %s139 = sphi 0, %s136
      %s140 = sphi 0, %s139
      %s156 = sphi 0, %s140
    $region4: #{_lambda_.5} parent=1 // loop_header_branch
      %19 = sbr.rel (%p17) target = $region8
    $region5: #{_lambda_.5} parent=1 // loop_body
      %s21 = ssub.s32 %s16, 1
      %s22 = ssub.s32 %s16, 2
      %s23 = sadd.s32 %s16, 1
      %s24 = ssub.s32 %s16, %s23
      %p25 = scmp.eq.s32.totalorder %s24, 0
      %s27 = sadd.s32 %s26, 1
      %s28 = scalar_select %p25, %s26, %s27
      %p31 = pneg %p25
      %p32 = scmp.eq.s32.totalorder %s16, 1
      %p33 = por %p31, %p32
      %p34 = scmp.ne.s32.totalorder %s26, %s29
      %p35 = scmp.eq.s32.totalorder %s16, 0
      %p36 = por %p34, %p35
      %p37 = scmp.ne.s32.totalorder %s26, %s29
      %p38 = scmp.eq.s32.totalorder %s21, 1
      %p39 = por %p37, %p38
      %p40 = scmp.ne.s32.totalorder %s29, %s30
      %p41 = scmp.eq.s32.totalorder %s21, 0
      %p42 = por %p40, %p41
      %p43 = scmp.ne.s32.totalorder %s29, %s30
      %p44 = scmp.eq.s32.totalorder %s22, 1
      %p45 = por %p43, %p44
      %p47 = scmp.ne.s32.totalorder %s30, %s46
      %p48 = scmp.eq.s32.totalorder %s22, 0
      %p49 = por %p47, %p48
      %s51 = sadd.s32 %s50, 1
      %p54 = scmp.eq.s32.totalorder %s16, 1
      %p55 = scmp.ne.s32.totalorder %s50, %s52
      %p56 = scmp.eq.s32.totalorder %s16, 0
      %p57 = por %p55, %p56
      %p58 = scmp.ne.s32.totalorder %s50, %s52
      %p59 = scmp.eq.s32.totalorder %s21, 1
      %p60 = por %p58, %p59
      %p61 = scmp.ne.s32.totalorder %s52, %s53
      %p62 = scmp.eq.s32.totalorder %s21, 0
      %p63 = por %p61, %p62
      %p64 = scmp.ne.s32.totalorder %s52, %s53
      %p65 = scmp.eq.s32.totalorder %s22, 1
      %p66 = por %p64, %p65
      %p68 = scmp.ne.s32.totalorder %s53, %s67
      %p69 = scmp.eq.s32.totalorder %s22, 0
      %p70 = por %p68, %p69
      %s72 = sadd.s32 %s71, 1
      %p75 = scmp.eq.s32.totalorder %s16, 1
      %p76 = scmp.ne.s32.totalorder %s71, %s73
      %p77 = scmp.eq.s32.totalorder %s16, 0
      %p78 = por %p76, %p77
      %p79 = scmp.ne.s32.totalorder %s71, %s73
      %p80 = scmp.eq.s32.totalorder %s21, 1
      %p81 = por %p79, %p80
      %p82 = scmp.ne.s32.totalorder %s73, %s74
      %p83 = scmp.eq.s32.totalorder %s21, 0
      %p84 = por %p82, %p83
      %p85 = scmp.ne.s32.totalorder %s73, %s74
      %p86 = scmp.eq.s32.totalorder %s22, 1
      %p87 = por %p85, %p86
      %p89 = scmp.ne.s32.totalorder %s74, %s88
      %p90 = scmp.eq.s32.totalorder %s22, 0
      %p91 = por %p89, %p90
      %s93 = sadd.s32 %s92, 1
      %p96 = scmp.eq.s32.totalorder %s16, 1
      %p97 = scmp.ne.s32.totalorder %s92, %s94
      %p98 = scmp.eq.s32.totalorder %s16, 0
      %p99 = por %p97, %p98
      %p100 = scmp.ne.s32.totalorder %s92, %s94
      %p101 = scmp.eq.s32.totalorder %s21, 1
      %p102 = por %p100, %p101
      %p103 = scmp.ne.s32.totalorder %s94, %s95
      %p104 = scmp.eq.s32.totalorder %s21, 0
      %p105 = por %p103, %p104
      %p106 = scmp.ne.s32.totalorder %s94, %s95
      %p107 = scmp.eq.s32.totalorder %s22, 1
      %p108 = por %p106, %p107
      %p110 = scmp.ne.s32.totalorder %s95, %s109
      %p111 = scmp.eq.s32.totalorder %s22, 0
      %p112 = por %p110, %p111
      %s114 = sadd.s32 %s113, 1
      %p117 = scmp.eq.s32.totalorder %s16, 1
      %p118 = scmp.ne.s32.totalorder %s113, %s115
      %p119 = scmp.eq.s32.totalorder %s16, 0
      %p120 = por %p118, %p119
      %p121 = scmp.ne.s32.totalorder %s113, %s115
      %p122 = scmp.eq.s32.totalorder %s21, 1
      %p123 = por %p121, %p122
      %p124 = scmp.ne.s32.totalorder %s115, %s116
      %p125 = scmp.eq.s32.totalorder %s21, 0
      %p126 = por %p124, %p125
      %p127 = scmp.ne.s32.totalorder %s115, %s116
      %p128 = scmp.eq.s32.totalorder %s22, 1
      %p129 = por %p127, %p128
      %p131 = scmp.ne.s32.totalorder %s116, %s130
      %p132 = scmp.eq.s32.totalorder %s22, 0
      %p133 = por %p131, %p132
      %s134 = ssub.s32 %s16, %s23
      %p135 = scmp.eq.s32.totalorder %s134, 0
      %s137 = sadd.s32 %s136, 1
      %s138 = scalar_select %p135, %s136, %s137
      %p141 = pneg %p135
      %p142 = scmp.eq.s32.totalorder %s16, 1
      %p143 = por %p141, %p142
      %p144 = scmp.ne.s32.totalorder %s136, %s139
      %p145 = scmp.eq.s32.totalorder %s16, 0
      %p146 = por %p144, %p145
      %p147 = scmp.ne.s32.totalorder %s136, %s139
      %p148 = scmp.eq.s32.totalorder %s21, 1
      %p149 = por %p147, %p148
      %p150 = scmp.ne.s32.totalorder %s139, %s140
      %p151 = scmp.eq.s32.totalorder %s21, 0
      %p152 = por %p150, %p151
      %p153 = scmp.ne.s32.totalorder %s139, %s140
      %p154 = scmp.eq.s32.totalorder %s22, 1
      %p155 = por %p153, %p154
      %p157 = scmp.ne.s32.totalorder %s140, %s156
      %p158 = scmp.eq.s32.totalorder %s22, 0
      %p159 = por %p157, %p158
      %p160 = scmp.le.s32.totalorder 1, %s16
      %p161 = scmp.lt.s32.totalorder %s16, 3
      %p162 = pnand %p160, %p161
      %p163 = pneg %p162
      // Predicated region
      $region9: #{_lambda_.5} parent=5 // pred_check
        _
      $region10: #{_lambda_.5} parent=5 // pred_check_branch
        %165 = sbr.rel (%p162) target = $region12
      $region11: #{_lambda_.5} parent=5 // pred_region
        %s166 = ssub.s32 %s16, 1
        // Predicated region
        $region13: #{_lambda_.5} parent=11 // pred_check
          %p167 = pneg %p63
        $region14: #{_lambda_.5} parent=11 // pred_check_branch
          %169 = sbr.rel (%p167) target = $region16
        $region15: #{_lambda_.5} parent=11 // pred_region
          %171 = vsyncadd [#allocation3], 0
          %s172 = sshll.u32 %s1, 4
          %s173 = int_to_ptr.hbm [resolvable:$true] %s172
          %s174 = sshll.u32 [#allocation2], 4
          %s175 = int_to_ptr.vmem [resolvable:$true] %s174
          %180 = dma.hbm_to_vmem [thread:$0]  %s173, 16384, %s175, [#allocation3], 1024, 1024, 64
        $region16: #{_lambda_.5} parent=11 // pred_fallthru
          _
        // Predicated region
        $region17: #{_lambda_.5} parent=11 // pred_check
          %p181 = pneg %p84
        $region18: #{_lambda_.5} parent=11 // pred_check_branch
          %183 = sbr.rel (%p181) target = $region20
        $region19: #{_lambda_.5} parent=11 // pred_region
          _
        $region20: #{_lambda_.5} parent=11 // pred_fallthru
          _
        // Predicated region
        $region21: #{_lambda_.5} parent=11 // pred_check
          %p184 = pneg %p105
        $region22: #{_lambda_.5} parent=11 // pred_check_branch
          %186 = sbr.rel (%p184) target = $region24
        $region23: #{_lambda_.5} parent=11 // pred_region
          %188 = vsyncadd [#allocation6], 0
          %s189 = sshll.u32 %s3, 4
          %s190 = int_to_ptr.hbm [resolvable:$true] %s189
          %s191 = sshll.u32 [#allocation5], 4
          %s192 = int_to_ptr.vmem [resolvable:$true] %s191
          %197 = dma.hbm_to_vmem [thread:$0]  %s190, 16384, %s192, [#allocation6], 64, 64, 4
        $region24: #{_lambda_.5} parent=11 // pred_fallthru
          _
        // Predicated region
        $region25: #{_lambda_.5} parent=11 // pred_check
          %p198 = pneg %p126
        $region26: #{_lambda_.5} parent=11 // pred_check_branch
          %200 = sbr.rel (%p198) target = $region28
        $region27: #{_lambda_.5} parent=11 // pred_region
          _
        $region28: #{_lambda_.5} parent=11 // pred_fallthru
          _
      $region12: #{_lambda_.5} parent=5 // pred_fallthru
        _
      %p201 = scmp.lt.s32.totalorder %s16, 2
      // Predicated region
      $region29: #{_lambda_.5} parent=5 // pred_check
        %p202 = pneg %p201
      $region30: #{_lambda_.5} parent=5 // pred_check_branch
        %204 = sbr.rel (%p202) target = $region32
      $region31: #{_lambda_.5} parent=5 // pred_region
        // Predicated region
        $region33: #{_lambda_.5} parent=31 // pred_check
          %p205 = pneg %p36
        $region34: #{_lambda_.5} parent=31 // pred_check_branch
          %207 = sbr.rel (%p205) target = $region36
        $region35: #{_lambda_.5} parent=31 // pred_region
          %p208 = scmp.lt.s32.totalorder %s16, 1
          %s209 = scalar_select %p208, %s16, 1
          %s210 = smul.addr %s209, 4
          %s211 = scalar_lea.vmem %s0, %s210
        $region36: #{_lambda_.5} parent=31 // pred_fallthru
          _
      $region32: #{_lambda_.5} parent=5 // pred_fallthru
        _
      %p212 = scmp.le.s32.totalorder 1, %s16
      %p213 = scmp.lt.s32.totalorder %s16, 3
      %p214 = pnand %p212, %p213
      %p215 = pneg %p214
      // Predicated region
      $region37: #{_lambda_.5} parent=5 // pred_check
        _
      $region38: #{_lambda_.5} parent=5 // pred_check_branch
        %217 = sbr.rel (%p214) target = $region40
      $region39: #{_lambda_.5} parent=5 // pred_region
        %s218 = ssub.s32 %s16, 1
        // Predicated region
        $region41: #{_lambda_.5} parent=39 // pred_check
          %p219 = pneg %p63
        $region42: #{_lambda_.5} parent=39 // pred_check_branch
          %221 = sbr.rel (%p219) target = $region44
        $region43: #{_lambda_.5} parent=39 // pred_region
          %223 = dma.done [#allocation3], 16384
        $region44: #{_lambda_.5} parent=39 // pred_fallthru
          _
        // Predicated region
        $region45: #{_lambda_.5} parent=39 // pred_check
          %p224 = pneg %p105
        $region46: #{_lambda_.5} parent=39 // pred_check_branch
          %226 = sbr.rel (%p224) target = $region48
        $region47: #{_lambda_.5} parent=39 // pred_region
          %228 = dma.done [#allocation6], 16384
        $region48: #{_lambda_.5} parent=39 // pred_fallthru
          _
        %p229 = scmp.lt.s32.totalorder %s21, 1
        %s230 = scalar_select %p229, %s21, 1
        %s231 = smul.addr %s230, 4
        %s232 = scalar_lea.vmem %s0, %s231
        %p233 = pneg %p42
        %p234 = pneg %p39
        %p235 = pneg %p63
        %p236 = pneg %p60
        %p237 = pneg %p84
        %p238 = pneg %p81
        %p239 = pneg %p105
        %p240 = pneg %p102
        %p241 = pneg %p126
        %p242 = pneg %p123
        %p243 = pneg %p152
        %p244 = pneg %p149
        %s245 = sand.u32 %s139, 1
        %s246 = scalar_lea.sflag [#allocation4], %s245
        %s247 = sand.u32 %s139, 1
        %s248 = smul.addr %s247, 8
        %s249 = scalar_lea.vmem [#allocation7], %s248
        %p250 = scmp.lt.s32.totalorder %s21, 1
        %s251 = scalar_select %p250, %s21, 1
        %s252 = smul.addr %s251, 4
        %s253 = scalar_lea.vmem %s0, %s252
        %v254 = vld [vmem:[%s253] sm:$0xf]
        %v255 = vld [vmem:[#allocation2] sm:$0xff]
        %v256 = vld [vmem:[#allocation2 + $0x8] sm:$0xff]
        %v257 = vld [vmem:[#allocation2 + $0x10] sm:$0xff]
        %v258 = vld [vmem:[#allocation2 + $0x18] sm:$0xff]
        %v259 = vld [vmem:[#allocation2 + $0x20] sm:$0xff]
        %v260 = vld [vmem:[#allocation2 + $0x28] sm:$0xff]
        %v261 = vld [vmem:[#allocation2 + $0x30] sm:$0xff]
        %v262 = vld [vmem:[#allocation2 + $0x38] sm:$0xff]
        %v263 = vld [vmem:[#allocation2 + $0x40] sm:$0xff]
        %v264 = vld [vmem:[#allocation2 + $0x48] sm:$0xff]
        %v265 = vld [vmem:[#allocation2 + $0x50] sm:$0xff]
        %v266 = vld [vmem:[#allocation2 + $0x58] sm:$0xff]
        %v267 = vld [vmem:[#allocation2 + $0x60] sm:$0xff]
        %v268 = vld [vmem:[#allocation2 + $0x68] sm:$0xff]
        %v269 = vld [vmem:[#allocation2 + $0x70] sm:$0xff]
        %v270 = vld [vmem:[#allocation2 + $0x78] sm:$0xff]
        %v271 = vld [vmem:[#allocation2 + $0x80] sm:$0xff]
        %v272 = vld [vmem:[#allocation2 + $0x88] sm:$0xff]
        %v273 = vld [vmem:[#allocation2 + $0x90] sm:$0xff]
        %v274 = vld [vmem:[#allocation2 + $0x98] sm:$0xff]
        %v275 = vld [vmem:[#allocation2 + $0xa0] sm:$0xff]
        %v276 = vld [vmem:[#allocation2 + $0xa8] sm:$0xff]
        %v277 = vld [vmem:[#allocation2 + $0xb0] sm:$0xff]
        %v278 = vld [vmem:[#allocation2 + $0xb8] sm:$0xff]
        %v279 = vld [vmem:[#allocation2 + $0xc0] sm:$0xff]
        %v280 = vld [vmem:[#allocation2 + $0xc8] sm:$0xff]
        %v281 = vld [vmem:[#allocation2 + $0xd0] sm:$0xff]
        %v282 = vld [vmem:[#allocation2 + $0xd8] sm:$0xff]
        %v283 = vld [vmem:[#allocation2 + $0xe0] sm:$0xff]
        %v284 = vld [vmem:[#allocation2 + $0xe8] sm:$0xff]
        %v285 = vld [vmem:[#allocation2 + $0xf0] sm:$0xff]
        %v286 = vld [vmem:[#allocation2 + $0xf8] sm:$0xff]
        %v287 = vld [vmem:[#allocation2 + $0x100] sm:$0xff]
        %v288 = vld [vmem:[#allocation2 + $0x108] sm:$0xff]
        %v289 = vld [vmem:[#allocation2 + $0x110] sm:$0xff]
        %v290 = vld [vmem:[#allocation2 + $0x118] sm:$0xff]
        %v291 = vld [vmem:[#allocation2 + $0x120] sm:$0xff]
        %v292 = vld [vmem:[#allocation2 + $0x128] sm:$0xff]
        %v293 = vld [vmem:[#allocation2 + $0x130] sm:$0xff]
        %v294 = vld [vmem:[#allocation2 + $0x138] sm:$0xff]
        %v295 = vld [vmem:[#allocation2 + $0x140] sm:$0xff]
        %v296 = vld [vmem:[#allocation2 + $0x148] sm:$0xff]
        %v297 = vld [vmem:[#allocation2 + $0x150] sm:$0xff]
        %v298 = vld [vmem:[#allocation2 + $0x158] sm:$0xff]
        %v299 = vld [vmem:[#allocation2 + $0x160] sm:$0xff]
        %v300 = vld [vmem:[#allocation2 + $0x168] sm:$0xff]
        %v301 = vld [vmem:[#allocation2 + $0x170] sm:$0xff]
        %v302 = vld [vmem:[#allocation2 + $0x178] sm:$0xff]
        %v303 = vld [vmem:[#allocation2 + $0x180] sm:$0xff]
        %v304 = vld [vmem:[#allocation2 + $0x188] sm:$0xff]
        %v305 = vld [vmem:[#allocation2 + $0x190] sm:$0xff]
        %v306 = vld [vmem:[#allocation2 + $0x198] sm:$0xff]
        %v307 = vld [vmem:[#allocation2 + $0x1a0] sm:$0xff]
        %v308 = vld [vmem:[#allocation2 + $0x1a8] sm:$0xff]
        %v309 = vld [vmem:[#allocation2 + $0x1b0] sm:$0xff]
        %v310 = vld [vmem:[#allocation2 + $0x1b8] sm:$0xff]
        %v311 = vld [vmem:[#allocation2 + $0x1c0] sm:$0xff]
        %v312 = vld [vmem:[#allocation2 + $0x1c8] sm:$0xff]
        %v313 = vld [vmem:[#allocation2 + $0x1d0] sm:$0xff]
        %v314 = vld [vmem:[#allocation2 + $0x1d8] sm:$0xff]
        %v315 = vld [vmem:[#allocation2 + $0x1e0] sm:$0xff]
        %v316 = vld [vmem:[#allocation2 + $0x1e8] sm:$0xff]
        %v317 = vld [vmem:[#allocation2 + $0x1f0] sm:$0xff]
        %v318 = vld [vmem:[#allocation2 + $0x1f8] sm:$0xff]
        %v319 = vld [vmem:[#allocation2 + $0x200] sm:$0xff]
        %v320 = vld [vmem:[#allocation2 + $0x208] sm:$0xff]
        %v321 = vld [vmem:[#allocation2 + $0x210] sm:$0xff]
        %v322 = vld [vmem:[#allocation2 + $0x218] sm:$0xff]
        %v323 = vld [vmem:[#allocation2 + $0x220] sm:$0xff]
        %v324 = vld [vmem:[#allocation2 + $0x228] sm:$0xff]
        %v325 = vld [vmem:[#allocation2 + $0x230] sm:$0xff]
        %v326 = vld [vmem:[#allocation2 + $0x238] sm:$0xff]
        %v327 = vld [vmem:[#allocation2 + $0x240] sm:$0xff]
        %v328 = vld [vmem:[#allocation2 + $0x248] sm:$0xff]
        %v329 = vld [vmem:[#allocation2 + $0x250] sm:$0xff]
        %v330 = vld [vmem:[#allocation2 + $0x258] sm:$0xff]
        %v331 = vld [vmem:[#allocation2 + $0x260] sm:$0xff]
        %v332 = vld [vmem:[#allocation2 + $0x268] sm:$0xff]
        %v333 = vld [vmem:[#allocation2 + $0x270] sm:$0xff]
        %v334 = vld [vmem:[#allocation2 + $0x278] sm:$0xff]
        %v335 = vld [vmem:[#allocation2 + $0x280] sm:$0xff]
        %v336 = vld [vmem:[#allocation2 + $0x288] sm:$0xff]
        %v337 = vld [vmem:[#allocation2 + $0x290] sm:$0xff]
        %v338 = vld [vmem:[#allocation2 + $0x298] sm:$0xff]
        %v339 = vld [vmem:[#allocation2 + $0x2a0] sm:$0xff]
        %v340 = vld [vmem:[#allocation2 + $0x2a8] sm:$0xff]
        %v341 = vld [vmem:[#allocation2 + $0x2b0] sm:$0xff]
        %v342 = vld [vmem:[#allocation2 + $0x2b8] sm:$0xff]
        %v343 = vld [vmem:[#allocation2 + $0x2c0] sm:$0xff]
        %v344 = vld [vmem:[#allocation2 + $0x2c8] sm:$0xff]
        %v345 = vld [vmem:[#allocation2 + $0x2d0] sm:$0xff]
        %v346 = vld [vmem:[#allocation2 + $0x2d8] sm:$0xff]
        %v347 = vld [vmem:[#allocation2 + $0x2e0] sm:$0xff]
        %v348 = vld [vmem:[#allocation2 + $0x2e8] sm:$0xff]
        %v349 = vld [vmem:[#allocation2 + $0x2f0] sm:$0xff]
        %v350 = vld [vmem:[#allocation2 + $0x2f8] sm:$0xff]
        %v351 = vld [vmem:[#allocation2 + $0x300] sm:$0xff]
        %v352 = vld [vmem:[#allocation2 + $0x308] sm:$0xff]
        %v353 = vld [vmem:[#allocation2 + $0x310] sm:$0xff]
        %v354 = vld [vmem:[#allocation2 + $0x318] sm:$0xff]
        %v355 = vld [vmem:[#allocation2 + $0x320] sm:$0xff]
        %v356 = vld [vmem:[#allocation2 + $0x328] sm:$0xff]
        %v357 = vld [vmem:[#allocation2 + $0x330] sm:$0xff]
        %v358 = vld [vmem:[#allocation2 + $0x338] sm:$0xff]
        %v359 = vld [vmem:[#allocation2 + $0x340] sm:$0xff]
        %v360 = vld [vmem:[#allocation2 + $0x348] sm:$0xff]
        %v361 = vld [vmem:[#allocation2 + $0x350] sm:$0xff]
        %v362 = vld [vmem:[#allocation2 + $0x358] sm:$0xff]
        %v363 = vld [vmem:[#allocation2 + $0x360] sm:$0xff]
        %v364 = vld [vmem:[#allocation2 + $0x368] sm:$0xff]
        %v365 = vld [vmem:[#allocation2 + $0x370] sm:$0xff]
        %v366 = vld [vmem:[#allocation2 + $0x378] sm:$0xff]
        %v367 = vld [vmem:[#allocation2 + $0x380] sm:$0xff]
        %v368 = vld [vmem:[#allocation2 + $0x388] sm:$0xff]
        %v369 = vld [vmem:[#allocation2 + $0x390] sm:$0xff]
        %v370 = vld [vmem:[#allocation2 + $0x398] sm:$0xff]
        %v371 = vld [vmem:[#allocation2 + $0x3a0] sm:$0xff]
        %v372 = vld [vmem:[#allocation2 + $0x3a8] sm:$0xff]
        %v373 = vld [vmem:[#allocation2 + $0x3b0] sm:$0xff]
        %v374 = vld [vmem:[#allocation2 + $0x3b8] sm:$0xff]
        %v375 = vld [vmem:[#allocation2 + $0x3c0] sm:$0xff]
        %v376 = vld [vmem:[#allocation2 + $0x3c8] sm:$0xff]
        %v377 = vld [vmem:[#allocation2 + $0x3d0] sm:$0xff]
        %v378 = vld [vmem:[#allocation2 + $0x3d8] sm:$0xff]
        %v379 = vld [vmem:[#allocation2 + $0x3e0] sm:$0xff]
        %v380 = vld [vmem:[#allocation2 + $0x3e8] sm:$0xff]
        %v381 = vld [vmem:[#allocation2 + $0x3f0] sm:$0xff]
        %v382 = vld [vmem:[#allocation2 + $0x3f8] sm:$0xff]
        %v383 = vld [vmem:[%s2] sm:$0xff]
        %v384 = vld [vmem:[%s2 + $0x8] sm:$0xff]
        %v387 = vperm.slane %v383, 0
        %v388 = vperm.slane %v383, 1
        %v389 = vperm.slane %v383, 2
        %v390 = vperm.slane %v383, 3
        %v391 = vperm.slane %v383, 4
        %v392 = vperm.slane %v383, 5
        %v393 = vperm.slane %v383, 6
        %v394 = vperm.slane %v383, 7
        %v395 = vperm.slane %v384, 0
        %v396 = vperm.slane %v384, 1
        %v397 = vperm.slane %v384, 2
        %v398 = vperm.slane %v384, 3
        %v399 = vperm.slane %v384, 4
        %v400 = vperm.slane %v384, 5
        %v401 = vperm.slane %v384, 6
        %v402 = vperm.slane %v384, 7
        %v547 = vunpack.c.l.b16 %v255
        %v548 = vunpack.c.h.b16 %v255
        %v549 = vunpack.c.l.b16 %v256
        %v550 = vunpack.c.h.b16 %v256
        %v551 = vunpack.c.l.b16 %v257
        %v552 = vunpack.c.h.b16 %v257
        %v553 = vunpack.c.l.b16 %v258
        %v554 = vunpack.c.h.b16 %v258
        %v555 = vunpack.c.l.b16 %v259
        %v556 = vunpack.c.h.b16 %v259
        %v557 = vunpack.c.l.b16 %v260
        %v558 = vunpack.c.h.b16 %v260
        %v559 = vunpack.c.l.b16 %v261
        %v560 = vunpack.c.h.b16 %v261
        %v561 = vunpack.c.l.b16 %v262
        %v562 = vunpack.c.h.b16 %v262
        %v563 = vunpack.c.l.b16 %v263
        %v564 = vunpack.c.h.b16 %v263
        %v565 = vunpack.c.l.b16 %v264
        %v566 = vunpack.c.h.b16 %v264
        %v567 = vunpack.c.l.b16 %v265
        %v568 = vunpack.c.h.b16 %v265
        %v569 = vunpack.c.l.b16 %v266
        %v570 = vunpack.c.h.b16 %v266
        %v571 = vunpack.c.l.b16 %v267
        %v572 = vunpack.c.h.b16 %v267
        %v573 = vunpack.c.l.b16 %v268
        %v574 = vunpack.c.h.b16 %v268
        %v575 = vunpack.c.l.b16 %v269
        %v576 = vunpack.c.h.b16 %v269
        %v577 = vunpack.c.l.b16 %v270
        %v578 = vunpack.c.h.b16 %v270
        %v579 = vunpack.c.l.b16 %v271
        %v580 = vunpack.c.h.b16 %v271
        %v581 = vunpack.c.l.b16 %v272
        %v582 = vunpack.c.h.b16 %v272
        %v583 = vunpack.c.l.b16 %v273
        %v584 = vunpack.c.h.b16 %v273
        %v585 = vunpack.c.l.b16 %v274
        %v586 = vunpack.c.h.b16 %v274
        %v587 = vunpack.c.l.b16 %v275
        %v588 = vunpack.c.h.b16 %v275
        %v589 = vunpack.c.l.b16 %v276
        %v590 = vunpack.c.h.b16 %v276
        %v591 = vunpack.c.l.b16 %v277
        %v592 = vunpack.c.h.b16 %v277
        %v593 = vunpack.c.l.b16 %v278
        %v594 = vunpack.c.h.b16 %v278
        %v595 = vunpack.c.l.b16 %v279
        %v596 = vunpack.c.h.b16 %v279
        %v597 = vunpack.c.l.b16 %v280
        %v598 = vunpack.c.h.b16 %v280
        %v599 = vunpack.c.l.b16 %v281
        %v600 = vunpack.c.h.b16 %v281
        %v601 = vunpack.c.l.b16 %v282
        %v602 = vunpack.c.h.b16 %v282
        %v603 = vunpack.c.l.b16 %v283
        %v604 = vunpack.c.h.b16 %v283
        %v605 = vunpack.c.l.b16 %v284
        %v606 = vunpack.c.h.b16 %v284
        %v607 = vunpack.c.l.b16 %v285
        %v608 = vunpack.c.h.b16 %v285
        %v609 = vunpack.c.l.b16 %v286
        %v610 = vunpack.c.h.b16 %v286
        %v611 = vunpack.c.l.b16 %v287
        %v612 = vunpack.c.h.b16 %v287
        %v613 = vunpack.c.l.b16 %v288
        %v614 = vunpack.c.h.b16 %v288
        %v615 = vunpack.c.l.b16 %v289
        %v616 = vunpack.c.h.b16 %v289
        %v617 = vunpack.c.l.b16 %v290
        %v618 = vunpack.c.h.b16 %v290
        %v619 = vunpack.c.l.b16 %v291
        %v620 = vunpack.c.h.b16 %v291
        %v621 = vunpack.c.l.b16 %v292
        %v622 = vunpack.c.h.b16 %v292
        %v623 = vunpack.c.l.b16 %v293
        %v624 = vunpack.c.h.b16 %v293
        %v625 = vunpack.c.l.b16 %v294
        %v626 = vunpack.c.h.b16 %v294
        %v627 = vunpack.c.l.b16 %v295
        %v628 = vunpack.c.h.b16 %v295
        %v629 = vunpack.c.l.b16 %v296
        %v630 = vunpack.c.h.b16 %v296
        %v631 = vunpack.c.l.b16 %v297
        %v632 = vunpack.c.h.b16 %v297
        %v633 = vunpack.c.l.b16 %v298
        %v634 = vunpack.c.h.b16 %v298
        %v635 = vunpack.c.l.b16 %v299
        %v636 = vunpack.c.h.b16 %v299
        %v637 = vunpack.c.l.b16 %v300
        %v638 = vunpack.c.h.b16 %v300
        %v639 = vunpack.c.l.b16 %v301
        %v640 = vunpack.c.h.b16 %v301
        %v641 = vunpack.c.l.b16 %v302
        %v642 = vunpack.c.h.b16 %v302
        %v643 = vunpack.c.l.b16 %v303
        %v644 = vunpack.c.h.b16 %v303
        %v645 = vunpack.c.l.b16 %v304
        %v646 = vunpack.c.h.b16 %v304
        %v647 = vunpack.c.l.b16 %v305
        %v648 = vunpack.c.h.b16 %v305
        %v649 = vunpack.c.l.b16 %v306
        %v650 = vunpack.c.h.b16 %v306
        %v651 = vunpack.c.l.b16 %v307
        %v652 = vunpack.c.h.b16 %v307
        %v653 = vunpack.c.l.b16 %v308
        %v654 = vunpack.c.h.b16 %v308
        %v655 = vunpack.c.l.b16 %v309
        %v656 = vunpack.c.h.b16 %v309
        %v657 = vunpack.c.l.b16 %v310
        %v658 = vunpack.c.h.b16 %v310
        %v659 = vunpack.c.l.b16 %v311
        %v660 = vunpack.c.h.b16 %v311
        %v661 = vunpack.c.l.b16 %v312
        %v662 = vunpack.c.h.b16 %v312
        %v663 = vunpack.c.l.b16 %v313
        %v664 = vunpack.c.h.b16 %v313
        %v665 = vunpack.c.l.b16 %v314
        %v666 = vunpack.c.h.b16 %v314
        %v667 = vunpack.c.l.b16 %v315
        %v668 = vunpack.c.h.b16 %v315
        %v669 = vunpack.c.l.b16 %v316
        %v670 = vunpack.c.h.b16 %v316
        %v671 = vunpack.c.l.b16 %v317
        %v672 = vunpack.c.h.b16 %v317
        %v673 = vunpack.c.l.b16 %v318
        %v674 = vunpack.c.h.b16 %v318
        %v675 = vunpack.c.l.b16 %v319
        %v676 = vunpack.c.h.b16 %v319
        %v677 = vunpack.c.l.b16 %v320
        %v678 = vunpack.c.h.b16 %v320
        %v679 = vunpack.c.l.b16 %v321
        %v680 = vunpack.c.h.b16 %v321
        %v681 = vunpack.c.l.b16 %v322
        %v682 = vunpack.c.h.b16 %v322
        %v683 = vunpack.c.l.b16 %v323
        %v684 = vunpack.c.h.b16 %v323
        %v685 = vunpack.c.l.b16 %v324
        %v686 = vunpack.c.h.b16 %v324
        %v687 = vunpack.c.l.b16 %v325
        %v688 = vunpack.c.h.b16 %v325
        %v689 = vunpack.c.l.b16 %v326
        %v690 = vunpack.c.h.b16 %v326
        %v691 = vunpack.c.l.b16 %v327
        %v692 = vunpack.c.h.b16 %v327
        %v693 = vunpack.c.l.b16 %v328
        %v694 = vunpack.c.h.b16 %v328
        %v695 = vunpack.c.l.b16 %v329
        %v696 = vunpack.c.h.b16 %v329
        %v697 = vunpack.c.l.b16 %v330
        %v698 = vunpack.c.h.b16 %v330
        %v699 = vunpack.c.l.b16 %v331
        %v700 = vunpack.c.h.b16 %v331
        %v701 = vunpack.c.l.b16 %v332
        %v702 = vunpack.c.h.b16 %v332
        %v703 = vunpack.c.l.b16 %v333
        %v704 = vunpack.c.h.b16 %v333
        %v705 = vunpack.c.l.b16 %v334
        %v706 = vunpack.c.h.b16 %v334
        %v707 = vunpack.c.l.b16 %v335
        %v708 = vunpack.c.h.b16 %v335
        %v709 = vunpack.c.l.b16 %v336
        %v710 = vunpack.c.h.b16 %v336
        %v711 = vunpack.c.l.b16 %v337
        %v712 = vunpack.c.h.b16 %v337
        %v713 = vunpack.c.l.b16 %v338
        %v714 = vunpack.c.h.b16 %v338
        %v715 = vunpack.c.l.b16 %v339
        %v716 = vunpack.c.h.b16 %v339
        %v717 = vunpack.c.l.b16 %v340
        %v718 = vunpack.c.h.b16 %v340
        %v719 = vunpack.c.l.b16 %v341
        %v720 = vunpack.c.h.b16 %v341
        %v721 = vunpack.c.l.b16 %v342
        %v722 = vunpack.c.h.b16 %v342
        %v723 = vunpack.c.l.b16 %v343
        %v724 = vunpack.c.h.b16 %v343
        %v725 = vunpack.c.l.b16 %v344
        %v726 = vunpack.c.h.b16 %v344
        %v727 = vunpack.c.l.b16 %v345
        %v728 = vunpack.c.h.b16 %v345
        %v729 = vunpack.c.l.b16 %v346
        %v730 = vunpack.c.h.b16 %v346
        %v731 = vunpack.c.l.b16 %v347
        %v732 = vunpack.c.h.b16 %v347
        %v733 = vunpack.c.l.b16 %v348
        %v734 = vunpack.c.h.b16 %v348
        %v735 = vunpack.c.l.b16 %v349
        %v736 = vunpack.c.h.b16 %v349
        %v737 = vunpack.c.l.b16 %v350
        %v738 = vunpack.c.h.b16 %v350
        %v739 = vunpack.c.l.b16 %v351
        %v740 = vunpack.c.h.b16 %v351
        %v741 = vunpack.c.l.b16 %v352
        %v742 = vunpack.c.h.b16 %v352
        %v743 = vunpack.c.l.b16 %v353
        %v744 = vunpack.c.h.b16 %v353
        %v745 = vunpack.c.l.b16 %v354
        %v746 = vunpack.c.h.b16 %v354
        %v747 = vunpack.c.l.b16 %v355
        %v748 = vunpack.c.h.b16 %v355
        %v749 = vunpack.c.l.b16 %v356
        %v750 = vunpack.c.h.b16 %v356
        %v751 = vunpack.c.l.b16 %v357
        %v752 = vunpack.c.h.b16 %v357
        %v753 = vunpack.c.l.b16 %v358
        %v754 = vunpack.c.h.b16 %v358
        %v755 = vunpack.c.l.b16 %v359
        %v756 = vunpack.c.h.b16 %v359
        %v757 = vunpack.c.l.b16 %v360
        %v758 = vunpack.c.h.b16 %v360
        %v759 = vunpack.c.l.b16 %v361
        %v760 = vunpack.c.h.b16 %v361
        %v761 = vunpack.c.l.b16 %v362
        %v762 = vunpack.c.h.b16 %v362
        %v763 = vunpack.c.l.b16 %v363
        %v764 = vunpack.c.h.b16 %v363
        %v765 = vunpack.c.l.b16 %v364
        %v766 = vunpack.c.h.b16 %v364
        %v767 = vunpack.c.l.b16 %v365
        %v768 = vunpack.c.h.b16 %v365
        %v769 = vunpack.c.l.b16 %v366
        %v770 = vunpack.c.h.b16 %v366
        %v771 = vunpack.c.l.b16 %v367
        %v772 = vunpack.c.h.b16 %v367
        %v773 = vunpack.c.l.b16 %v368
        %v774 = vunpack.c.h.b16 %v368
        %v775 = vunpack.c.l.b16 %v369
        %v776 = vunpack.c.h.b16 %v369
        %v777 = vunpack.c.l.b16 %v370
        %v778 = vunpack.c.h.b16 %v370
        %v779 = vunpack.c.l.b16 %v371
        %v780 = vunpack.c.h.b16 %v371
        %v781 = vunpack.c.l.b16 %v372
        %v782 = vunpack.c.h.b16 %v372
        %v783 = vunpack.c.l.b16 %v373
        %v784 = vunpack.c.h.b16 %v373
        %v785 = vunpack.c.l.b16 %v374
        %v786 = vunpack.c.h.b16 %v374
        %v787 = vunpack.c.l.b16 %v375
        %v788 = vunpack.c.h.b16 %v375
        %v789 = vunpack.c.l.b16 %v376
        %v790 = vunpack.c.h.b16 %v376
        %v791 = vunpack.c.l.b16 %v377
        %v792 = vunpack.c.h.b16 %v377
        %v793 = vunpack.c.l.b16 %v378
        %v794 = vunpack.c.h.b16 %v378
        %v795 = vunpack.c.l.b16 %v379
        %v796 = vunpack.c.h.b16 %v379
        %v797 = vunpack.c.l.b16 %v380
        %v798 = vunpack.c.h.b16 %v380
        %v799 = vunpack.c.l.b16 %v381
        %v800 = vunpack.c.h.b16 %v381
        %v801 = vunpack.c.l.b16 %v382
        %v802 = vunpack.c.h.b16 %v382
        %v803 = vpack.c.b16 %v563, %v547
        %v804 = vpack.c.b16 %v564, %v548
        %v805 = vpack.c.b16 %v565, %v549
        %v806 = vpack.c.b16 %v566, %v550
        %v807 = vpack.c.b16 %v567, %v551
        %v808 = vpack.c.b16 %v568, %v552
        %v809 = vpack.c.b16 %v569, %v553
        %v810 = vpack.c.b16 %v570, %v554
        %v811 = vpack.c.b16 %v571, %v555
        %v812 = vpack.c.b16 %v572, %v556
        %v813 = vpack.c.b16 %v573, %v557
        %v814 = vpack.c.b16 %v574, %v558
        %v815 = vpack.c.b16 %v575, %v559
        %v816 = vpack.c.b16 %v576, %v560
        %v817 = vpack.c.b16 %v577, %v561
        %v818 = vpack.c.b16 %v578, %v562
        %v819 = vpack.c.b16 %v595, %v579
        %v820 = vpack.c.b16 %v596, %v580
        %v821 = vpack.c.b16 %v597, %v581
        %v822 = vpack.c.b16 %v598, %v582
        %v823 = vpack.c.b16 %v599, %v583
        %v824 = vpack.c.b16 %v600, %v584
        %v825 = vpack.c.b16 %v601, %v585
        %v826 = vpack.c.b16 %v602, %v586
        %v827 = vpack.c.b16 %v603, %v587
        %v828 = vpack.c.b16 %v604, %v588
        %v829 = vpack.c.b16 %v605, %v589
        %v830 = vpack.c.b16 %v606, %v590
        %v831 = vpack.c.b16 %v607, %v591
        %v832 = vpack.c.b16 %v608, %v592
        %v833 = vpack.c.b16 %v609, %v593
        %v834 = vpack.c.b16 %v610, %v594
        %v835 = vpack.c.b16 %v627, %v611
        %v836 = vpack.c.b16 %v628, %v612
        %v837 = vpack.c.b16 %v629, %v613
        %v838 = vpack.c.b16 %v630, %v614
        %v839 = vpack.c.b16 %v631, %v615
        %v840 = vpack.c.b16 %v632, %v616
        %v841 = vpack.c.b16 %v633, %v617
        %v842 = vpack.c.b16 %v634, %v618
        %v843 = vpack.c.b16 %v635, %v619
        %v844 = vpack.c.b16 %v636, %v620
        %v845 = vpack.c.b16 %v637, %v621
        %v846 = vpack.c.b16 %v638, %v622
        %v847 = vpack.c.b16 %v639, %v623
        %v848 = vpack.c.b16 %v640, %v624
        %v849 = vpack.c.b16 %v641, %v625
        %v850 = vpack.c.b16 %v642, %v626
        %v851 = vpack.c.b16 %v659, %v643
        %v852 = vpack.c.b16 %v660, %v644
        %v853 = vpack.c.b16 %v661, %v645
        %v854 = vpack.c.b16 %v662, %v646
        %v855 = vpack.c.b16 %v663, %v647
        %v856 = vpack.c.b16 %v664, %v648
        %v857 = vpack.c.b16 %v665, %v649
        %v858 = vpack.c.b16 %v666, %v650
        %v859 = vpack.c.b16 %v667, %v651
        %v860 = vpack.c.b16 %v668, %v652
        %v861 = vpack.c.b16 %v669, %v653
        %v862 = vpack.c.b16 %v670, %v654
        %v863 = vpack.c.b16 %v671, %v655
        %v864 = vpack.c.b16 %v672, %v656
        %v865 = vpack.c.b16 %v673, %v657
        %v866 = vpack.c.b16 %v674, %v658
        %v867 = vpack.c.b16 %v691, %v675
        %v868 = vpack.c.b16 %v692, %v676
        %v869 = vpack.c.b16 %v693, %v677
        %v870 = vpack.c.b16 %v694, %v678
        %v871 = vpack.c.b16 %v695, %v679
        %v872 = vpack.c.b16 %v696, %v680
        %v873 = vpack.c.b16 %v697, %v681
        %v874 = vpack.c.b16 %v698, %v682
        %v875 = vpack.c.b16 %v699, %v683
        %v876 = vpack.c.b16 %v700, %v684
        %v877 = vpack.c.b16 %v701, %v685
        %v878 = vpack.c.b16 %v702, %v686
        %v879 = vpack.c.b16 %v703, %v687
        %v880 = vpack.c.b16 %v704, %v688
        %v881 = vpack.c.b16 %v705, %v689
        %v882 = vpack.c.b16 %v706, %v690
        %v883 = vpack.c.b16 %v723, %v707
        %v884 = vpack.c.b16 %v724, %v708
        %v885 = vpack.c.b16 %v725, %v709
        %v886 = vpack.c.b16 %v726, %v710
        %v887 = vpack.c.b16 %v727, %v711
        %v888 = vpack.c.b16 %v728, %v712
        %v889 = vpack.c.b16 %v729, %v713
        %v890 = vpack.c.b16 %v730, %v714
        %v891 = vpack.c.b16 %v731, %v715
        %v892 = vpack.c.b16 %v732, %v716
        %v893 = vpack.c.b16 %v733, %v717
        %v894 = vpack.c.b16 %v734, %v718
        %v895 = vpack.c.b16 %v735, %v719
        %v896 = vpack.c.b16 %v736, %v720
        %v897 = vpack.c.b16 %v737, %v721
        %v898 = vpack.c.b16 %v738, %v722
        %v899 = vpack.c.b16 %v755, %v739
        %v900 = vpack.c.b16 %v756, %v740
        %v901 = vpack.c.b16 %v757, %v741
        %v902 = vpack.c.b16 %v758, %v742
        %v903 = vpack.c.b16 %v759, %v743
        %v904 = vpack.c.b16 %v760, %v744
        %v905 = vpack.c.b16 %v761, %v745
        %v906 = vpack.c.b16 %v762, %v746
        %v907 = vpack.c.b16 %v763, %v747
        %v908 = vpack.c.b16 %v764, %v748
        %v909 = vpack.c.b16 %v765, %v749
        %v910 = vpack.c.b16 %v766, %v750
        %v911 = vpack.c.b16 %v767, %v751
        %v912 = vpack.c.b16 %v768, %v752
        %v913 = vpack.c.b16 %v769, %v753
        %v914 = vpack.c.b16 %v770, %v754
        %v915 = vpack.c.b16 %v787, %v771
        %v916 = vpack.c.b16 %v788, %v772
        %v917 = vpack.c.b16 %v789, %v773
        %v918 = vpack.c.b16 %v790, %v774
        %v919 = vpack.c.b16 %v791, %v775
        %v920 = vpack.c.b16 %v792, %v776
        %v921 = vpack.c.b16 %v793, %v777
        %v922 = vpack.c.b16 %v794, %v778
        %v923 = vpack.c.b16 %v795, %v779
        %v924 = vpack.c.b16 %v796, %v780
        %v925 = vpack.c.b16 %v797, %v781
        %v926 = vpack.c.b16 %v798, %v782
        %v927 = vpack.c.b16 %v799, %v783
        %v928 = vpack.c.b16 %v800, %v784
        %v929 = vpack.c.b16 %v801, %v785
        %v930 = vpack.c.b16 %v802, %v786
        %1059 = vmatpush.bf16.msra.mxu0 %v915
        %1060 = vmatpush.bf16.msra.mxu0 %v899
        %1061 = vmatpush.bf16.msra.mxu0 %v883
        %1062 = vmatpush.bf16.msra.mxu0 %v867
        %1063 = vmatpush.bf16.msra.mxu0 %v851
        %1064 = vmatpush.bf16.msra.mxu0 %v835
        %1065 = vmatpush.bf16.msra.mxu0 %v819
        %1066 = vmatpush.bf16.msra.mxu0 %v803
        %1067 = vmatmul.bf16.gmra.mxu0 %v254
        %v1068 = vpop.f32.mrf.mxu0
        %v1069 = vadd.f32 %v387, %v1068
        %v1070 = vpop.f32.mrf.mxu0
        %1071 = vdwg.mxu0
        %1072 = vmatpush.bf16.msra.mxu0 %v916
        %1073 = vmatpush.bf16.msra.mxu0 %v900
        %1074 = vmatpush.bf16.msra.mxu0 %v884
        %1075 = vmatpush.bf16.msra.mxu0 %v868
        %1076 = vmatpush.bf16.msra.mxu0 %v852
        %1077 = vmatpush.bf16.msra.mxu0 %v836
        %1078 = vmatpush.bf16.msra.mxu0 %v820
        %1079 = vmatpush.bf16.msra.mxu0 %v804
        %1080 = vmatmul.bf16.gmra.mxu0 %v254
        %v1081 = vpop.f32.mrf.mxu0
        %v1082 = vadd.f32 %v388, %v1081
        %v1083 = vpop.f32.mrf.mxu0
        %1084 = vdwg.mxu0
        %1085 = vmatpush.bf16.msra.mxu0 %v917
        %1086 = vmatpush.bf16.msra.mxu0 %v901
        %1087 = vmatpush.bf16.msra.mxu0 %v885
        %1088 = vmatpush.bf16.msra.mxu0 %v869
        %1089 = vmatpush.bf16.msra.mxu0 %v853
        %1090 = vmatpush.bf16.msra.mxu0 %v837
        %1091 = vmatpush.bf16.msra.mxu0 %v821
        %1092 = vmatpush.bf16.msra.mxu0 %v805
        %1093 = vmatmul.bf16.gmra.mxu0 %v254
        %v1094 = vpop.f32.mrf.mxu0
        %v1095 = vadd.f32 %v389, %v1094
        %v1096 = vpop.f32.mrf.mxu0
        %1097 = vdwg.mxu0
        %1098 = vmatpush.bf16.msra.mxu0 %v918
        %1099 = vmatpush.bf16.msra.mxu0 %v902
        %1100 = vmatpush.bf16.msra.mxu0 %v886
        %1101 = vmatpush.bf16.msra.mxu0 %v870
        %1102 = vmatpush.bf16.msra.mxu0 %v854
        %1103 = vmatpush.bf16.msra.mxu0 %v838
        %1104 = vmatpush.bf16.msra.mxu0 %v822
        %1105 = vmatpush.bf16.msra.mxu0 %v806
        %1106 = vmatmul.bf16.gmra.mxu0 %v254
        %v1107 = vpop.f32.mrf.mxu0
        %v1108 = vadd.f32 %v390, %v1107
        %v1109 = vpop.f32.mrf.mxu0
        %1110 = vdwg.mxu0
        %1111 = vmatpush.bf16.msra.mxu0 %v919
        %1112 = vmatpush.bf16.msra.mxu0 %v903
        %1113 = vmatpush.bf16.msra.mxu0 %v887
        %1114 = vmatpush.bf16.msra.mxu0 %v871
        %1115 = vmatpush.bf16.msra.mxu0 %v855
        %1116 = vmatpush.bf16.msra.mxu0 %v839
        %1117 = vmatpush.bf16.msra.mxu0 %v823
        %1118 = vmatpush.bf16.msra.mxu0 %v807
        %1119 = vmatmul.bf16.gmra.mxu0 %v254
        %v1120 = vpop.f32.mrf.mxu0
        %v1121 = vadd.f32 %v391, %v1120
        %v1122 = vpop.f32.mrf.mxu0
        %1123 = vdwg.mxu0
        %1124 = vmatpush.bf16.msra.mxu0 %v920
        %1125 = vmatpush.bf16.msra.mxu0 %v904
        %1126 = vmatpush.bf16.msra.mxu0 %v888
        %1127 = vmatpush.bf16.msra.mxu0 %v872
        %1128 = vmatpush.bf16.msra.mxu0 %v856
        %1129 = vmatpush.bf16.msra.mxu0 %v840
        %1130 = vmatpush.bf16.msra.mxu0 %v824
        %1131 = vmatpush.bf16.msra.mxu0 %v808
        %1132 = vmatmul.bf16.gmra.mxu0 %v254
        %v1133 = vpop.f32.mrf.mxu0
        %v1134 = vadd.f32 %v392, %v1133
        %v1135 = vpop.f32.mrf.mxu0
        %1136 = vdwg.mxu0
        %1137 = vmatpush.bf16.msra.mxu0 %v921
        %1138 = vmatpush.bf16.msra.mxu0 %v905
        %1139 = vmatpush.bf16.msra.mxu0 %v889
        %1140 = vmatpush.bf16.msra.mxu0 %v873
        %1141 = vmatpush.bf16.msra.mxu0 %v857
        %1142 = vmatpush.bf16.msra.mxu0 %v841
        %1143 = vmatpush.bf16.msra.mxu0 %v825
        %1144 = vmatpush.bf16.msra.mxu0 %v809
        %1145 = vmatmul.bf16.gmra.mxu0 %v254
        %v1146 = vpop.f32.mrf.mxu0
        %v1147 = vadd.f32 %v393, %v1146
        %v1148 = vpop.f32.mrf.mxu0
        %1149 = vdwg.mxu0
        %1150 = vmatpush.bf16.msra.mxu0 %v922
        %1151 = vmatpush.bf16.msra.mxu0 %v906
        %1152 = vmatpush.bf16.msra.mxu0 %v890
        %1153 = vmatpush.bf16.msra.mxu0 %v874
        %1154 = vmatpush.bf16.msra.mxu0 %v858
        %1155 = vmatpush.bf16.msra.mxu0 %v842
        %1156 = vmatpush.bf16.msra.mxu0 %v826
        %1157 = vmatpush.bf16.msra.mxu0 %v810
        %1158 = vmatmul.bf16.gmra.mxu0 %v254
        %v1159 = vpop.f32.mrf.mxu0
        %v1160 = vadd.f32 %v394, %v1159
        %v1161 = vpop.f32.mrf.mxu0
        %1162 = vdwg.mxu0
        %1163 = vmatpush.bf16.msra.mxu0 %v923
        %1164 = vmatpush.bf16.msra.mxu0 %v907
        %1165 = vmatpush.bf16.msra.mxu0 %v891
        %1166 = vmatpush.bf16.msra.mxu0 %v875
        %1167 = vmatpush.bf16.msra.mxu0 %v859
        %1168 = vmatpush.bf16.msra.mxu0 %v843
        %1169 = vmatpush.bf16.msra.mxu0 %v827
        %1170 = vmatpush.bf16.msra.mxu0 %v811
        %1171 = vmatmul.bf16.gmra.mxu0 %v254
        %v1172 = vpop.f32.mrf.mxu0
        %v1173 = vadd.f32 %v395, %v1172
        %v1174 = vpop.f32.mrf.mxu0
        %1175 = vdwg.mxu0
        %1176 = vmatpush.bf16.msra.mxu0 %v924
        %1177 = vmatpush.bf16.msra.mxu0 %v908
        %1178 = vmatpush.bf16.msra.mxu0 %v892
        %1179 = vmatpush.bf16.msra.mxu0 %v876
        %1180 = vmatpush.bf16.msra.mxu0 %v860
        %1181 = vmatpush.bf16.msra.mxu0 %v844
        %1182 = vmatpush.bf16.msra.mxu0 %v828
        %1183 = vmatpush.bf16.msra.mxu0 %v812
        %1184 = vmatmul.bf16.gmra.mxu0 %v254
        %v1185 = vpop.f32.mrf.mxu0
        %v1186 = vadd.f32 %v396, %v1185
        %v1187 = vpop.f32.mrf.mxu0
        %1188 = vdwg.mxu0
        %1189 = vmatpush.bf16.msra.mxu0 %v925
        %1190 = vmatpush.bf16.msra.mxu0 %v909
        %1191 = vmatpush.bf16.msra.mxu0 %v893
        %1192 = vmatpush.bf16.msra.mxu0 %v877
        %1193 = vmatpush.bf16.msra.mxu0 %v861
        %1194 = vmatpush.bf16.msra.mxu0 %v845
        %1195 = vmatpush.bf16.msra.mxu0 %v829
        %1196 = vmatpush.bf16.msra.mxu0 %v813
        %1197 = vmatmul.bf16.gmra.mxu0 %v254
        %v1198 = vpop.f32.mrf.mxu0
        %v1199 = vadd.f32 %v397, %v1198
        %v1200 = vpop.f32.mrf.mxu0
        %1201 = vdwg.mxu0
        %1202 = vmatpush.bf16.msra.mxu0 %v926
        %1203 = vmatpush.bf16.msra.mxu0 %v910
        %1204 = vmatpush.bf16.msra.mxu0 %v894
        %1205 = vmatpush.bf16.msra.mxu0 %v878
        %1206 = vmatpush.bf16.msra.mxu0 %v862
        %1207 = vmatpush.bf16.msra.mxu0 %v846
        %1208 = vmatpush.bf16.msra.mxu0 %v830
        %1209 = vmatpush.bf16.msra.mxu0 %v814
        %1210 = vmatmul.bf16.gmra.mxu0 %v254
        %v1211 = vpop.f32.mrf.mxu0
        %v1212 = vadd.f32 %v398, %v1211
        %v1213 = vpop.f32.mrf.mxu0
        %1214 = vdwg.mxu0
        %1215 = vmatpush.bf16.msra.mxu0 %v927
        %1216 = vmatpush.bf16.msra.mxu0 %v911
        %1217 = vmatpush.bf16.msra.mxu0 %v895
        %1218 = vmatpush.bf16.msra.mxu0 %v879
        %1219 = vmatpush.bf16.msra.mxu0 %v863
        %1220 = vmatpush.bf16.msra.mxu0 %v847
        %1221 = vmatpush.bf16.msra.mxu0 %v831
        %1222 = vmatpush.bf16.msra.mxu0 %v815
        %1223 = vmatmul.bf16.gmra.mxu0 %v254
        %v1224 = vpop.f32.mrf.mxu0
        %v1225 = vadd.f32 %v399, %v1224
        %v1226 = vpop.f32.mrf.mxu0
        %1227 = vdwg.mxu0
        %1228 = vmatpush.bf16.msra.mxu0 %v928
        %1229 = vmatpush.bf16.msra.mxu0 %v912
        %1230 = vmatpush.bf16.msra.mxu0 %v896
        %1231 = vmatpush.bf16.msra.mxu0 %v880
        %1232 = vmatpush.bf16.msra.mxu0 %v864
        %1233 = vmatpush.bf16.msra.mxu0 %v848
        %1234 = vmatpush.bf16.msra.mxu0 %v832
        %1235 = vmatpush.bf16.msra.mxu0 %v816
        %1236 = vmatmul.bf16.gmra.mxu0 %v254
        %v1237 = vpop.f32.mrf.mxu0
        %v1238 = vadd.f32 %v400, %v1237
        %v1239 = vpop.f32.mrf.mxu0
        %1240 = vdwg.mxu0
        %1241 = vmatpush.bf16.msra.mxu0 %v929
        %1242 = vmatpush.bf16.msra.mxu0 %v913
        %1243 = vmatpush.bf16.msra.mxu0 %v897
        %1244 = vmatpush.bf16.msra.mxu0 %v881
        %1245 = vmatpush.bf16.msra.mxu0 %v865
        %1246 = vmatpush.bf16.msra.mxu0 %v849
        %1247 = vmatpush.bf16.msra.mxu0 %v833
        %1248 = vmatpush.bf16.msra.mxu0 %v817
        %1249 = vmatmul.bf16.gmra.mxu0 %v254
        %v1250 = vpop.f32.mrf.mxu0
        %v1251 = vadd.f32 %v401, %v1250
        %v1252 = vpop.f32.mrf.mxu0
        %1253 = vdwg.mxu0
        %1254 = vmatpush.bf16.msra.mxu0 %v930
        %1255 = vmatpush.bf16.msra.mxu0 %v914
        %1256 = vmatpush.bf16.msra.mxu0 %v898
        %1257 = vmatpush.bf16.msra.mxu0 %v882
        %1258 = vmatpush.bf16.msra.mxu0 %v866
        %1259 = vmatpush.bf16.msra.mxu0 %v850
        %1260 = vmatpush.bf16.msra.mxu0 %v834
        %1261 = vmatpush.bf16.msra.mxu0 %v818
        %1262 = vmatmul.bf16.gmra.mxu0 %v254
        %v1263 = vpop.f32.mrf.mxu0
        %v1264 = vadd.f32 %v402, %v1263
        %v1265 = vpop.f32.mrf.mxu0
        %1266 = vdwg.mxu0
        %v1267 = vmax.f32 %v1069, 0.0
        %v1268 = vmax.f32 %v1082, 0.0
        %v1269 = vmax.f32 %v1095, 0.0
        %v1270 = vmax.f32 %v1108, 0.0
        %v1271 = vmax.f32 %v1121, 0.0
        %v1272 = vmax.f32 %v1134, 0.0
        %v1273 = vmax.f32 %v1147, 0.0
        %v1274 = vmax.f32 %v1160, 0.0
        %v1275 = vmax.f32 %v1173, 0.0
        %v1276 = vmax.f32 %v1186, 0.0
        %v1277 = vmax.f32 %v1199, 0.0
        %v1278 = vmax.f32 %v1212, 0.0
        %v1279 = vmax.f32 %v1225, 0.0
        %v1280 = vmax.f32 %v1238, 0.0
        %v1281 = vmax.f32 %v1251, 0.0
        %v1282 = vmax.f32 %v1264, 0.0
        %v1283 = vpack.c.bf16 %v1267, %v1267
        %v1284 = vpack.c.bf16 %v1268, %v1268
        %v1285 = vpack.c.bf16 %v1269, %v1269
        %v1286 = vpack.c.bf16 %v1270, %v1270
        %v1287 = vpack.c.bf16 %v1271, %v1271
        %v1288 = vpack.c.bf16 %v1272, %v1272
        %v1289 = vpack.c.bf16 %v1273, %v1273
        %v1290 = vpack.c.bf16 %v1274, %v1274
        %v1291 = vpack.c.bf16 %v1275, %v1275
        %v1292 = vpack.c.bf16 %v1276, %v1276
        %v1293 = vpack.c.bf16 %v1277, %v1277
        %v1294 = vpack.c.bf16 %v1278, %v1278
        %v1295 = vpack.c.bf16 %v1279, %v1279
        %v1296 = vpack.c.bf16 %v1280, %v1280
        %v1297 = vpack.c.bf16 %v1281, %v1281
        %v1298 = vpack.c.bf16 %v1282, %v1282
        %v1299 = vld [vmem:[#allocation5] sm:$0xf]
        %v1300 = vld [vmem:[#allocation5 + $0x4] sm:$0xf]
        %v1301 = vld [vmem:[#allocation5 + $0x8] sm:$0xf]
        %v1302 = vld [vmem:[#allocation5 + $0xc] sm:$0xf]
        %v1303 = vld [vmem:[#allocation5 + $0x10] sm:$0xf]
        %v1304 = vld [vmem:[#allocation5 + $0x14] sm:$0xf]
        %v1305 = vld [vmem:[#allocation5 + $0x18] sm:$0xf]
        %v1306 = vld [vmem:[#allocation5 + $0x1c] sm:$0xf]
        %v1307 = vld [vmem:[#allocation5 + $0x20] sm:$0xf]
        %v1308 = vld [vmem:[#allocation5 + $0x24] sm:$0xf]
        %v1309 = vld [vmem:[#allocation5 + $0x28] sm:$0xf]
        %v1310 = vld [vmem:[#allocation5 + $0x2c] sm:$0xf]
        %v1311 = vld [vmem:[#allocation5 + $0x30] sm:$0xf]
        %v1312 = vld [vmem:[#allocation5 + $0x34] sm:$0xf]
        %v1313 = vld [vmem:[#allocation5 + $0x38] sm:$0xf]
        %v1314 = vld [vmem:[#allocation5 + $0x3c] sm:$0xf]
        %v1315 = vld [vmem:[#allocation5 + $0x40] sm:$0xf]
        %v1316 = vld [vmem:[#allocation5 + $0x44] sm:$0xf]
        %v1317 = vld [vmem:[#allocation5 + $0x48] sm:$0xf]
        %v1318 = vld [vmem:[#allocation5 + $0x4c] sm:$0xf]
        %v1319 = vld [vmem:[#allocation5 + $0x50] sm:$0xf]
        %v1320 = vld [vmem:[#allocation5 + $0x54] sm:$0xf]
        %v1321 = vld [vmem:[#allocation5 + $0x58] sm:$0xf]
        %v1322 = vld [vmem:[#allocation5 + $0x5c] sm:$0xf]
        %v1323 = vld [vmem:[#allocation5 + $0x60] sm:$0xf]
        %v1324 = vld [vmem:[#allocation5 + $0x64] sm:$0xf]
        %v1325 = vld [vmem:[#allocation5 + $0x68] sm:$0xf]
        %v1326 = vld [vmem:[#allocation5 + $0x6c] sm:$0xf]
        %v1327 = vld [vmem:[#allocation5 + $0x70] sm:$0xf]
        %v1328 = vld [vmem:[#allocation5 + $0x74] sm:$0xf]
        %v1329 = vld [vmem:[#allocation5 + $0x78] sm:$0xf]
        %v1330 = vld [vmem:[#allocation5 + $0x7c] sm:$0xf]
        %v1331 = vld [vmem:[#allocation5 + $0x80] sm:$0xf]
        %v1332 = vld [vmem:[#allocation5 + $0x84] sm:$0xf]
        %v1333 = vld [vmem:[#allocation5 + $0x88] sm:$0xf]
        %v1334 = vld [vmem:[#allocation5 + $0x8c] sm:$0xf]
        %v1335 = vld [vmem:[#allocation5 + $0x90] sm:$0xf]
        %v1336 = vld [vmem:[#allocation5 + $0x94] sm:$0xf]
        %v1337 = vld [vmem:[#allocation5 + $0x98] sm:$0xf]
        %v1338 = vld [vmem:[#allocation5 + $0x9c] sm:$0xf]
        %v1339 = vld [vmem:[#allocation5 + $0xa0] sm:$0xf]
        %v1340 = vld [vmem:[#allocation5 + $0xa4] sm:$0xf]
        %v1341 = vld [vmem:[#allocation5 + $0xa8] sm:$0xf]
        %v1342 = vld [vmem:[#allocation5 + $0xac] sm:$0xf]
        %v1343 = vld [vmem:[#allocation5 + $0xb0] sm:$0xf]
        %v1344 = vld [vmem:[#allocation5 + $0xb4] sm:$0xf]
        %v1345 = vld [vmem:[#allocation5 + $0xb8] sm:$0xf]
        %v1346 = vld [vmem:[#allocation5 + $0xbc] sm:$0xf]
        %v1347 = vld [vmem:[#allocation5 + $0xc0] sm:$0xf]
        %v1348 = vld [vmem:[#allocation5 + $0xc4] sm:$0xf]
        %v1349 = vld [vmem:[#allocation5 + $0xc8] sm:$0xf]
        %v1350 = vld [vmem:[#allocation5 + $0xcc] sm:$0xf]
        %v1351 = vld [vmem:[#allocation5 + $0xd0] sm:$0xf]
        %v1352 = vld [vmem:[#allocation5 + $0xd4] sm:$0xf]
        %v1353 = vld [vmem:[#allocation5 + $0xd8] sm:$0xf]
        %v1354 = vld [vmem:[#allocation5 + $0xdc] sm:$0xf]
        %v1355 = vld [vmem:[#allocation5 + $0xe0] sm:$0xf]
        %v1356 = vld [vmem:[#allocation5 + $0xe4] sm:$0xf]
        %v1357 = vld [vmem:[#allocation5 + $0xe8] sm:$0xf]
        %v1358 = vld [vmem:[#allocation5 + $0xec] sm:$0xf]
        %v1359 = vld [vmem:[#allocation5 + $0xf0] sm:$0xf]
        %v1360 = vld [vmem:[#allocation5 + $0xf4] sm:$0xf]
        %v1361 = vld [vmem:[#allocation5 + $0xf8] sm:$0xf]
        %v1362 = vld [vmem:[#allocation5 + $0xfc] sm:$0xf]
        %v1363 = vld [vmem:[#allocation5 + $0x100] sm:$0xf]
        %v1364 = vld [vmem:[#allocation5 + $0x104] sm:$0xf]
        %v1365 = vld [vmem:[#allocation5 + $0x108] sm:$0xf]
        %v1366 = vld [vmem:[#allocation5 + $0x10c] sm:$0xf]
        %v1367 = vld [vmem:[#allocation5 + $0x110] sm:$0xf]
        %v1368 = vld [vmem:[#allocation5 + $0x114] sm:$0xf]
        %v1369 = vld [vmem:[#allocation5 + $0x118] sm:$0xf]
        %v1370 = vld [vmem:[#allocation5 + $0x11c] sm:$0xf]
        %v1371 = vld [vmem:[#allocation5 + $0x120] sm:$0xf]
        %v1372 = vld [vmem:[#allocation5 + $0x124] sm:$0xf]
        %v1373 = vld [vmem:[#allocation5 + $0x128] sm:$0xf]
        %v1374 = vld [vmem:[#allocation5 + $0x12c] sm:$0xf]
        %v1375 = vld [vmem:[#allocation5 + $0x130] sm:$0xf]
        %v1376 = vld [vmem:[#allocation5 + $0x134] sm:$0xf]
        %v1377 = vld [vmem:[#allocation5 + $0x138] sm:$0xf]
        %v1378 = vld [vmem:[#allocation5 + $0x13c] sm:$0xf]
        %v1379 = vld [vmem:[#allocation5 + $0x140] sm:$0xf]
        %v1380 = vld [vmem:[#allocation5 + $0x144] sm:$0xf]
        %v1381 = vld [vmem:[#allocation5 + $0x148] sm:$0xf]
        %v1382 = vld [vmem:[#allocation5 + $0x14c] sm:$0xf]
        %v1383 = vld [vmem:[#allocation5 + $0x150] sm:$0xf]
        %v1384 = vld [vmem:[#allocation5 + $0x154] sm:$0xf]
        %v1385 = vld [vmem:[#allocation5 + $0x158] sm:$0xf]
        %v1386 = vld [vmem:[#allocation5 + $0x15c] sm:$0xf]
        %v1387 = vld [vmem:[#allocation5 + $0x160] sm:$0xf]
        %v1388 = vld [vmem:[#allocation5 + $0x164] sm:$0xf]
        %v1389 = vld [vmem:[#allocation5 + $0x168] sm:$0xf]
        %v1390 = vld [vmem:[#allocation5 + $0x16c] sm:$0xf]
        %v1391 = vld [vmem:[#allocation5 + $0x170] sm:$0xf]
        %v1392 = vld [vmem:[#allocation5 + $0x174] sm:$0xf]
        %v1393 = vld [vmem:[#allocation5 + $0x178] sm:$0xf]
        %v1394 = vld [vmem:[#allocation5 + $0x17c] sm:$0xf]
        %v1395 = vld [vmem:[#allocation5 + $0x180] sm:$0xf]
        %v1396 = vld [vmem:[#allocation5 + $0x184] sm:$0xf]
        %v1397 = vld [vmem:[#allocation5 + $0x188] sm:$0xf]
        %v1398 = vld [vmem:[#allocation5 + $0x18c] sm:$0xf]
        %v1399 = vld [vmem:[#allocation5 + $0x190] sm:$0xf]
        %v1400 = vld [vmem:[#allocation5 + $0x194] sm:$0xf]
        %v1401 = vld [vmem:[#allocation5 + $0x198] sm:$0xf]
        %v1402 = vld [vmem:[#allocation5 + $0x19c] sm:$0xf]
        %v1403 = vld [vmem:[#allocation5 + $0x1a0] sm:$0xf]
        %v1404 = vld [vmem:[#allocation5 + $0x1a4] sm:$0xf]
        %v1405 = vld [vmem:[#allocation5 + $0x1a8] sm:$0xf]
        %v1406 = vld [vmem:[#allocation5 + $0x1ac] sm:$0xf]
        %v1407 = vld [vmem:[#allocation5 + $0x1b0] sm:$0xf]
        %v1408 = vld [vmem:[#allocation5 + $0x1b4] sm:$0xf]
        %v1409 = vld [vmem:[#allocation5 + $0x1b8] sm:$0xf]
        %v1410 = vld [vmem:[#allocation5 + $0x1bc] sm:$0xf]
        %v1411 = vld [vmem:[#allocation5 + $0x1c0] sm:$0xf]
        %v1412 = vld [vmem:[#allocation5 + $0x1c4] sm:$0xf]
        %v1413 = vld [vmem:[#allocation5 + $0x1c8] sm:$0xf]
        %v1414 = vld [vmem:[#allocation5 + $0x1cc] sm:$0xf]
        %v1415 = vld [vmem:[#allocation5 + $0x1d0] sm:$0xf]
        %v1416 = vld [vmem:[#allocation5 + $0x1d4] sm:$0xf]
        %v1417 = vld [vmem:[#allocation5 + $0x1d8] sm:$0xf]
        %v1418 = vld [vmem:[#allocation5 + $0x1dc] sm:$0xf]
        %v1419 = vld [vmem:[#allocation5 + $0x1e0] sm:$0xf]
        %v1420 = vld [vmem:[#allocation5 + $0x1e4] sm:$0xf]
        %v1421 = vld [vmem:[#allocation5 + $0x1e8] sm:$0xf]
        %v1422 = vld [vmem:[#allocation5 + $0x1ec] sm:$0xf]
        %v1423 = vld [vmem:[#allocation5 + $0x1f0] sm:$0xf]
        %v1424 = vld [vmem:[#allocation5 + $0x1f4] sm:$0xf]
        %v1425 = vld [vmem:[#allocation5 + $0x1f8] sm:$0xf]
        %v1426 = vld [vmem:[#allocation5 + $0x1fc] sm:$0xf]
        %v1427 = vld [vmem:[#allocation5 + $0x200] sm:$0xf]
        %v1428 = vld [vmem:[#allocation5 + $0x204] sm:$0xf]
        %v1429 = vld [vmem:[#allocation5 + $0x208] sm:$0xf]
        %v1430 = vld [vmem:[#allocation5 + $0x20c] sm:$0xf]
        %v1431 = vld [vmem:[#allocation5 + $0x210] sm:$0xf]
        %v1432 = vld [vmem:[#allocation5 + $0x214] sm:$0xf]
        %v1433 = vld [vmem:[#allocation5 + $0x218] sm:$0xf]
        %v1434 = vld [vmem:[#allocation5 + $0x21c] sm:$0xf]
        %v1435 = vld [vmem:[#allocation5 + $0x220] sm:$0xf]
        %v1436 = vld [vmem:[#allocation5 + $0x224] sm:$0xf]
        %v1437 = vld [vmem:[#allocation5 + $0x228] sm:$0xf]
        %v1438 = vld [vmem:[#allocation5 + $0x22c] sm:$0xf]
        %v1439 = vld [vmem:[#allocation5 + $0x230] sm:$0xf]
        %v1440 = vld [vmem:[#allocation5 + $0x234] sm:$0xf]
        %v1441 = vld [vmem:[#allocation5 + $0x238] sm:$0xf]
        %v1442 = vld [vmem:[#allocation5 + $0x23c] sm:$0xf]
        %v1443 = vld [vmem:[#allocation5 + $0x240] sm:$0xf]
        %v1444 = vld [vmem:[#allocation5 + $0x244] sm:$0xf]
        %v1445 = vld [vmem:[#allocation5 + $0x248] sm:$0xf]
        %v1446 = vld [vmem:[#allocation5 + $0x24c] sm:$0xf]
        %v1447 = vld [vmem:[#allocation5 + $0x250] sm:$0xf]
        %v1448 = vld [vmem:[#allocation5 + $0x254] sm:$0xf]
        %v1449 = vld [vmem:[#allocation5 + $0x258] sm:$0xf]
        %v1450 = vld [vmem:[#allocation5 + $0x25c] sm:$0xf]
        %v1451 = vld [vmem:[#allocation5 + $0x260] sm:$0xf]
        %v1452 = vld [vmem:[#allocation5 + $0x264] sm:$0xf]
        %v1453 = vld [vmem:[#allocation5 + $0x268] sm:$0xf]
        %v1454 = vld [vmem:[#allocation5 + $0x26c] sm:$0xf]
        %v1455 = vld [vmem:[#allocation5 + $0x270] sm:$0xf]
        %v1456 = vld [vmem:[#allocation5 + $0x274] sm:$0xf]
        %v1457 = vld [vmem:[#allocation5 + $0x278] sm:$0xf]
        %v1458 = vld [vmem:[#allocation5 + $0x27c] sm:$0xf]
        %v1459 = vld [vmem:[#allocation5 + $0x280] sm:$0xf]
        %v1460 = vld [vmem:[#allocation5 + $0x284] sm:$0xf]
        %v1461 = vld [vmem:[#allocation5 + $0x288] sm:$0xf]
        %v1462 = vld [vmem:[#allocation5 + $0x28c] sm:$0xf]
        %v1463 = vld [vmem:[#allocation5 + $0x290] sm:$0xf]
        %v1464 = vld [vmem:[#allocation5 + $0x294] sm:$0xf]
        %v1465 = vld [vmem:[#allocation5 + $0x298] sm:$0xf]
        %v1466 = vld [vmem:[#allocation5 + $0x29c] sm:$0xf]
        %v1467 = vld [vmem:[#allocation5 + $0x2a0] sm:$0xf]
        %v1468 = vld [vmem:[#allocation5 + $0x2a4] sm:$0xf]
        %v1469 = vld [vmem:[#allocation5 + $0x2a8] sm:$0xf]
        %v1470 = vld [vmem:[#allocation5 + $0x2ac] sm:$0xf]
        %v1471 = vld [vmem:[#allocation5 + $0x2b0] sm:$0xf]
        %v1472 = vld [vmem:[#allocation5 + $0x2b4] sm:$0xf]
        %v1473 = vld [vmem:[#allocation5 + $0x2b8] sm:$0xf]
        %v1474 = vld [vmem:[#allocation5 + $0x2bc] sm:$0xf]
        %v1475 = vld [vmem:[#allocation5 + $0x2c0] sm:$0xf]
        %v1476 = vld [vmem:[#allocation5 + $0x2c4] sm:$0xf]
        %v1477 = vld [vmem:[#allocation5 + $0x2c8] sm:$0xf]
        %v1478 = vld [vmem:[#allocation5 + $0x2cc] sm:$0xf]
        %v1479 = vld [vmem:[#allocation5 + $0x2d0] sm:$0xf]
        %v1480 = vld [vmem:[#allocation5 + $0x2d4] sm:$0xf]
        %v1481 = vld [vmem:[#allocation5 + $0x2d8] sm:$0xf]
        %v1482 = vld [vmem:[#allocation5 + $0x2dc] sm:$0xf]
        %v1483 = vld [vmem:[#allocation5 + $0x2e0] sm:$0xf]
        %v1484 = vld [vmem:[#allocation5 + $0x2e4] sm:$0xf]
        %v1485 = vld [vmem:[#allocation5 + $0x2e8] sm:$0xf]
        %v1486 = vld [vmem:[#allocation5 + $0x2ec] sm:$0xf]
        %v1487 = vld [vmem:[#allocation5 + $0x2f0] sm:$0xf]
        %v1488 = vld [vmem:[#allocation5 + $0x2f4] sm:$0xf]
        %v1489 = vld [vmem:[#allocation5 + $0x2f8] sm:$0xf]
        %v1490 = vld [vmem:[#allocation5 + $0x2fc] sm:$0xf]
        %v1491 = vld [vmem:[#allocation5 + $0x300] sm:$0xf]
        %v1492 = vld [vmem:[#allocation5 + $0x304] sm:$0xf]
        %v1493 = vld [vmem:[#allocation5 + $0x308] sm:$0xf]
        %v1494 = vld [vmem:[#allocation5 + $0x30c] sm:$0xf]
        %v1495 = vld [vmem:[#allocation5 + $0x310] sm:$0xf]
        %v1496 = vld [vmem:[#allocation5 + $0x314] sm:$0xf]
        %v1497 = vld [vmem:[#allocation5 + $0x318] sm:$0xf]
        %v1498 = vld [vmem:[#allocation5 + $0x31c] sm:$0xf]
        %v1499 = vld [vmem:[#allocation5 + $0x320] sm:$0xf]
        %v1500 = vld [vmem:[#allocation5 + $0x324] sm:$0xf]
        %v1501 = vld [vmem:[#allocation5 + $0x328] sm:$0xf]
        %v1502 = vld [vmem:[#allocation5 + $0x32c] sm:$0xf]
        %v1503 = vld [vmem:[#allocation5 + $0x330] sm:$0xf]
        %v1504 = vld [vmem:[#allocation5 + $0x334] sm:$0xf]
        %v1505 = vld [vmem:[#allocation5 + $0x338] sm:$0xf]
        %v1506 = vld [vmem:[#allocation5 + $0x33c] sm:$0xf]
        %v1507 = vld [vmem:[#allocation5 + $0x340] sm:$0xf]
        %v1508 = vld [vmem:[#allocation5 + $0x344] sm:$0xf]
        %v1509 = vld [vmem:[#allocation5 + $0x348] sm:$0xf]
        %v1510 = vld [vmem:[#allocation5 + $0x34c] sm:$0xf]
        %v1511 = vld [vmem:[#allocation5 + $0x350] sm:$0xf]
        %v1512 = vld [vmem:[#allocation5 + $0x354] sm:$0xf]
        %v1513 = vld [vmem:[#allocation5 + $0x358] sm:$0xf]
        %v1514 = vld [vmem:[#allocation5 + $0x35c] sm:$0xf]
        %v1515 = vld [vmem:[#allocation5 + $0x360] sm:$0xf]
        %v1516 = vld [vmem:[#allocation5 + $0x364] sm:$0xf]
        %v1517 = vld [vmem:[#allocation5 + $0x368] sm:$0xf]
        %v1518 = vld [vmem:[#allocation5 + $0x36c] sm:$0xf]
        %v1519 = vld [vmem:[#allocation5 + $0x370] sm:$0xf]
        %v1520 = vld [vmem:[#allocation5 + $0x374] sm:$0xf]
        %v1521 = vld [vmem:[#allocation5 + $0x378] sm:$0xf]
        %v1522 = vld [vmem:[#allocation5 + $0x37c] sm:$0xf]
        %v1523 = vld [vmem:[#allocation5 + $0x380] sm:$0xf]
        %v1524 = vld [vmem:[#allocation5 + $0x384] sm:$0xf]
        %v1525 = vld [vmem:[#allocation5 + $0x388] sm:$0xf]
        %v1526 = vld [vmem:[#allocation5 + $0x38c] sm:$0xf]
        %v1527 = vld [vmem:[#allocation5 + $0x390] sm:$0xf]
        %v1528 = vld [vmem:[#allocation5 + $0x394] sm:$0xf]
        %v1529 = vld [vmem:[#allocation5 + $0x398] sm:$0xf]
        %v1530 = vld [vmem:[#allocation5 + $0x39c] sm:$0xf]
        %v1531 = vld [vmem:[#allocation5 + $0x3a0] sm:$0xf]
        %v1532 = vld [vmem:[#allocation5 + $0x3a4] sm:$0xf]
        %v1533 = vld [vmem:[#allocation5 + $0x3a8] sm:$0xf]
        %v1534 = vld [vmem:[#allocation5 + $0x3ac] sm:$0xf]
        %v1535 = vld [vmem:[#allocation5 + $0x3b0] sm:$0xf]
        %v1536 = vld [vmem:[#allocation5 + $0x3b4] sm:$0xf]
        %v1537 = vld [vmem:[#allocation5 + $0x3b8] sm:$0xf]
        %v1538 = vld [vmem:[#allocation5 + $0x3bc] sm:$0xf]
        %v1539 = vld [vmem:[#allocation5 + $0x3c0] sm:$0xf]
        %v1540 = vld [vmem:[#allocation5 + $0x3c4] sm:$0xf]
        %v1541 = vld [vmem:[#allocation5 + $0x3c8] sm:$0xf]
        %v1542 = vld [vmem:[#allocation5 + $0x3cc] sm:$0xf]
        %v1543 = vld [vmem:[#allocation5 + $0x3d0] sm:$0xf]
        %v1544 = vld [vmem:[#allocation5 + $0x3d4] sm:$0xf]
        %v1545 = vld [vmem:[#allocation5 + $0x3d8] sm:$0xf]
        %v1546 = vld [vmem:[#allocation5 + $0x3dc] sm:$0xf]
        %v1547 = vld [vmem:[#allocation5 + $0x3e0] sm:$0xf]
        %v1548 = vld [vmem:[#allocation5 + $0x3e4] sm:$0xf]
        %v1549 = vld [vmem:[#allocation5 + $0x3e8] sm:$0xf]
        %v1550 = vld [vmem:[#allocation5 + $0x3ec] sm:$0xf]
        %v1551 = vld [vmem:[#allocation5 + $0x3f0] sm:$0xf]
        %v1552 = vld [vmem:[#allocation5 + $0x3f4] sm:$0xf]
        %v1553 = vld [vmem:[#allocation5 + $0x3f8] sm:$0xf]
        %v1554 = vld [vmem:[#allocation5 + $0x3fc] sm:$0xf]
        %v1555 = vld [vmem:[%s4] sm:$0x1]
        %v1557 = vperm.slane %v1555, 0
        %v1815 = vunpack.c.l.b16 %v1299
        %v1816 = vunpack.c.l.b16 %v1300
        %v1817 = vunpack.c.l.b16 %v1301
        %v1818 = vunpack.c.l.b16 %v1302
        %v1819 = vunpack.c.l.b16 %v1303
        %v1820 = vunpack.c.l.b16 %v1304
        %v1821 = vunpack.c.l.b16 %v1305
        %v1822 = vunpack.c.l.b16 %v1306
        %v1823 = vunpack.c.l.b16 %v1307
        %v1824 = vunpack.c.l.b16 %v1308
        %v1825 = vunpack.c.l.b16 %v1309
        %v1826 = vunpack.c.l.b16 %v1310
        %v1827 = vunpack.c.l.b16 %v1311
        %v1828 = vunpack.c.l.b16 %v1312
        %v1829 = vunpack.c.l.b16 %v1313
        %v1830 = vunpack.c.l.b16 %v1314
        %v1831 = vunpack.c.l.b16 %v1315
        %v1832 = vunpack.c.l.b16 %v1316
        %v1833 = vunpack.c.l.b16 %v1317
        %v1834 = vunpack.c.l.b16 %v1318
        %v1835 = vunpack.c.l.b16 %v1319
        %v1836 = vunpack.c.l.b16 %v1320
        %v1837 = vunpack.c.l.b16 %v1321
        %v1838 = vunpack.c.l.b16 %v1322
        %v1839 = vunpack.c.l.b16 %v1323
        %v1840 = vunpack.c.l.b16 %v1324
        %v1841 = vunpack.c.l.b16 %v1325
        %v1842 = vunpack.c.l.b16 %v1326
        %v1843 = vunpack.c.l.b16 %v1327
        %v1844 = vunpack.c.l.b16 %v1328
        %v1845 = vunpack.c.l.b16 %v1329
        %v1846 = vunpack.c.l.b16 %v1330
        %v1847 = vunpack.c.l.b16 %v1331
        %v1848 = vunpack.c.l.b16 %v1332
        %v1849 = vunpack.c.l.b16 %v1333
        %v1850 = vunpack.c.l.b16 %v1334
        %v1851 = vunpack.c.l.b16 %v1335
        %v1852 = vunpack.c.l.b16 %v1336
        %v1853 = vunpack.c.l.b16 %v1337
        %v1854 = vunpack.c.l.b16 %v1338
        %v1855 = vunpack.c.l.b16 %v1339
        %v1856 = vunpack.c.l.b16 %v1340
        %v1857 = vunpack.c.l.b16 %v1341
        %v1858 = vunpack.c.l.b16 %v1342
        %v1859 = vunpack.c.l.b16 %v1343
        %v1860 = vunpack.c.l.b16 %v1344
        %v1861 = vunpack.c.l.b16 %v1345
        %v1862 = vunpack.c.l.b16 %v1346
        %v1863 = vunpack.c.l.b16 %v1347
        %v1864 = vunpack.c.l.b16 %v1348
        %v1865 = vunpack.c.l.b16 %v1349
        %v1866 = vunpack.c.l.b16 %v1350
        %v1867 = vunpack.c.l.b16 %v1351
        %v1868 = vunpack.c.l.b16 %v1352
        %v1869 = vunpack.c.l.b16 %v1353
        %v1870 = vunpack.c.l.b16 %v1354
        %v1871 = vunpack.c.l.b16 %v1355
        %v1872 = vunpack.c.l.b16 %v1356
        %v1873 = vunpack.c.l.b16 %v1357
        %v1874 = vunpack.c.l.b16 %v1358
        %v1875 = vunpack.c.l.b16 %v1359
        %v1876 = vunpack.c.l.b16 %v1360
        %v1877 = vunpack.c.l.b16 %v1361
        %v1878 = vunpack.c.l.b16 %v1362
        %v1879 = vunpack.c.l.b16 %v1363
        %v1880 = vunpack.c.l.b16 %v1364
        %v1881 = vunpack.c.l.b16 %v1365
        %v1882 = vunpack.c.l.b16 %v1366
        %v1883 = vunpack.c.l.b16 %v1367
        %v1884 = vunpack.c.l.b16 %v1368
        %v1885 = vunpack.c.l.b16 %v1369
        %v1886 = vunpack.c.l.b16 %v1370
        %v1887 = vunpack.c.l.b16 %v1371
        %v1888 = vunpack.c.l.b16 %v1372
        %v1889 = vunpack.c.l.b16 %v1373
        %v1890 = vunpack.c.l.b16 %v1374
        %v1891 = vunpack.c.l.b16 %v1375
        %v1892 = vunpack.c.l.b16 %v1376
        %v1893 = vunpack.c.l.b16 %v1377
        %v1894 = vunpack.c.l.b16 %v1378
        %v1895 = vunpack.c.l.b16 %v1379
        %v1896 = vunpack.c.l.b16 %v1380
        %v1897 = vunpack.c.l.b16 %v1381
        %v1898 = vunpack.c.l.b16 %v1382
        %v1899 = vunpack.c.l.b16 %v1383
        %v1900 = vunpack.c.l.b16 %v1384
        %v1901 = vunpack.c.l.b16 %v1385
        %v1902 = vunpack.c.l.b16 %v1386
        %v1903 = vunpack.c.l.b16 %v1387
        %v1904 = vunpack.c.l.b16 %v1388
        %v1905 = vunpack.c.l.b16 %v1389
        %v1906 = vunpack.c.l.b16 %v1390
        %v1907 = vunpack.c.l.b16 %v1391
        %v1908 = vunpack.c.l.b16 %v1392
        %v1909 = vunpack.c.l.b16 %v1393
        %v1910 = vunpack.c.l.b16 %v1394
        %v1911 = vunpack.c.l.b16 %v1395
        %v1912 = vunpack.c.l.b16 %v1396
        %v1913 = vunpack.c.l.b16 %v1397
        %v1914 = vunpack.c.l.b16 %v1398
        %v1915 = vunpack.c.l.b16 %v1399
        %v1916 = vunpack.c.l.b16 %v1400
        %v1917 = vunpack.c.l.b16 %v1401
        %v1918 = vunpack.c.l.b16 %v1402
        %v1919 = vunpack.c.l.b16 %v1403
        %v1920 = vunpack.c.l.b16 %v1404
        %v1921 = vunpack.c.l.b16 %v1405
        %v1922 = vunpack.c.l.b16 %v1406
        %v1923 = vunpack.c.l.b16 %v1407
        %v1924 = vunpack.c.l.b16 %v1408
        %v1925 = vunpack.c.l.b16 %v1409
        %v1926 = vunpack.c.l.b16 %v1410
        %v1927 = vunpack.c.l.b16 %v1411
        %v1928 = vunpack.c.l.b16 %v1412
        %v1929 = vunpack.c.l.b16 %v1413
        %v1930 = vunpack.c.l.b16 %v1414
        %v1931 = vunpack.c.l.b16 %v1415
        %v1932 = vunpack.c.l.b16 %v1416
        %v1933 = vunpack.c.l.b16 %v1417
        %v1934 = vunpack.c.l.b16 %v1418
        %v1935 = vunpack.c.l.b16 %v1419
        %v1936 = vunpack.c.l.b16 %v1420
        %v1937 = vunpack.c.l.b16 %v1421
        %v1938 = vunpack.c.l.b16 %v1422
        %v1939 = vunpack.c.l.b16 %v1423
        %v1940 = vunpack.c.l.b16 %v1424
        %v1941 = vunpack.c.l.b16 %v1425
        %v1942 = vunpack.c.l.b16 %v1426
        %v1943 = vunpack.c.l.b16 %v1427
        %v1944 = vunpack.c.l.b16 %v1428
        %v1945 = vunpack.c.l.b16 %v1429
        %v1946 = vunpack.c.l.b16 %v1430
        %v1947 = vunpack.c.l.b16 %v1431
        %v1948 = vunpack.c.l.b16 %v1432
        %v1949 = vunpack.c.l.b16 %v1433
        %v1950 = vunpack.c.l.b16 %v1434
        %v1951 = vunpack.c.l.b16 %v1435
        %v1952 = vunpack.c.l.b16 %v1436
        %v1953 = vunpack.c.l.b16 %v1437
        %v1954 = vunpack.c.l.b16 %v1438
        %v1955 = vunpack.c.l.b16 %v1439
        %v1956 = vunpack.c.l.b16 %v1440
        %v1957 = vunpack.c.l.b16 %v1441
        %v1958 = vunpack.c.l.b16 %v1442
        %v1959 = vunpack.c.l.b16 %v1443
        %v1960 = vunpack.c.l.b16 %v1444
        %v1961 = vunpack.c.l.b16 %v1445
        %v1962 = vunpack.c.l.b16 %v1446
        %v1963 = vunpack.c.l.b16 %v1447
        %v1964 = vunpack.c.l.b16 %v1448
        %v1965 = vunpack.c.l.b16 %v1449
        %v1966 = vunpack.c.l.b16 %v1450
        %v1967 = vunpack.c.l.b16 %v1451
        %v1968 = vunpack.c.l.b16 %v1452
        %v1969 = vunpack.c.l.b16 %v1453
        %v1970 = vunpack.c.l.b16 %v1454
        %v1971 = vunpack.c.l.b16 %v1455
        %v1972 = vunpack.c.l.b16 %v1456
        %v1973 = vunpack.c.l.b16 %v1457
        %v1974 = vunpack.c.l.b16 %v1458
        %v1975 = vunpack.c.l.b16 %v1459
        %v1976 = vunpack.c.l.b16 %v1460
        %v1977 = vunpack.c.l.b16 %v1461
        %v1978 = vunpack.c.l.b16 %v1462
        %v1979 = vunpack.c.l.b16 %v1463
        %v1980 = vunpack.c.l.b16 %v1464
        %v1981 = vunpack.c.l.b16 %v1465
        %v1982 = vunpack.c.l.b16 %v1466
        %v1983 = vunpack.c.l.b16 %v1467
        %v1984 = vunpack.c.l.b16 %v1468
        %v1985 = vunpack.c.l.b16 %v1469
        %v1986 = vunpack.c.l.b16 %v1470
        %v1987 = vunpack.c.l.b16 %v1471
        %v1988 = vunpack.c.l.b16 %v1472
        %v1989 = vunpack.c.l.b16 %v1473
        %v1990 = vunpack.c.l.b16 %v1474
        %v1991 = vunpack.c.l.b16 %v1475
        %v1992 = vunpack.c.l.b16 %v1476
        %v1993 = vunpack.c.l.b16 %v1477
        %v1994 = vunpack.c.l.b16 %v1478
        %v1995 = vunpack.c.l.b16 %v1479
        %v1996 = vunpack.c.l.b16 %v1480
        %v1997 = vunpack.c.l.b16 %v1481
        %v1998 = vunpack.c.l.b16 %v1482
        %v1999 = vunpack.c.l.b16 %v1483
        %v2000 = vunpack.c.l.b16 %v1484
        %v2001 = vunpack.c.l.b16 %v1485
        %v2002 = vunpack.c.l.b16 %v1486
        %v2003 = vunpack.c.l.b16 %v1487
        %v2004 = vunpack.c.l.b16 %v1488
        %v2005 = vunpack.c.l.b16 %v1489
        %v2006 = vunpack.c.l.b16 %v1490
        %v2007 = vunpack.c.l.b16 %v1491
        %v2008 = vunpack.c.l.b16 %v1492
        %v2009 = vunpack.c.l.b16 %v1493
        %v2010 = vunpack.c.l.b16 %v1494
        %v2011 = vunpack.c.l.b16 %v1495
        %v2012 = vunpack.c.l.b16 %v1496
        %v2013 = vunpack.c.l.b16 %v1497
        %v2014 = vunpack.c.l.b16 %v1498
        %v2015 = vunpack.c.l.b16 %v1499
        %v2016 = vunpack.c.l.b16 %v1500
        %v2017 = vunpack.c.l.b16 %v1501
        %v2018 = vunpack.c.l.b16 %v1502
        %v2019 = vunpack.c.l.b16 %v1503
        %v2020 = vunpack.c.l.b16 %v1504
        %v2021 = vunpack.c.l.b16 %v1505
        %v2022 = vunpack.c.l.b16 %v1506
        %v2023 = vunpack.c.l.b16 %v1507
        %v2024 = vunpack.c.l.b16 %v1508
        %v2025 = vunpack.c.l.b16 %v1509
        %v2026 = vunpack.c.l.b16 %v1510
        %v2027 = vunpack.c.l.b16 %v1511
        %v2028 = vunpack.c.l.b16 %v1512
        %v2029 = vunpack.c.l.b16 %v1513
        %v2030 = vunpack.c.l.b16 %v1514
        %v2031 = vunpack.c.l.b16 %v1515
        %v2032 = vunpack.c.l.b16 %v1516
        %v2033 = vunpack.c.l.b16 %v1517
        %v2034 = vunpack.c.l.b16 %v1518
        %v2035 = vunpack.c.l.b16 %v1519
        %v2036 = vunpack.c.l.b16 %v1520
        %v2037 = vunpack.c.l.b16 %v1521
        %v2038 = vunpack.c.l.b16 %v1522
        %v2039 = vunpack.c.l.b16 %v1523
        %v2040 = vunpack.c.l.b16 %v1524
        %v2041 = vunpack.c.l.b16 %v1525
        %v2042 = vunpack.c.l.b16 %v1526
        %v2043 = vunpack.c.l.b16 %v1527
        %v2044 = vunpack.c.l.b16 %v1528
        %v2045 = vunpack.c.l.b16 %v1529
        %v2046 = vunpack.c.l.b16 %v1530
        %v2047 = vunpack.c.l.b16 %v1531
        %v2048 = vunpack.c.l.b16 %v1532
        %v2049 = vunpack.c.l.b16 %v1533
        %v2050 = vunpack.c.l.b16 %v1534
        %v2051 = vunpack.c.l.b16 %v1535
        %v2052 = vunpack.c.l.b16 %v1536
        %v2053 = vunpack.c.l.b16 %v1537
        %v2054 = vunpack.c.l.b16 %v1538
        %v2055 = vunpack.c.l.b16 %v1539
        %v2056 = vunpack.c.l.b16 %v1540
        %v2057 = vunpack.c.l.b16 %v1541
        %v2058 = vunpack.c.l.b16 %v1542
        %v2059 = vunpack.c.l.b16 %v1543
        %v2060 = vunpack.c.l.b16 %v1544
        %v2061 = vunpack.c.l.b16 %v1545
        %v2062 = vunpack.c.l.b16 %v1546
        %v2063 = vunpack.c.l.b16 %v1547
        %v2064 = vunpack.c.l.b16 %v1548
        %v2065 = vunpack.c.l.b16 %v1549
        %v2066 = vunpack.c.l.b16 %v1550
        %v2067 = vunpack.c.l.b16 %v1551
        %v2068 = vunpack.c.l.b16 %v1552
        %v2069 = vunpack.c.l.b16 %v1553
        %v2070 = vunpack.c.l.b16 %v1554
        %v2071 = vpack.c.b16 %v1816, %v1815
        %v2072 = vpack.c.b16 %v1818, %v1817
        %v2073 = vpack.c.b16 %v1820, %v1819
        %v2074 = vpack.c.b16 %v1822, %v1821
        %v2075 = vpack.c.b16 %v1824, %v1823
        %v2076 = vpack.c.b16 %v1826, %v1825
        %v2077 = vpack.c.b16 %v1828, %v1827
        %v2078 = vpack.c.b16 %v1830, %v1829
        %v2079 = vpack.c.b16 %v1832, %v1831
        %v2080 = vpack.c.b16 %v1834, %v1833
        %v2081 = vpack.c.b16 %v1836, %v1835
        %v2082 = vpack.c.b16 %v1838, %v1837
        %v2083 = vpack.c.b16 %v1840, %v1839
        %v2084 = vpack.c.b16 %v1842, %v1841
        %v2085 = vpack.c.b16 %v1844, %v1843
        %v2086 = vpack.c.b16 %v1846, %v1845
        %v2087 = vpack.c.b16 %v1848, %v1847
        %v2088 = vpack.c.b16 %v1850, %v1849
        %v2089 = vpack.c.b16 %v1852, %v1851
        %v2090 = vpack.c.b16 %v1854, %v1853
        %v2091 = vpack.c.b16 %v1856, %v1855
        %v2092 = vpack.c.b16 %v1858, %v1857
        %v2093 = vpack.c.b16 %v1860, %v1859
        %v2094 = vpack.c.b16 %v1862, %v1861
        %v2095 = vpack.c.b16 %v1864, %v1863
        %v2096 = vpack.c.b16 %v1866, %v1865
        %v2097 = vpack.c.b16 %v1868, %v1867
        %v2098 = vpack.c.b16 %v1870, %v1869
        %v2099 = vpack.c.b16 %v1872, %v1871
        %v2100 = vpack.c.b16 %v1874, %v1873
        %v2101 = vpack.c.b16 %v1876, %v1875
        %v2102 = vpack.c.b16 %v1878, %v1877
        %v2103 = vpack.c.b16 %v1880, %v1879
        %v2104 = vpack.c.b16 %v1882, %v1881
        %v2105 = vpack.c.b16 %v1884, %v1883
        %v2106 = vpack.c.b16 %v1886, %v1885
        %v2107 = vpack.c.b16 %v1888, %v1887
        %v2108 = vpack.c.b16 %v1890, %v1889
        %v2109 = vpack.c.b16 %v1892, %v1891
        %v2110 = vpack.c.b16 %v1894, %v1893
        %v2111 = vpack.c.b16 %v1896, %v1895
        %v2112 = vpack.c.b16 %v1898, %v1897
        %v2113 = vpack.c.b16 %v1900, %v1899
        %v2114 = vpack.c.b16 %v1902, %v1901
        %v2115 = vpack.c.b16 %v1904, %v1903
        %v2116 = vpack.c.b16 %v1906, %v1905
        %v2117 = vpack.c.b16 %v1908, %v1907
        %v2118 = vpack.c.b16 %v1910, %v1909
        %v2119 = vpack.c.b16 %v1912, %v1911
        %v2120 = vpack.c.b16 %v1914, %v1913
        %v2121 = vpack.c.b16 %v1916, %v1915
        %v2122 = vpack.c.b16 %v1918, %v1917
        %v2123 = vpack.c.b16 %v1920, %v1919
        %v2124 = vpack.c.b16 %v1922, %v1921
        %v2125 = vpack.c.b16 %v1924, %v1923
        %v2126 = vpack.c.b16 %v1926, %v1925
        %v2127 = vpack.c.b16 %v1928, %v1927
        %v2128 = vpack.c.b16 %v1930, %v1929
        %v2129 = vpack.c.b16 %v1932, %v1931
        %v2130 = vpack.c.b16 %v1934, %v1933
        %v2131 = vpack.c.b16 %v1936, %v1935
        %v2132 = vpack.c.b16 %v1938, %v1937
        %v2133 = vpack.c.b16 %v1940, %v1939
        %v2134 = vpack.c.b16 %v1942, %v1941
        %v2135 = vpack.c.b16 %v1944, %v1943
        %v2136 = vpack.c.b16 %v1946, %v1945
        %v2137 = vpack.c.b16 %v1948, %v1947
        %v2138 = vpack.c.b16 %v1950, %v1949
        %v2139 = vpack.c.b16 %v1952, %v1951
        %v2140 = vpack.c.b16 %v1954, %v1953
        %v2141 = vpack.c.b16 %v1956, %v1955
        %v2142 = vpack.c.b16 %v1958, %v1957
        %v2143 = vpack.c.b16 %v1960, %v1959
        %v2144 = vpack.c.b16 %v1962, %v1961
        %v2145 = vpack.c.b16 %v1964, %v1963
        %v2146 = vpack.c.b16 %v1966, %v1965
        %v2147 = vpack.c.b16 %v1968, %v1967
        %v2148 = vpack.c.b16 %v1970, %v1969
        %v2149 = vpack.c.b16 %v1972, %v1971
        %v2150 = vpack.c.b16 %v1974, %v1973
        %v2151 = vpack.c.b16 %v1976, %v1975
        %v2152 = vpack.c.b16 %v1978, %v1977
        %v2153 = vpack.c.b16 %v1980, %v1979
        %v2154 = vpack.c.b16 %v1982, %v1981
        %v2155 = vpack.c.b16 %v1984, %v1983
        %v2156 = vpack.c.b16 %v1986, %v1985
        %v2157 = vpack.c.b16 %v1988, %v1987
        %v2158 = vpack.c.b16 %v1990, %v1989
        %v2159 = vpack.c.b16 %v1992, %v1991
        %v2160 = vpack.c.b16 %v1994, %v1993
        %v2161 = vpack.c.b16 %v1996, %v1995
        %v2162 = vpack.c.b16 %v1998, %v1997
        %v2163 = vpack.c.b16 %v2000, %v1999
        %v2164 = vpack.c.b16 %v2002, %v2001
        %v2165 = vpack.c.b16 %v2004, %v2003
        %v2166 = vpack.c.b16 %v2006, %v2005
        %v2167 = vpack.c.b16 %v2008, %v2007
        %v2168 = vpack.c.b16 %v2010, %v2009
        %v2169 = vpack.c.b16 %v2012, %v2011
        %v2170 = vpack.c.b16 %v2014, %v2013
        %v2171 = vpack.c.b16 %v2016, %v2015
        %v2172 = vpack.c.b16 %v2018, %v2017
        %v2173 = vpack.c.b16 %v2020, %v2019
        %v2174 = vpack.c.b16 %v2022, %v2021
        %v2175 = vpack.c.b16 %v2024, %v2023
        %v2176 = vpack.c.b16 %v2026, %v2025
        %v2177 = vpack.c.b16 %v2028, %v2027
        %v2178 = vpack.c.b16 %v2030, %v2029
        %v2179 = vpack.c.b16 %v2032, %v2031
        %v2180 = vpack.c.b16 %v2034, %v2033
        %v2181 = vpack.c.b16 %v2036, %v2035
        %v2182 = vpack.c.b16 %v2038, %v2037
        %v2183 = vpack.c.b16 %v2040, %v2039
        %v2184 = vpack.c.b16 %v2042, %v2041
        %v2185 = vpack.c.b16 %v2044, %v2043
        %v2186 = vpack.c.b16 %v2046, %v2045
        %v2187 = vpack.c.b16 %v2048, %v2047
        %v2188 = vpack.c.b16 %v2050, %v2049
        %v2189 = vpack.c.b16 %v2052, %v2051
        %v2190 = vpack.c.b16 %v2054, %v2053
        %v2191 = vpack.c.b16 %v2056, %v2055
        %v2192 = vpack.c.b16 %v2058, %v2057
        %v2193 = vpack.c.b16 %v2060, %v2059
        %v2194 = vpack.c.b16 %v2062, %v2061
        %v2195 = vpack.c.b16 %v2064, %v2063
        %v2196 = vpack.c.b16 %v2066, %v2065
        %v2197 = vpack.c.b16 %v2068, %v2067
        %v2198 = vpack.c.b16 %v2070, %v2069
        %2327 = vmatpush.bf16.msra.mxu0 %v2078
        %2328 = vmatpush.bf16.msra.mxu0 %v2077
        %2329 = vmatpush.bf16.msra.mxu0 %v2076
        %2330 = vmatpush.bf16.msra.mxu0 %v2075
        %2331 = vmatpush.bf16.msra.mxu0 %v2074
        %2332 = vmatpush.bf16.msra.mxu0 %v2073
        %2333 = vmatpush.bf16.msra.mxu0 %v2072
        %2334 = vmatpush.bf16.msra.mxu0 %v2071
        %2335 = vmatmul.bf16.gmra.mxu0 %v1283
        %v2336 = vpop.f32.mrf.mxu0
        %v2337 = vadd.f32 %v1557, %v2336
        %v2338 = vpop.f32.mrf.mxu0
        %2339 = vdwg.mxu0
        %2340 = vmatpush.bf16.msra.mxu0 %v2086
        %2341 = vmatpush.bf16.msra.mxu0 %v2085
        %2342 = vmatpush.bf16.msra.mxu0 %v2084
        %2343 = vmatpush.bf16.msra.mxu0 %v2083
        %2344 = vmatpush.bf16.msra.mxu0 %v2082
        %2345 = vmatpush.bf16.msra.mxu0 %v2081
        %2346 = vmatpush.bf16.msra.mxu0 %v2080
        %2347 = vmatpush.bf16.msra.mxu0 %v2079
        %2348 = vmatmul.bf16.gmra.mxu0 %v1284
        %v2349 = vpop.f32.mrf.mxu0
        %v2350 = vadd.f32 %v2337, %v2349
        %v2351 = vpop.f32.mrf.mxu0
        %2352 = vdwg.mxu0
        %2353 = vmatpush.bf16.msra.mxu0 %v2094
        %2354 = vmatpush.bf16.msra.mxu0 %v2093
        %2355 = vmatpush.bf16.msra.mxu0 %v2092
        %2356 = vmatpush.bf16.msra.mxu0 %v2091
        %2357 = vmatpush.bf16.msra.mxu0 %v2090
        %2358 = vmatpush.bf16.msra.mxu0 %v2089
        %2359 = vmatpush.bf16.msra.mxu0 %v2088
        %2360 = vmatpush.bf16.msra.mxu0 %v2087
        %2361 = vmatmul.bf16.gmra.mxu0 %v1285
        %v2362 = vpop.f32.mrf.mxu0
        %v2363 = vadd.f32 %v2350, %v2362
        %v2364 = vpop.f32.mrf.mxu0
        %2365 = vdwg.mxu0
        %2366 = vmatpush.bf16.msra.mxu0 %v2102
        %2367 = vmatpush.bf16.msra.mxu0 %v2101
        %2368 = vmatpush.bf16.msra.mxu0 %v2100
        %2369 = vmatpush.bf16.msra.mxu0 %v2099
        %2370 = vmatpush.bf16.msra.mxu0 %v2098
        %2371 = vmatpush.bf16.msra.mxu0 %v2097
        %2372 = vmatpush.bf16.msra.mxu0 %v2096
        %2373 = vmatpush.bf16.msra.mxu0 %v2095
        %2374 = vmatmul.bf16.gmra.mxu0 %v1286
        %v2375 = vpop.f32.mrf.mxu0
        %v2376 = vadd.f32 %v2363, %v2375
        %v2377 = vpop.f32.mrf.mxu0
        %2378 = vdwg.mxu0
        %2379 = vmatpush.bf16.msra.mxu0 %v2110
        %2380 = vmatpush.bf16.msra.mxu0 %v2109
        %2381 = vmatpush.bf16.msra.mxu0 %v2108
        %2382 = vmatpush.bf16.msra.mxu0 %v2107
        %2383 = vmatpush.bf16.msra.mxu0 %v2106
        %2384 = vmatpush.bf16.msra.mxu0 %v2105
        %2385 = vmatpush.bf16.msra.mxu0 %v2104
        %2386 = vmatpush.bf16.msra.mxu0 %v2103
        %2387 = vmatmul.bf16.gmra.mxu0 %v1287
        %v2388 = vpop.f32.mrf.mxu0
        %v2389 = vadd.f32 %v2376, %v2388
        %v2390 = vpop.f32.mrf.mxu0
        %2391 = vdwg.mxu0
        %2392 = vmatpush.bf16.msra.mxu0 %v2118
        %2393 = vmatpush.bf16.msra.mxu0 %v2117
        %2394 = vmatpush.bf16.msra.mxu0 %v2116
        %2395 = vmatpush.bf16.msra.mxu0 %v2115
        %2396 = vmatpush.bf16.msra.mxu0 %v2114
        %2397 = vmatpush.bf16.msra.mxu0 %v2113
        %2398 = vmatpush.bf16.msra.mxu0 %v2112
        %2399 = vmatpush.bf16.msra.mxu0 %v2111
        %2400 = vmatmul.bf16.gmra.mxu0 %v1288
        %v2401 = vpop.f32.mrf.mxu0
        %v2402 = vadd.f32 %v2389, %v2401
        %v2403 = vpop.f32.mrf.mxu0
        %2404 = vdwg.mxu0
        %2405 = vmatpush.bf16.msra.mxu0 %v2126
        %2406 = vmatpush.bf16.msra.mxu0 %v2125
        %2407 = vmatpush.bf16.msra.mxu0 %v2124
        %2408 = vmatpush.bf16.msra.mxu0 %v2123
        %2409 = vmatpush.bf16.msra.mxu0 %v2122
        %2410 = vmatpush.bf16.msra.mxu0 %v2121
        %2411 = vmatpush.bf16.msra.mxu0 %v2120
        %2412 = vmatpush.bf16.msra.mxu0 %v2119
        %2413 = vmatmul.bf16.gmra.mxu0 %v1289
        %v2414 = vpop.f32.mrf.mxu0
        %v2415 = vadd.f32 %v2402, %v2414
        %v2416 = vpop.f32.mrf.mxu0
        %2417 = vdwg.mxu0
        %2418 = vmatpush.bf16.msra.mxu0 %v2134
        %2419 = vmatpush.bf16.msra.mxu0 %v2133
        %2420 = vmatpush.bf16.msra.mxu0 %v2132
        %2421 = vmatpush.bf16.msra.mxu0 %v2131
        %2422 = vmatpush.bf16.msra.mxu0 %v2130
        %2423 = vmatpush.bf16.msra.mxu0 %v2129
        %2424 = vmatpush.bf16.msra.mxu0 %v2128
        %2425 = vmatpush.bf16.msra.mxu0 %v2127
        %2426 = vmatmul.bf16.gmra.mxu0 %v1290
        %v2427 = vpop.f32.mrf.mxu0
        %v2428 = vadd.f32 %v2415, %v2427
        %v2429 = vpop.f32.mrf.mxu0
        %2430 = vdwg.mxu0
        %2431 = vmatpush.bf16.msra.mxu0 %v2142
        %2432 = vmatpush.bf16.msra.mxu0 %v2141
        %2433 = vmatpush.bf16.msra.mxu0 %v2140
        %2434 = vmatpush.bf16.msra.mxu0 %v2139
        %2435 = vmatpush.bf16.msra.mxu0 %v2138
        %2436 = vmatpush.bf16.msra.mxu0 %v2137
        %2437 = vmatpush.bf16.msra.mxu0 %v2136
        %2438 = vmatpush.bf16.msra.mxu0 %v2135
        %2439 = vmatmul.bf16.gmra.mxu0 %v1291
        %v2440 = vpop.f32.mrf.mxu0
        %v2441 = vadd.f32 %v2428, %v2440
        %v2442 = vpop.f32.mrf.mxu0
        %2443 = vdwg.mxu0
        %2444 = vmatpush.bf16.msra.mxu0 %v2150
        %2445 = vmatpush.bf16.msra.mxu0 %v2149
        %2446 = vmatpush.bf16.msra.mxu0 %v2148
        %2447 = vmatpush.bf16.msra.mxu0 %v2147
        %2448 = vmatpush.bf16.msra.mxu0 %v2146
        %2449 = vmatpush.bf16.msra.mxu0 %v2145
        %2450 = vmatpush.bf16.msra.mxu0 %v2144
        %2451 = vmatpush.bf16.msra.mxu0 %v2143
        %2452 = vmatmul.bf16.gmra.mxu0 %v1292
        %v2453 = vpop.f32.mrf.mxu0
        %v2454 = vadd.f32 %v2441, %v2453
        %v2455 = vpop.f32.mrf.mxu0
        %2456 = vdwg.mxu0
        %2457 = vmatpush.bf16.msra.mxu0 %v2158
        %2458 = vmatpush.bf16.msra.mxu0 %v2157
        %2459 = vmatpush.bf16.msra.mxu0 %v2156
        %2460 = vmatpush.bf16.msra.mxu0 %v2155
        %2461 = vmatpush.bf16.msra.mxu0 %v2154
        %2462 = vmatpush.bf16.msra.mxu0 %v2153
        %2463 = vmatpush.bf16.msra.mxu0 %v2152
        %2464 = vmatpush.bf16.msra.mxu0 %v2151
        %2465 = vmatmul.bf16.gmra.mxu0 %v1293
        %v2466 = vpop.f32.mrf.mxu0
        %v2467 = vadd.f32 %v2454, %v2466
        %v2468 = vpop.f32.mrf.mxu0
        %2469 = vdwg.mxu0
        %2470 = vmatpush.bf16.msra.mxu0 %v2166
        %2471 = vmatpush.bf16.msra.mxu0 %v2165
        %2472 = vmatpush.bf16.msra.mxu0 %v2164
        %2473 = vmatpush.bf16.msra.mxu0 %v2163
        %2474 = vmatpush.bf16.msra.mxu0 %v2162
        %2475 = vmatpush.bf16.msra.mxu0 %v2161
        %2476 = vmatpush.bf16.msra.mxu0 %v2160
        %2477 = vmatpush.bf16.msra.mxu0 %v2159
        %2478 = vmatmul.bf16.gmra.mxu0 %v1294
        %v2479 = vpop.f32.mrf.mxu0
        %v2480 = vadd.f32 %v2467, %v2479
        %v2481 = vpop.f32.mrf.mxu0
        %2482 = vdwg.mxu0
        %2483 = vmatpush.bf16.msra.mxu0 %v2174
        %2484 = vmatpush.bf16.msra.mxu0 %v2173
        %2485 = vmatpush.bf16.msra.mxu0 %v2172
        %2486 = vmatpush.bf16.msra.mxu0 %v2171
        %2487 = vmatpush.bf16.msra.mxu0 %v2170
        %2488 = vmatpush.bf16.msra.mxu0 %v2169
        %2489 = vmatpush.bf16.msra.mxu0 %v2168
        %2490 = vmatpush.bf16.msra.mxu0 %v2167
        %2491 = vmatmul.bf16.gmra.mxu0 %v1295
        %v2492 = vpop.f32.mrf.mxu0
        %v2493 = vadd.f32 %v2480, %v2492
        %v2494 = vpop.f32.mrf.mxu0
        %2495 = vdwg.mxu0
        %2496 = vmatpush.bf16.msra.mxu0 %v2182
        %2497 = vmatpush.bf16.msra.mxu0 %v2181
        %2498 = vmatpush.bf16.msra.mxu0 %v2180
        %2499 = vmatpush.bf16.msra.mxu0 %v2179
        %2500 = vmatpush.bf16.msra.mxu0 %v2178
        %2501 = vmatpush.bf16.msra.mxu0 %v2177
        %2502 = vmatpush.bf16.msra.mxu0 %v2176
        %2503 = vmatpush.bf16.msra.mxu0 %v2175
        %2504 = vmatmul.bf16.gmra.mxu0 %v1296
        %v2505 = vpop.f32.mrf.mxu0
        %v2506 = vadd.f32 %v2493, %v2505
        %v2507 = vpop.f32.mrf.mxu0
        %2508 = vdwg.mxu0
        %2509 = vmatpush.bf16.msra.mxu0 %v2190
        %2510 = vmatpush.bf16.msra.mxu0 %v2189
        %2511 = vmatpush.bf16.msra.mxu0 %v2188
        %2512 = vmatpush.bf16.msra.mxu0 %v2187
        %2513 = vmatpush.bf16.msra.mxu0 %v2186
        %2514 = vmatpush.bf16.msra.mxu0 %v2185
        %2515 = vmatpush.bf16.msra.mxu0 %v2184
        %2516 = vmatpush.bf16.msra.mxu0 %v2183
        %2517 = vmatmul.bf16.gmra.mxu0 %v1297
        %v2518 = vpop.f32.mrf.mxu0
        %v2519 = vadd.f32 %v2506, %v2518
        %v2520 = vpop.f32.mrf.mxu0
        %2521 = vdwg.mxu0
        %2522 = vmatpush.bf16.msra.mxu0 %v2198
        %2523 = vmatpush.bf16.msra.mxu0 %v2197
        %2524 = vmatpush.bf16.msra.mxu0 %v2196
        %2525 = vmatpush.bf16.msra.mxu0 %v2195
        %2526 = vmatpush.bf16.msra.mxu0 %v2194
        %2527 = vmatpush.bf16.msra.mxu0 %v2193
        %2528 = vmatpush.bf16.msra.mxu0 %v2192
        %2529 = vmatpush.bf16.msra.mxu0 %v2191
        %2530 = vmatmul.bf16.gmra.mxu0 %v1298
        %v2531 = vpop.f32.mrf.mxu0
        %v2532 = vadd.f32 %v2519, %v2531
        %v2533 = vpop.f32.mrf.mxu0
        %2534 = vdwg.mxu0
        %v2535 = vunpack.c.l.bf16 %v254
        %v2536 = vadd.f32 %v2532, %v2535
        %2537 = vadd.xlane.f32.xlu0 %v2536
        %v2538 = vpop.xlane.xlu0 %2537
        %v2539 = vrcp.pop 128.0
        %v2540 = vmul.f32 128.0, %v2539
        %v2541 = vsub.f32 1.0, %v2540
        %v2542 = vmul.f32 %v2539, %v2541
        %v2543 = vadd.f32 %v2539, %v2542
        %vm2544 = vweird.f32 %v2539
        %v2545 = vsel %vm2544, %v2539, %v2543
        %v2546 = vmul.f32 %v2538, %v2545
        %v2547 = vsub.f32 %v2536, %v2546
        %v2548 = vmul.f32 %v2547, %v2547
        %2549 = vadd.xlane.f32.xlu0 %v2548
        %v2550 = vpop.xlane.xlu0 %2549
        %v2551 = vmul.f32 %v2550, %v2545
        %v2552 = vadd.f32 %v2551, 1e-05
        %v2553 = vrsqrt.pop %v2552
        %v2554 = vmul.f32 %v2553, %v2552
        %v2555 = vmul.f32 %v2554, %v2553
        %v2556 = vmul.f32 0.5, %v2555
        %v2557 = vsub.f32 1.5, %v2556
        %v2558 = vmul.f32 %v2553, %v2557
        %vm2559 = vweird.f32 %v2552
        %vm2560 = vweird.f32 %v2553
        %vm2561 = vmor %vm2559, %vm2560
        %v2562 = vsel %vm2561, %v2553, %v2558
        %v2563 = vmul.f32 %v2547, %v2562
        %2564 = vst [vmem:[%s249] sm:$0xff] %v2563
        %s2565 = sand.u32 %s139, 1
        %s2566 = scalar_lea.sflag [#allocation4], %s2565
        %s2567 = sand.u32 %s139, 1
        %s2568 = smul.addr %s2567, 8
        %s2569 = scalar_lea.vmem [#allocation7], %s2568
        // Predicated region
        $region49: #{_lambda_.5} parent=39 // pred_check
          %p2570 = pneg %p149
        $region50: #{_lambda_.5} parent=39 // pred_check_branch
          %2572 = sbr.rel (%p2570) target = $region52
        $region51: #{_lambda_.5} parent=39 // pred_region
          %2574 = vsyncadd %s2566, 0
          %s2575 = smul.addr %s21, 8
          %s2576 = scalar_lea.hbm %s5, %s2575
          %s2578 = sshll.u32 %s2569, 4
          %s2579 = int_to_ptr.vmem [resolvable:$true] %s2578
          %s2580 = sshll.u32 %s2576, 4
          %s2581 = int_to_ptr.hbm [resolvable:$true] %s2580
          %2583 = dma.vmem_to_hbm [thread:$0]  %s2579, 128, %s2581, %s2566
        $region52: #{_lambda_.5} parent=39 // pred_fallthru
          _
      $region40: #{_lambda_.5} parent=5 // pred_fallthru
        _
      %p2584 = scmp.le.s32.totalorder 2, %s16
      // Predicated region
      $region53: #{_lambda_.5} parent=5 // pred_check
        %p2585 = pneg %p2584
      $region54: #{_lambda_.5} parent=5 // pred_check_branch
        %2587 = sbr.rel (%p2585) target = $region56
      $region55: #{_lambda_.5} parent=5 // pred_region
        %s2588 = ssub.s32 %s16, 2
        // Predicated region
        $region57: #{_lambda_.5} parent=55 // pred_check
          %p2589 = pneg %p155
        $region58: #{_lambda_.5} parent=55 // pred_check_branch
          %2591 = sbr.rel (%p2589) target = $region60
        $region59: #{_lambda_.5} parent=55 // pred_region
          %s2592 = sand.u32 %s140, 1
          %s2593 = scalar_lea.sflag [#allocation4], %s2592
          %s2594 = sand.u32 %s140, 1
          %s2595 = smul.addr %s2594, 8
          %s2596 = scalar_lea.vmem [#allocation7], %s2595
          %2598 = dma.done %s2593, 128
        $region60: #{_lambda_.5} parent=55 // pred_fallthru
          _
      $region56: #{_lambda_.5} parent=5 // pred_fallthru
        _
    $region6: #{_lambda_.5} parent=1 // loop_footer
      %s20 = sadd.s32 1, %s16
    $region7: #{_lambda_.5} parent=1 // loop_footer_branch
      %15 = sbr.rel target = $region3
    $region8: #{_lambda_.5} parent=1 // loop_exit
      _
    %2599 = vsyncpa [#allocation3], 1
    %s2600 = scalar_lea.sflag [#allocation3], 1
    %2601 = vsyncpa %s2600, 1
    %2602 = vsyncpa [#allocation6], 1
    %2603 = vsyncpa [#allocation4], 1
    %s2604 = scalar_lea.sflag [#allocation4], 1
    %2605 = vsyncpa %s2604, 1

// kernel: _lambda_.4
$region0: #{_lambda_.4}
  #allocation0 [shape = 'u32[]', space=smem, size = 0x4, offset = 0x4, fixed_abs, tag = 'smem constant byte address 0x4 - core index']
  #allocation1 [shape = 'u32[72,128]{1,0:T(1,128)}', space=vmem, size = 0x9000, scoped, tag = 'internal scratch']
  %s0 = inlined_call_operand.vmem [shape: bf16[2,8,128], index: 0, kind: input, shape index: {}]
  %s1 = inlined_call_operand.vmem [shape: bf16[2,16,2048], index: 1, kind: input, shape index: {}]
  %s2 = inlined_call_operand.vmem [shape: s8[2,8,16], index: 2, kind: input, shape index: {}]
  %s3 = inlined_call_operand.vmem [shape: bf16[128,128], index: 3, kind: input, shape index: {}]
  %s4 = inlined_call_operand.vmem [shape: f32[1,128], index: 4, kind: input, shape index: {}]
  %s5 = inlined_call_operand.hbm [shape: bf16[2048,256], index: 5, kind: input, shape index: {}]
  %s6 = inlined_call_operand.vmem [shape: f32[1,256], index: 6, kind: input, shape index: {}]
  %s7 = inlined_call_operand.vmem [shape: bf16[128,128], index: 7, kind: input, shape index: {}]
  %s8 = inlined_call_operand.vmem [shape: f32[1,128], index: 8, kind: input, shape index: {}]
  %s9 = inlined_call_operand.vmem [shape: bf16[2,8,128], index: 9, kind: output, shape index: {0}]
  %s10 = inlined_call_operand.hbm [shape: f32[2,2,8,16], index: 10, kind: output, shape index: {1}]
  %11 = xla_tuple %s9, %s10
  %s12 = sld [smem:[#allocation0]]
  $region81: #{_lambda_.4} parent=0
    _
  %s14 = ssub.s32 1, %s12
  %s15 = scalar_select 0, %s14, %s12
  $region1: #{_lambda_.4} parent=0
    #allocation2 [shape = 'u8[1048576]{0}', space=vmem, size = 0x100000, scoped, tag = 'input window, operand 5, single buffered']
    #allocation3 [shape = 's32[2]{0}', space=sflag, size = 0x8, scoped, tag = 'scoped memory for _lambda_.4']
    #allocation4 [shape = 's32[2]{0}', space=sflag, size = 0x8, scoped, tag = 'scoped memory for _lambda_.4']
    #allocation5 [shape = 'u8[16384]{0}', space=vmem, size = 0x4000, scoped, tag = 'output window, operand 1']
    %16 = vsyncpa [#allocation3], 0
    %17 = vsyncpa [#allocation4], 0
    %s18 = scalar_lea.sflag [#allocation4], 1
    %19 = vsyncpa %s18, 0
    loop: start=0, step=1, limit=4
    $region2: #{_lambda_.4} parent=1 // loop_pre_header
      _
    $region3: #{_lambda_.4} parent=1 // loop_header
      %s21 = sphi 0, %s25
      %p22 = scmp.ge.s32.totalorder %s21, 4
      %s31 = sphi 0, %s33
      %s34 = sphi 0, %s31
      %s35 = sphi 0, %s34
      %s51 = sphi 0, %s35
      %s57 = sphi 0, %s59
      %s60 = sphi 0, %s57
      %s61 = sphi 0, %s60
      %s77 = sphi 0, %s61
      %s83 = sphi 0, %s85
      %s86 = sphi 0, %s83
      %s87 = sphi 0, %s86
      %s103 = sphi 0, %s87
      %s107 = sphi 0, %s107
      %s109 = sphi 0, %s107
      %s110 = sphi 0, %s109
      %s124 = sphi 0, %s110
      %s128 = sphi 0, %s128
      %s130 = sphi 0, %s128
      %s131 = sphi 0, %s130
      %s145 = sphi 0, %s131
      %s149 = sphi 0, %s149
      %s151 = sphi 0, %s149
      %s152 = sphi 0, %s151
      %s166 = sphi 0, %s152
      %s170 = sphi 0, %s170
      %s172 = sphi 0, %s170
      %s173 = sphi 0, %s172
      %s187 = sphi 0, %s173
      %s191 = sphi 0, %s191
      %s193 = sphi 0, %s191
      %s194 = sphi 0, %s193
      %s208 = sphi 0, %s194
      %s212 = sphi 0, %s212
      %s214 = sphi 0, %s212
      %s215 = sphi 0, %s214
      %s229 = sphi 0, %s215
      %s235 = sphi 0, %s237
      %s238 = sphi 0, %s235
      %s239 = sphi 0, %s238
      %s255 = sphi 0, %s239
      %s261 = sphi 0, %s263
      %s264 = sphi 0, %s261
      %s265 = sphi 0, %s264
      %s281 = sphi 0, %s265
    $region4: #{_lambda_.4} parent=1 // loop_header_branch
      %24 = sbr.rel (%p22) target = $region8
    $region5: #{_lambda_.4} parent=1 // loop_body
      %s26 = ssub.s32 %s21, 1
      %s27 = ssub.s32 %s21, 2
      %s28 = sadd.s32 %s21, 1
      %s29 = ssub.s32 %s21, %s28
      %p30 = scmp.eq.s32.totalorder %s29, 0
      %s32 = sadd.s32 %s31, 1
      %s33 = scalar_select %p30, %s31, %s32
      %p36 = pneg %p30
      %p37 = scmp.eq.s32.totalorder %s21, 1
      %p38 = por %p36, %p37
      %p39 = scmp.ne.s32.totalorder %s31, %s34
      %p40 = scmp.eq.s32.totalorder %s21, 0
      %p41 = por %p39, %p40
      %p42 = scmp.ne.s32.totalorder %s31, %s34
      %p43 = scmp.eq.s32.totalorder %s26, 1
      %p44 = por %p42, %p43
      %p45 = scmp.ne.s32.totalorder %s34, %s35
      %p46 = scmp.eq.s32.totalorder %s26, 0
      %p47 = por %p45, %p46
      %p48 = scmp.ne.s32.totalorder %s34, %s35
      %p49 = scmp.eq.s32.totalorder %s27, 1
      %p50 = por %p48, %p49
      %p52 = scmp.ne.s32.totalorder %s35, %s51
      %p53 = scmp.eq.s32.totalorder %s27, 0
      %p54 = por %p52, %p53
      %s55 = ssub.s32 %s21, %s28
      %p56 = scmp.eq.s32.totalorder %s55, 0
      %s58 = sadd.s32 %s57, 1
      %s59 = scalar_select %p56, %s57, %s58
      %p62 = pneg %p56
      %p63 = scmp.eq.s32.totalorder %s21, 1
      %p64 = por %p62, %p63
      %p65 = scmp.ne.s32.totalorder %s57, %s60
      %p66 = scmp.eq.s32.totalorder %s21, 0
      %p67 = por %p65, %p66
      %p68 = scmp.ne.s32.totalorder %s57, %s60
      %p69 = scmp.eq.s32.totalorder %s26, 1
      %p70 = por %p68, %p69
      %p71 = scmp.ne.s32.totalorder %s60, %s61
      %p72 = scmp.eq.s32.totalorder %s26, 0
      %p73 = por %p71, %p72
      %p74 = scmp.ne.s32.totalorder %s60, %s61
      %p75 = scmp.eq.s32.totalorder %s27, 1
      %p76 = por %p74, %p75
      %p78 = scmp.ne.s32.totalorder %s61, %s77
      %p79 = scmp.eq.s32.totalorder %s27, 0
      %p80 = por %p78, %p79
      %s81 = ssub.s32 %s21, %s28
      %p82 = scmp.eq.s32.totalorder %s81, 0
      %s84 = sadd.s32 %s83, 1
      %s85 = scalar_select %p82, %s83, %s84
      %p88 = pneg %p82
      %p89 = scmp.eq.s32.totalorder %s21, 1
      %p90 = por %p88, %p89
      %p91 = scmp.ne.s32.totalorder %s83, %s86
      %p92 = scmp.eq.s32.totalorder %s21, 0
      %p93 = por %p91, %p92
      %p94 = scmp.ne.s32.totalorder %s83, %s86
      %p95 = scmp.eq.s32.totalorder %s26, 1
      %p96 = por %p94, %p95
      %p97 = scmp.ne.s32.totalorder %s86, %s87
      %p98 = scmp.eq.s32.totalorder %s26, 0
      %p99 = por %p97, %p98
      %p100 = scmp.ne.s32.totalorder %s86, %s87
      %p101 = scmp.eq.s32.totalorder %s27, 1
      %p102 = por %p100, %p101
      %p104 = scmp.ne.s32.totalorder %s87, %s103
      %p105 = scmp.eq.s32.totalorder %s27, 0
      %p106 = por %p104, %p105
      %s108 = sadd.s32 %s107, 1
      %p111 = scmp.eq.s32.totalorder %s21, 1
      %p112 = scmp.ne.s32.totalorder %s107, %s109
      %p113 = scmp.eq.s32.totalorder %s21, 0
      %p114 = por %p112, %p113
      %p115 = scmp.ne.s32.totalorder %s107, %s109
      %p116 = scmp.eq.s32.totalorder %s26, 1
      %p117 = por %p115, %p116
      %p118 = scmp.ne.s32.totalorder %s109, %s110
      %p119 = scmp.eq.s32.totalorder %s26, 0
      %p120 = por %p118, %p119
      %p121 = scmp.ne.s32.totalorder %s109, %s110
      %p122 = scmp.eq.s32.totalorder %s27, 1
      %p123 = por %p121, %p122
      %p125 = scmp.ne.s32.totalorder %s110, %s124
      %p126 = scmp.eq.s32.totalorder %s27, 0
      %p127 = por %p125, %p126
      %s129 = sadd.s32 %s128, 1
      %p132 = scmp.eq.s32.totalorder %s21, 1
      %p133 = scmp.ne.s32.totalorder %s128, %s130
      %p134 = scmp.eq.s32.totalorder %s21, 0
      %p135 = por %p133, %p134
      %p136 = scmp.ne.s32.totalorder %s128, %s130
      %p137 = scmp.eq.s32.totalorder %s26, 1
      %p138 = por %p136, %p137
      %p139 = scmp.ne.s32.totalorder %s130, %s131
      %p140 = scmp.eq.s32.totalorder %s26, 0
      %p141 = por %p139, %p140
      %p142 = scmp.ne.s32.totalorder %s130, %s131
      %p143 = scmp.eq.s32.totalorder %s27, 1
      %p144 = por %p142, %p143
      %p146 = scmp.ne.s32.totalorder %s131, %s145
      %p147 = scmp.eq.s32.totalorder %s27, 0
      %p148 = por %p146, %p147
      %s150 = sadd.s32 %s149, 1
      %p153 = scmp.eq.s32.totalorder %s21, 1
      %p154 = scmp.ne.s32.totalorder %s149, %s151
      %p155 = scmp.eq.s32.totalorder %s21, 0
      %p156 = por %p154, %p155
      %p157 = scmp.ne.s32.totalorder %s149, %s151
      %p158 = scmp.eq.s32.totalorder %s26, 1
      %p159 = por %p157, %p158
      %p160 = scmp.ne.s32.totalorder %s151, %s152
      %p161 = scmp.eq.s32.totalorder %s26, 0
      %p162 = por %p160, %p161
      %p163 = scmp.ne.s32.totalorder %s151, %s152
      %p164 = scmp.eq.s32.totalorder %s27, 1
      %p165 = por %p163, %p164
      %p167 = scmp.ne.s32.totalorder %s152, %s166
      %p168 = scmp.eq.s32.totalorder %s27, 0
      %p169 = por %p167, %p168
      %s171 = sadd.s32 %s170, 1
      %p174 = scmp.eq.s32.totalorder %s21, 1
      %p175 = scmp.ne.s32.totalorder %s170, %s172
      %p176 = scmp.eq.s32.totalorder %s21, 0
      %p177 = por %p175, %p176
      %p178 = scmp.ne.s32.totalorder %s170, %s172
      %p179 = scmp.eq.s32.totalorder %s26, 1
      %p180 = por %p178, %p179
      %p181 = scmp.ne.s32.totalorder %s172, %s173
      %p182 = scmp.eq.s32.totalorder %s26, 0
      %p183 = por %p181, %p182
      %p184 = scmp.ne.s32.totalorder %s172, %s173
      %p185 = scmp.eq.s32.totalorder %s27, 1
      %p186 = por %p184, %p185
      %p188 = scmp.ne.s32.totalorder %s173, %s187
      %p189 = scmp.eq.s32.totalorder %s27, 0
      %p190 = por %p188, %p189
      %s192 = sadd.s32 %s191, 1
      %p195 = scmp.eq.s32.totalorder %s21, 1
      %p196 = scmp.ne.s32.totalorder %s191, %s193
      %p197 = scmp.eq.s32.totalorder %s21, 0
      %p198 = por %p196, %p197
      %p199 = scmp.ne.s32.totalorder %s191, %s193
      %p200 = scmp.eq.s32.totalorder %s26, 1
      %p201 = por %p199, %p200
      %p202 = scmp.ne.s32.totalorder %s193, %s194
      %p203 = scmp.eq.s32.totalorder %s26, 0
      %p204 = por %p202, %p203
      %p205 = scmp.ne.s32.totalorder %s193, %s194
      %p206 = scmp.eq.s32.totalorder %s27, 1
      %p207 = por %p205, %p206
      %p209 = scmp.ne.s32.totalorder %s194, %s208
      %p210 = scmp.eq.s32.totalorder %s27, 0
      %p211 = por %p209, %p210
      %s213 = sadd.s32 %s212, 1
      %p216 = scmp.eq.s32.totalorder %s21, 1
      %p217 = scmp.ne.s32.totalorder %s212, %s214
      %p218 = scmp.eq.s32.totalorder %s21, 0
      %p219 = por %p217, %p218
      %p220 = scmp.ne.s32.totalorder %s212, %s214
      %p221 = scmp.eq.s32.totalorder %s26, 1
      %p222 = por %p220, %p221
      %p223 = scmp.ne.s32.totalorder %s214, %s215
      %p224 = scmp.eq.s32.totalorder %s26, 0
      %p225 = por %p223, %p224
      %p226 = scmp.ne.s32.totalorder %s214, %s215
      %p227 = scmp.eq.s32.totalorder %s27, 1
      %p228 = por %p226, %p227
      %p230 = scmp.ne.s32.totalorder %s215, %s229
      %p231 = scmp.eq.s32.totalorder %s27, 0
      %p232 = por %p230, %p231
      %s233 = ssub.s32 %s21, %s28
      %p234 = scmp.eq.s32.totalorder %s233, 0
      %s236 = sadd.s32 %s235, 1
      %s237 = scalar_select %p234, %s235, %s236
      %p240 = pneg %p234
      %p241 = scmp.eq.s32.totalorder %s21, 1
      %p242 = por %p240, %p241
      %p243 = scmp.ne.s32.totalorder %s235, %s238
      %p244 = scmp.eq.s32.totalorder %s21, 0
      %p245 = por %p243, %p244
      %p246 = scmp.ne.s32.totalorder %s235, %s238
      %p247 = scmp.eq.s32.totalorder %s26, 1
      %p248 = por %p246, %p247
      %p249 = scmp.ne.s32.totalorder %s238, %s239
      %p250 = scmp.eq.s32.totalorder %s26, 0
      %p251 = por %p249, %p250
      %p252 = scmp.ne.s32.totalorder %s238, %s239
      %p253 = scmp.eq.s32.totalorder %s27, 1
      %p254 = por %p252, %p253
      %p256 = scmp.ne.s32.totalorder %s239, %s255
      %p257 = scmp.eq.s32.totalorder %s27, 0
      %p258 = por %p256, %p257
      %s259 = ssub.s32 %s21, %s28
      %p260 = scmp.eq.s32.totalorder %s259, 0
      %s262 = sadd.s32 %s261, 1
      %s263 = scalar_select %p260, %s261, %s262
      %p266 = pneg %p260
      %p267 = scmp.eq.s32.totalorder %s21, 1
      %p268 = por %p266, %p267
      %p269 = scmp.ne.s32.totalorder %s261, %s264
      %p270 = scmp.eq.s32.totalorder %s21, 0
      %p271 = por %p269, %p270
      %p272 = scmp.ne.s32.totalorder %s261, %s264
      %p273 = scmp.eq.s32.totalorder %s26, 1
      %p274 = por %p272, %p273
      %p275 = scmp.ne.s32.totalorder %s264, %s265
      %p276 = scmp.eq.s32.totalorder %s26, 0
      %p277 = por %p275, %p276
      %p278 = scmp.ne.s32.totalorder %s264, %s265
      %p279 = scmp.eq.s32.totalorder %s27, 1
      %p280 = por %p278, %p279
      %p282 = scmp.ne.s32.totalorder %s265, %s281
      %p283 = scmp.eq.s32.totalorder %s27, 0
      %p284 = por %p282, %p283
      %p285 = scmp.le.s32.totalorder 1, %s21
      %p286 = scmp.lt.s32.totalorder %s21, 3
      %p287 = pnand %p285, %p286
      %p288 = pneg %p287
      // Predicated region
      $region9: #{_lambda_.4} parent=5 // pred_check
        _
      $region10: #{_lambda_.4} parent=5 // pred_check_branch
        %290 = sbr.rel (%p287) target = $region12
      $region11: #{_lambda_.4} parent=5 // pred_region
        %s291 = ssub.s32 %s21, 1
        // Predicated region
        $region13: #{_lambda_.4} parent=11 // pred_check
          %p292 = pneg %p120
        $region14: #{_lambda_.4} parent=11 // pred_check_branch
          %294 = sbr.rel (%p292) target = $region16
        $region15: #{_lambda_.4} parent=11 // pred_region
          _
        $region16: #{_lambda_.4} parent=11 // pred_fallthru
          _
        // Predicated region
        $region17: #{_lambda_.4} parent=11 // pred_check
          %p295 = pneg %p141
        $region18: #{_lambda_.4} parent=11 // pred_check_branch
          %297 = sbr.rel (%p295) target = $region20
        $region19: #{_lambda_.4} parent=11 // pred_region
          _
        $region20: #{_lambda_.4} parent=11 // pred_fallthru
          _
        // Predicated region
        $region21: #{_lambda_.4} parent=11 // pred_check
          %p298 = pneg %p162
        $region22: #{_lambda_.4} parent=11 // pred_check_branch
          %300 = sbr.rel (%p298) target = $region24
        $region23: #{_lambda_.4} parent=11 // pred_region
          %302 = vsyncadd [#allocation3], 0
          %s303 = sshll.u32 %s5, 4
          %s304 = int_to_ptr.hbm [resolvable:$true] %s303
          %s305 = sshll.u32 [#allocation2], 4
          %s306 = int_to_ptr.vmem [resolvable:$true] %s305
          %311 = dma.hbm_to_vmem [thread:$0]  %s304, 32768, %s306, [#allocation3], 128, 128, 8
        $region24: #{_lambda_.4} parent=11 // pred_fallthru
          _
        // Predicated region
        $region25: #{_lambda_.4} parent=11 // pred_check
          %p312 = pneg %p183
        $region26: #{_lambda_.4} parent=11 // pred_check_branch
          %314 = sbr.rel (%p312) target = $region28
        $region27: #{_lambda_.4} parent=11 // pred_region
          _
        $region28: #{_lambda_.4} parent=11 // pred_fallthru
          _
        // Predicated region
        $region29: #{_lambda_.4} parent=11 // pred_check
          %p315 = pneg %p204
        $region30: #{_lambda_.4} parent=11 // pred_check_branch
          %317 = sbr.rel (%p315) target = $region32
        $region31: #{_lambda_.4} parent=11 // pred_region
          _
        $region32: #{_lambda_.4} parent=11 // pred_fallthru
          _
        // Predicated region
        $region33: #{_lambda_.4} parent=11 // pred_check
          %p318 = pneg %p225
        $region34: #{_lambda_.4} parent=11 // pred_check_branch
          %320 = sbr.rel (%p318) target = $region36
        $region35: #{_lambda_.4} parent=11 // pred_region
          _
        $region36: #{_lambda_.4} parent=11 // pred_fallthru
          _
      $region12: #{_lambda_.4} parent=5 // pred_fallthru
        _
      %p321 = scmp.lt.s32.totalorder %s21, 2
      // Predicated region
      $region37: #{_lambda_.4} parent=5 // pred_check
        %p322 = pneg %p321
      $region38: #{_lambda_.4} parent=5 // pred_check_branch
        %324 = sbr.rel (%p322) target = $region40
      $region39: #{_lambda_.4} parent=5 // pred_region
        // Predicated region
        $region41: #{_lambda_.4} parent=39 // pred_check
          %p325 = pneg %p41
        $region42: #{_lambda_.4} parent=39 // pred_check_branch
          %327 = sbr.rel (%p325) target = $region44
        $region43: #{_lambda_.4} parent=39 // pred_region
          %p328 = scmp.lt.s32.totalorder %s21, 1
          %s329 = scalar_select %p328, %s21, 1
          %s330 = smul.addr %s329, 4
          %s331 = scalar_lea.vmem %s0, %s330
        $region44: #{_lambda_.4} parent=39 // pred_fallthru
          _
        // Predicated region
        $region45: #{_lambda_.4} parent=39 // pred_check
          %p332 = pneg %p67
        $region46: #{_lambda_.4} parent=39 // pred_check_branch
          %334 = sbr.rel (%p332) target = $region48
        $region47: #{_lambda_.4} parent=39 // pred_region
          %p335 = scmp.lt.s32.totalorder %s21, 1
          %s336 = scalar_select %p335, %s21, 1
          %s337 = smul.addr %s336, 32
          %s338 = smul.addr %s337, 4
          %s339 = scalar_lea.vmem %s1, %s338
        $region48: #{_lambda_.4} parent=39 // pred_fallthru
          _
        // Predicated region
        $region49: #{_lambda_.4} parent=39 // pred_check
          %p340 = pneg %p93
        $region50: #{_lambda_.4} parent=39 // pred_check_branch
          %342 = sbr.rel (%p340) target = $region52
        $region51: #{_lambda_.4} parent=39 // pred_region
          %p343 = scmp.lt.s32.totalorder %s21, 1
          %s344 = scalar_select %p343, %s21, 1
          %s345 = smul.addr %s344, 2
          %s346 = scalar_lea.vmem %s2, %s345
        $region52: #{_lambda_.4} parent=39 // pred_fallthru
          _
      $region40: #{_lambda_.4} parent=5 // pred_fallthru
        _
      %p347 = scmp.le.s32.totalorder 1, %s21
      %p348 = scmp.lt.s32.totalorder %s21, 3
      %p349 = pnand %p347, %p348
      %p350 = pneg %p349
      // Predicated region
      $region53: #{_lambda_.4} parent=5 // pred_check
        _
      $region54: #{_lambda_.4} parent=5 // pred_check_branch
        %352 = sbr.rel (%p349) target = $region56
      $region55: #{_lambda_.4} parent=5 // pred_region
        %s353 = ssub.s32 %s21, 1
        // Predicated region
        $region57: #{_lambda_.4} parent=55 // pred_check
          %p354 = pneg %p162
        $region58: #{_lambda_.4} parent=55 // pred_check_branch
          %356 = sbr.rel (%p354) target = $region60
        $region59: #{_lambda_.4} parent=55 // pred_region
          %358 = dma.done [#allocation3], 32768
        $region60: #{_lambda_.4} parent=55 // pred_fallthru
          _
        %p359 = scmp.lt.s32.totalorder %s26, 1
        %s360 = scalar_select %p359, %s26, 1
        %s361 = smul.addr %s360, 4
        %s362 = scalar_lea.vmem %s0, %s361
        %p363 = pneg %p47
        %p364 = pneg %p44
        %p365 = scmp.lt.s32.totalorder %s26, 1
        %s366 = scalar_select %p365, %s26, 1
        %s367 = smul.addr %s366, 32
        %s368 = smul.addr %s367, 4
        %s369 = scalar_lea.vmem %s1, %s368
        %p370 = pneg %p73
        %p371 = pneg %p70
        %p372 = scmp.lt.s32.totalorder %s26, 1
        %s373 = scalar_select %p372, %s26, 1
        %s374 = smul.addr %s373, 2
        %s375 = scalar_lea.vmem %s2, %s374
        %p376 = pneg %p99
        %p377 = pneg %p96
        %p378 = pneg %p120
        %p379 = pneg %p117
        %p380 = pneg %p141
        %p381 = pneg %p138
        %p382 = pneg %p162
        %p383 = pneg %p159
        %p384 = pneg %p183
        %p385 = pneg %p180
        %p386 = pneg %p204
        %p387 = pneg %p201
        %p388 = pneg %p225
        %p389 = pneg %p222
        %p390 = pneg %p251
        %p391 = pneg %p248
        %p392 = scmp.lt.s32.totalorder %s26, 1
        %s393 = scalar_select %p392, %s26, 1
        %s394 = smul.addr %s393, 4
        %s395 = scalar_lea.vmem %s9, %s394
        %p396 = pneg %p277
        %p397 = pneg %p274
        %s398 = sand.u32 %s264, 1
        %s399 = scalar_lea.sflag [#allocation4], %s398
        %s400 = sand.u32 %s264, 1
        %s401 = smul.addr %s400, 16
        %s402 = scalar_lea.vmem [#allocation5], %s401
        %p403 = scmp.lt.s32.totalorder %s26, 1
        %s404 = scalar_select %p403, %s26, 1
        %s405 = smul.addr %s404, 4
        %s406 = scalar_lea.vmem %s0, %s405
        %p407 = scmp.lt.s32.totalorder %s26, 1
        %s408 = scalar_select %p407, %s26, 1
        %s409 = smul.addr %s408, 32
        %s410 = smul.addr %s409, 4
        %s411 = scalar_lea.vmem %s1, %s410
        %p412 = scmp.lt.s32.totalorder %s26, 1
        %s413 = scalar_select %p412, %s26, 1
        %s414 = smul.addr %s413, 2
        %s415 = scalar_lea.vmem %s2, %s414
        %p416 = scmp.lt.s32.totalorder %s26, 1
        %s417 = scalar_select %p416, %s26, 1
        %s418 = smul.addr %s417, 4
        %s419 = scalar_lea.vmem %s9, %s418
        %v421 = vld [vmem:[%s406] sm:$0xf]
        %v422 = vld [vmem:[%s3] sm:$0xf]
        %v423 = vld [vmem:[%s3 + $0x4] sm:$0xf]
        %v424 = vld [vmem:[%s3 + $0x8] sm:$0xf]
        %v425 = vld [vmem:[%s3 + $0xc] sm:$0xf]
        %v426 = vld [vmem:[%s3 + $0x10] sm:$0xf]
        %v427 = vld [vmem:[%s3 + $0x14] sm:$0xf]
        %v428 = vld [vmem:[%s3 + $0x18] sm:$0xf]
        %v429 = vld [vmem:[%s3 + $0x1c] sm:$0xf]
        %v430 = vld [vmem:[%s3 + $0x20] sm:$0xf]
        %v431 = vld [vmem:[%s3 + $0x24] sm:$0xf]
        %v432 = vld [vmem:[%s3 + $0x28] sm:$0xf]
        %v433 = vld [vmem:[%s3 + $0x2c] sm:$0xf]
        %v434 = vld [vmem:[%s3 + $0x30] sm:$0xf]
        %v435 = vld [vmem:[%s3 + $0x34] sm:$0xf]
        %v436 = vld [vmem:[%s3 + $0x38] sm:$0xf]
        %v437 = vld [vmem:[%s3 + $0x3c] sm:$0xf]
        %v438 = vld [vmem:[%s4] sm:$0x1]
        %v440 = vperm.slane %v438, 0
        %v458 = vunpack.c.l.b16 %v422
        %v459 = vunpack.c.l.b16 %v423
        %v460 = vunpack.c.l.b16 %v424
        %v461 = vunpack.c.l.b16 %v425
        %v462 = vunpack.c.l.b16 %v426
        %v463 = vunpack.c.l.b16 %v427
        %v464 = vunpack.c.l.b16 %v428
        %v465 = vunpack.c.l.b16 %v429
        %v466 = vunpack.c.l.b16 %v430
        %v467 = vunpack.c.l.b16 %v431
        %v468 = vunpack.c.l.b16 %v432
        %v469 = vunpack.c.l.b16 %v433
        %v470 = vunpack.c.l.b16 %v434
        %v471 = vunpack.c.l.b16 %v435
        %v472 = vunpack.c.l.b16 %v436
        %v473 = vunpack.c.l.b16 %v437
        %v474 = vpack.c.b16 %v459, %v458
        %v475 = vpack.c.b16 %v461, %v460
        %v476 = vpack.c.b16 %v463, %v462
        %v477 = vpack.c.b16 %v465, %v464
        %v478 = vpack.c.b16 %v467, %v466
        %v479 = vpack.c.b16 %v469, %v468
        %v480 = vpack.c.b16 %v471, %v470
        %v481 = vpack.c.b16 %v473, %v472
        %490 = vmatpush.bf16.msra.mxu0 %v481
        %491 = vmatpush.bf16.msra.mxu0 %v480
        %492 = vmatpush.bf16.msra.mxu0 %v479
        %493 = vmatpush.bf16.msra.mxu0 %v478
        %494 = vmatpush.bf16.msra.mxu0 %v477
        %495 = vmatpush.bf16.msra.mxu0 %v476
        %496 = vmatpush.bf16.msra.mxu0 %v475
        %497 = vmatpush.bf16.msra.mxu0 %v474
        %498 = vmatmul.bf16.gmra.mxu0 %v421
        %v499 = vpop.f32.mrf.mxu0
        %v500 = vadd.f32 %v440, %v499
        %v501 = vpop.f32.mrf.mxu0
        %502 = vdwg.mxu0
        %v503 = vld [vmem:[%s411] sm:$0xff]
        %v504 = vld [vmem:[%s411 + $0x8] sm:$0xff]
        %v505 = vld [vmem:[%s411 + $0x10] sm:$0xff]
        %v506 = vld [vmem:[%s411 + $0x18] sm:$0xff]
        %v507 = vld [vmem:[%s411 + $0x20] sm:$0xff]
        %v508 = vld [vmem:[%s411 + $0x28] sm:$0xff]
        %v509 = vld [vmem:[%s411 + $0x30] sm:$0xff]
        %v510 = vld [vmem:[%s411 + $0x38] sm:$0xff]
        %v511 = vld [vmem:[%s411 + $0x40] sm:$0xff]
        %v512 = vld [vmem:[%s411 + $0x48] sm:$0xff]
        %v513 = vld [vmem:[%s411 + $0x50] sm:$0xff]
        %v514 = vld [vmem:[%s411 + $0x58] sm:$0xff]
        %v515 = vld [vmem:[%s411 + $0x60] sm:$0xff]
        %v516 = vld [vmem:[%s411 + $0x68] sm:$0xff]
        %v517 = vld [vmem:[%s411 + $0x70] sm:$0xff]
        %v518 = vld [vmem:[%s411 + $0x78] sm:$0xff]
        %v519 = vld [vmem:[#allocation2] sm:$0xff]
        %v520 = vld [vmem:[#allocation2 + $0x8] sm:$0xff]
        %v521 = vld [vmem:[#allocation2 + $0x10] sm:$0xff]
        %v522 = vld [vmem:[#allocation2 + $0x18] sm:$0xff]
        %v523 = vld [vmem:[#allocation2 + $0x20] sm:$0xff]
        %v524 = vld [vmem:[#allocation2 + $0x28] sm:$0xff]
        %v525 = vld [vmem:[#allocation2 + $0x30] sm:$0xff]
        %v526 = vld [vmem:[#allocation2 + $0x38] sm:$0xff]
        %v527 = vld [vmem:[#allocation2 + $0x40] sm:$0xff]
        %v528 = vld [vmem:[#allocation2 + $0x48] sm:$0xff]
        %v529 = vld [vmem:[#allocation2 + $0x50] sm:$0xff]
        %v530 = vld [vmem:[#allocation2 + $0x58] sm:$0xff]
        %v531 = vld [vmem:[#allocation2 + $0x60] sm:$0xff]
        %v532 = vld [vmem:[#allocation2 + $0x68] sm:$0xff]
        %v533 = vld [vmem:[#allocation2 + $0x70] sm:$0xff]
        %v534 = vld [vmem:[#allocation2 + $0x78] sm:$0xff]
        %v535 = vld [vmem:[#allocation2 + $0x80] sm:$0xff]
        %v536 = vld [vmem:[#allocation2 + $0x88] sm:$0xff]
        %v537 = vld [vmem:[#allocation2 + $0x90] sm:$0xff]
        %v538 = vld [vmem:[#allocation2 + $0x98] sm:$0xff]
        %v539 = vld [vmem:[#allocation2 + $0xa0] sm:$0xff]
        %v540 = vld [vmem:[#allocation2 + $0xa8] sm:$0xff]
        %v541 = vld [vmem:[#allocation2 + $0xb0] sm:$0xff]
        %v542 = vld [vmem:[#allocation2 + $0xb8] sm:$0xff]
        %v543 = vld [vmem:[#allocation2 + $0xc0] sm:$0xff]
        %v544 = vld [vmem:[#allocation2 + $0xc8] sm:$0xff]
        %v545 = vld [vmem:[#allocation2 + $0xd0] sm:$0xff]
        %v546 = vld [vmem:[#allocation2 + $0xd8] sm:$0xff]
        %v547 = vld [vmem:[#allocation2 + $0xe0] sm:$0xff]
        %v548 = vld [vmem:[#allocation2 + $0xe8] sm:$0xff]
        %v549 = vld [vmem:[#allocation2 + $0xf0] sm:$0xff]
        %v550 = vld [vmem:[#allocation2 + $0xf8] sm:$0xff]
        %v551 = vld [vmem:[#allocation2 + $0x100] sm:$0xff]
        %v552 = vld [vmem:[#allocation2 + $0x108] sm:$0xff]
        %v553 = vld [vmem:[#allocation2 + $0x110] sm:$0xff]
        %v554 = vld [vmem:[#allocation2 + $0x118] sm:$0xff]
        %v555 = vld [vmem:[#allocation2 + $0x120] sm:$0xff]
        %v556 = vld [vmem:[#allocation2 + $0x128] sm:$0xff]
        %v557 = vld [vmem:[#allocation2 + $0x130] sm:$0xff]
        %v558 = vld [vmem:[#allocation2 + $0x138] sm:$0xff]
        %v559 = vld [vmem:[#allocation2 + $0x140] sm:$0xff]
        %v560 = vld [vmem:[#allocation2 + $0x148] sm:$0xff]
        %v561 = vld [vmem:[#allocation2 + $0x150] sm:$0xff]
        %v562 = vld [vmem:[#allocation2 + $0x158] sm:$0xff]
        %v563 = vld [vmem:[#allocation2 + $0x160] sm:$0xff]
        %v564 = vld [vmem:[#allocation2 + $0x168] sm:$0xff]
        %v565 = vld [vmem:[#allocation2 + $0x170] sm:$0xff]
        %v566 = vld [vmem:[#allocation2 + $0x178] sm:$0xff]
        %v567 = vld [vmem:[#allocation2 + $0x180] sm:$0xff]
        %v568 = vld [vmem:[#allocation2 + $0x188] sm:$0xff]
        %v569 = vld [vmem:[#allocation2 + $0x190] sm:$0xff]
        %v570 = vld [vmem:[#allocation2 + $0x198] sm:$0xff]
        %v571 = vld [vmem:[#allocation2 + $0x1a0] sm:$0xff]
        %v572 = vld [vmem:[#allocation2 + $0x1a8] sm:$0xff]
        %v573 = vld [vmem:[#allocation2 + $0x1b0] sm:$0xff]
        %v574 = vld [vmem:[#allocation2 + $0x1b8] sm:$0xff]
        %v575 = vld [vmem:[#allocation2 + $0x1c0] sm:$0xff]
        %v576 = vld [vmem:[#allocation2 + $0x1c8] sm:$0xff]
        %v577 = vld [vmem:[#allocation2 + $0x1d0] sm:$0xff]
        %v578 = vld [vmem:[#allocation2 + $0x1d8] sm:$0xff]
        %v579 = vld [vmem:[#allocation2 + $0x1e0] sm:$0xff]
        %v580 = vld [vmem:[#allocation2 + $0x1e8] sm:$0xff]
        %v581 = vld [vmem:[#allocation2 + $0x1f0] sm:$0xff]
        %v582 = vld [vmem:[#allocation2 + $0x1f8] sm:$0xff]
        %v583 = vld [vmem:[#allocation2 + $0x200] sm:$0xff]
        %v584 = vld [vmem:[#allocation2 + $0x208] sm:$0xff]
        %v585 = vld [vmem:[#allocation2 + $0x210] sm:$0xff]
        %v586 = vld [vmem:[#allocation2 + $0x218] sm:$0xff]
        %v587 = vld [vmem:[#allocation2 + $0x220] sm:$0xff]
        %v588 = vld [vmem:[#allocation2 + $0x228] sm:$0xff]
        %v589 = vld [vmem:[#allocation2 + $0x230] sm:$0xff]
        %v590 = vld [vmem:[#allocation2 + $0x238] sm:$0xff]
        %v591 = vld [vmem:[#allocation2 + $0x240] sm:$0xff]
        %v592 = vld [vmem:[#allocation2 + $0x248] sm:$0xff]
        %v593 = vld [vmem:[#allocation2 + $0x250] sm:$0xff]
        %v594 = vld [vmem:[#allocation2 + $0x258] sm:$0xff]
        %v595 = vld [vmem:[#allocation2 + $0x260] sm:$0xff]
        %v596 = vld [vmem:[#allocation2 + $0x268] sm:$0xff]
        %v597 = vld [vmem:[#allocation2 + $0x270] sm:$0xff]
        %v598 = vld [vmem:[#allocation2 + $0x278] sm:$0xff]
        %v599 = vld [vmem:[#allocation2 + $0x280] sm:$0xff]
        %v600 = vld [vmem:[#allocation2 + $0x288] sm:$0xff]
        %v601 = vld [vmem:[#allocation2 + $0x290] sm:$0xff]
        %v602 = vld [vmem:[#allocation2 + $0x298] sm:$0xff]
        %v603 = vld [vmem:[#allocation2 + $0x2a0] sm:$0xff]
        %v604 = vld [vmem:[#allocation2 + $0x2a8] sm:$0xff]
        %v605 = vld [vmem:[#allocation2 + $0x2b0] sm:$0xff]
        %v606 = vld [vmem:[#allocation2 + $0x2b8] sm:$0xff]
        %v607 = vld [vmem:[#allocation2 + $0x2c0] sm:$0xff]
        %v608 = vld [vmem:[#allocation2 + $0x2c8] sm:$0xff]
        %v609 = vld [vmem:[#allocation2 + $0x2d0] sm:$0xff]
        %v610 = vld [vmem:[#allocation2 + $0x2d8] sm:$0xff]
        %v611 = vld [vmem:[#allocation2 + $0x2e0] sm:$0xff]
        %v612 = vld [vmem:[#allocation2 + $0x2e8] sm:$0xff]
        %v613 = vld [vmem:[#allocation2 + $0x2f0] sm:$0xff]
        %v614 = vld [vmem:[#allocation2 + $0x2f8] sm:$0xff]
        %v615 = vld [vmem:[#allocation2 + $0x300] sm:$0xff]
        %v616 = vld [vmem:[#allocation2 + $0x308] sm:$0xff]
        %v617 = vld [vmem:[#allocation2 + $0x310] sm:$0xff]
        %v618 = vld [vmem:[#allocation2 + $0x318] sm:$0xff]
        %v619 = vld [vmem:[#allocation2 + $0x320] sm:$0xff]
        %v620 = vld [vmem:[#allocation2 + $0x328] sm:$0xff]
        %v621 = vld [vmem:[#allocation2 + $0x330] sm:$0xff]
        %v622 = vld [vmem:[#allocation2 + $0x338] sm:$0xff]
        %v623 = vld [vmem:[#allocation2 + $0x340] sm:$0xff]
        %v624 = vld [vmem:[#allocation2 + $0x348] sm:$0xff]
        %v625 = vld [vmem:[#allocation2 + $0x350] sm:$0xff]
        %v626 = vld [vmem:[#allocation2 + $0x358] sm:$0xff]
        %v627 = vld [vmem:[#allocation2 + $0x360] sm:$0xff]
        %v628 = vld [vmem:[#allocation2 + $0x368] sm:$0xff]
        %v629 = vld [vmem:[#allocation2 + $0x370] sm:$0xff]
        %v630 = vld [vmem:[#allocation2 + $0x378] sm:$0xff]
        %v631 = vld [vmem:[#allocation2 + $0x380] sm:$0xff]
        %v632 = vld [vmem:[#allocation2 + $0x388] sm:$0xff]
        %v633 = vld [vmem:[#allocation2 + $0x390] sm:$0xff]
        %v634 = vld [vmem:[#allocation2 + $0x398] sm:$0xff]
        %v635 = vld [vmem:[#allocation2 + $0x3a0] sm:$0xff]
        %v636 = vld [vmem:[#allocation2 + $0x3a8] sm:$0xff]
        %v637 = vld [vmem:[#allocation2 + $0x3b0] sm:$0xff]
        %v638 = vld [vmem:[#allocation2 + $0x3b8] sm:$0xff]
        %v639 = vld [vmem:[#allocation2 + $0x3c0] sm:$0xff]
        %v640 = vld [vmem:[#allocation2 + $0x3c8] sm:$0xff]
        %v641 = vld [vmem:[#allocation2 + $0x3d0] sm:$0xff]
        %v642 = vld [vmem:[#allocation2 + $0x3d8] sm:$0xff]
        %v643 = vld [vmem:[#allocation2 + $0x3e0] sm:$0xff]
        %v644 = vld [vmem:[#allocation2 + $0x3e8] sm:$0xff]
        %v645 = vld [vmem:[#allocation2 + $0x3f0] sm:$0xff]
        %v646 = vld [vmem:[#allocation2 + $0x3f8] sm:$0xff]
        %v647 = vld [vmem:[#allocation2 + $0x400] sm:$0xff]
        %v648 = vld [vmem:[#allocation2 + $0x408] sm:$0xff]
        %v649 = vld [vmem:[#allocation2 + $0x410] sm:$0xff]
        %v650 = vld [vmem:[#allocation2 + $0x418] sm:$0xff]
        %v651 = vld [vmem:[#allocation2 + $0x420] sm:$0xff]
        %v652 = vld [vmem:[#allocation2 + $0x428] sm:$0xff]
        %v653 = vld [vmem:[#allocation2 + $0x430] sm:$0xff]
        %v654 = vld [vmem:[#allocation2 + $0x438] sm:$0xff]
        %v655 = vld [vmem:[#allocation2 + $0x440] sm:$0xff]
        %v656 = vld [vmem:[#allocation2 + $0x448] sm:$0xff]
        %v657 = vld [vmem:[#allocation2 + $0x450] sm:$0xff]
        %v658 = vld [vmem:[#allocation2 + $0x458] sm:$0xff]
        %v659 = vld [vmem:[#allocation2 + $0x460] sm:$0xff]
        %v660 = vld [vmem:[#allocation2 + $0x468] sm:$0xff]
        %v661 = vld [vmem:[#allocation2 + $0x470] sm:$0xff]
        %v662 = vld [vmem:[#allocation2 + $0x478] sm:$0xff]
        %v663 = vld [vmem:[#allocation2 + $0x480] sm:$0xff]
        %v664 = vld [vmem:[#allocation2 + $0x488] sm:$0xff]
        %v665 = vld [vmem:[#allocation2 + $0x490] sm:$0xff]
        %v666 = vld [vmem:[#allocation2 + $0x498] sm:$0xff]
        %v667 = vld [vmem:[#allocation2 + $0x4a0] sm:$0xff]
        %v668 = vld [vmem:[#allocation2 + $0x4a8] sm:$0xff]
        %v669 = vld [vmem:[#allocation2 + $0x4b0] sm:$0xff]
        %v670 = vld [vmem:[#allocation2 + $0x4b8] sm:$0xff]
        %v671 = vld [vmem:[#allocation2 + $0x4c0] sm:$0xff]
        %v672 = vld [vmem:[#allocation2 + $0x4c8] sm:$0xff]
        %v673 = vld [vmem:[#allocation2 + $0x4d0] sm:$0xff]
        %v674 = vld [vmem:[#allocation2 + $0x4d8] sm:$0xff]
        %v675 = vld [vmem:[#allocation2 + $0x4e0] sm:$0xff]
        %v676 = vld [vmem:[#allocation2 + $0x4e8] sm:$0xff]
        %v677 = vld [vmem:[#allocation2 + $0x4f0] sm:$0xff]
        %v678 = vld [vmem:[#allocation2 + $0x4f8] sm:$0xff]
        %v679 = vld [vmem:[#allocation2 + $0x500] sm:$0xff]
        %v680 = vld [vmem:[#allocation2 + $0x508] sm:$0xff]
        %v681 = vld [vmem:[#allocation2 + $0x510] sm:$0xff]
        %v682 = vld [vmem:[#allocation2 + $0x518] sm:$0xff]
        %v683 = vld [vmem:[#allocation2 + $0x520] sm:$0xff]
        %v684 = vld [vmem:[#allocation2 + $0x528] sm:$0xff]
        %v685 = vld [vmem:[#allocation2 + $0x530] sm:$0xff]
        %v686 = vld [vmem:[#allocation2 + $0x538] sm:$0xff]
        %v687 = vld [vmem:[#allocation2 + $0x540] sm:$0xff]
        %v688 = vld [vmem:[#allocation2 + $0x548] sm:$0xff]
        %v689 = vld [vmem:[#allocation2 + $0x550] sm:$0xff]
        %v690 = vld [vmem:[#allocation2 + $0x558] sm:$0xff]
        %v691 = vld [vmem:[#allocation2 + $0x560] sm:$0xff]
        %v692 = vld [vmem:[#allocation2 + $0x568] sm:$0xff]
        %v693 = vld [vmem:[#allocation2 + $0x570] sm:$0xff]
        %v694 = vld [vmem:[#allocation2 + $0x578] sm:$0xff]
        %v695 = vld [vmem:[#allocation2 + $0x580] sm:$0xff]
        %v696 = vld [vmem:[#allocation2 + $0x588] sm:$0xff]
        %v697 = vld [vmem:[#allocation2 + $0x590] sm:$0xff]
        %v698 = vld [vmem:[#allocation2 + $0x598] sm:$0xff]
        %v699 = vld [vmem:[#allocation2 + $0x5a0] sm:$0xff]
        %v700 = vld [vmem:[#allocation2 + $0x5a8] sm:$0xff]
        %v701 = vld [vmem:[#allocation2 + $0x5b0] sm:$0xff]
        %v702 = vld [vmem:[#allocation2 + $0x5b8] sm:$0xff]
        %v703 = vld [vmem:[#allocation2 + $0x5c0] sm:$0xff]
        %v704 = vld [vmem:[#allocation2 + $0x5c8] sm:$0xff]
        %v705 = vld [vmem:[#allocation2 + $0x5d0] sm:$0xff]
        %v706 = vld [vmem:[#allocation2 + $0x5d8] sm:$0xff]
        %v707 = vld [vmem:[#allocation2 + $0x5e0] sm:$0xff]
        %v708 = vld [vmem:[#allocation2 + $0x5e8] sm:$0xff]
        %v709 = vld [vmem:[#allocation2 + $0x5f0] sm:$0xff]
        %v710 = vld [vmem:[#allocation2 + $0x5f8] sm:$0xff]
        %v711 = vld [vmem:[#allocation2 + $0x600] sm:$0xff]
        %v712 = vld [vmem:[#allocation2 + $0x608] sm:$0xff]
        %v713 = vld [vmem:[#allocation2 + $0x610] sm:$0xff]
        %v714 = vld [vmem:[#allocation2 + $0x618] sm:$0xff]
        %v715 = vld [vmem:[#allocation2 + $0x620] sm:$0xff]
        %v716 = vld [vmem:[#allocation2 + $0x628] sm:$0xff]
        %v717 = vld [vmem:[#allocation2 + $0x630] sm:$0xff]
        %v718 = vld [vmem:[#allocation2 + $0x638] sm:$0xff]
        %v719 = vld [vmem:[#allocation2 + $0x640] sm:$0xff]
        %v720 = vld [vmem:[#allocation2 + $0x648] sm:$0xff]
        %v721 = vld [vmem:[#allocation2 + $0x650] sm:$0xff]
        %v722 = vld [vmem:[#allocation2 + $0x658] sm:$0xff]
        %v723 = vld [vmem:[#allocation2 + $0x660] sm:$0xff]
        %v724 = vld [vmem:[#allocation2 + $0x668] sm:$0xff]
        %v725 = vld [vmem:[#allocation2 + $0x670] sm:$0xff]
        %v726 = vld [vmem:[#allocation2 + $0x678] sm:$0xff]
        %v727 = vld [vmem:[#allocation2 + $0x680] sm:$0xff]
        %v728 = vld [vmem:[#allocation2 + $0x688] sm:$0xff]
        %v729 = vld [vmem:[#allocation2 + $0x690] sm:$0xff]
        %v730 = vld [vmem:[#allocation2 + $0x698] sm:$0xff]
        %v731 = vld [vmem:[#allocation2 + $0x6a0] sm:$0xff]
        %v732 = vld [vmem:[#allocation2 + $0x6a8] sm:$0xff]
        %v733 = vld [vmem:[#allocation2 + $0x6b0] sm:$0xff]
        %v734 = vld [vmem:[#allocation2 + $0x6b8] sm:$0xff]
        %v735 = vld [vmem:[#allocation2 + $0x6c0] sm:$0xff]
        %v736 = vld [vmem:[#allocation2 + $0x6c8] sm:$0xff]
        %v737 = vld [vmem:[#allocation2 + $0x6d0] sm:$0xff]
        %v738 = vld [vmem:[#allocation2 + $0x6d8] sm:$0xff]
        %v739 = vld [vmem:[#allocation2 + $0x6e0] sm:$0xff]
        %v740 = vld [vmem:[#allocation2 + $0x6e8] sm:$0xff]
        %v741 = vld [vmem:[#allocation2 + $0x6f0] sm:$0xff]
        %v742 = vld [vmem:[#allocation2 + $0x6f8] sm:$0xff]
        %v743 = vld [vmem:[#allocation2 + $0x700] sm:$0xff]
        %v744 = vld [vmem:[#allocation2 + $0x708] sm:$0xff]
        %v745 = vld [vmem:[#allocation2 + $0x710] sm:$0xff]
        %v746 = vld [vmem:[#allocation2 + $0x718] sm:$0xff]
        %v747 = vld [vmem:[#allocation2 + $0x720] sm:$0xff]
        %v748 = vld [vmem:[#allocation2 + $0x728] sm:$0xff]
        %v749 = vld [vmem:[#allocation2 + $0x730] sm:$0xff]
        %v750 = vld [vmem:[#allocation2 + $0x738] sm:$0xff]
        %v751 = vld [vmem:[#allocation2 + $0x740] sm:$0xff]
        %v752 = vld [vmem:[#allocation2 + $0x748] sm:$0xff]
        %v753 = vld [vmem:[#allocation2 + $0x750] sm:$0xff]
        %v754 = vld [vmem:[#allocation2 + $0x758] sm:$0xff]
        %v755 = vld [vmem:[#allocation2 + $0x760] sm:$0xff]
        %v756 = vld [vmem:[#allocation2 + $0x768] sm:$0xff]
        %v757 = vld [vmem:[#allocation2 + $0x770] sm:$0xff]
        %v758 = vld [vmem:[#allocation2 + $0x778] sm:$0xff]
        %v759 = vld [vmem:[#allocation2 + $0x780] sm:$0xff]
        %v760 = vld [vmem:[#allocation2 + $0x788] sm:$0xff]
        %v761 = vld [vmem:[#allocation2 + $0x790] sm:$0xff]
        %v762 = vld [vmem:[#allocation2 + $0x798] sm:$0xff]
        %v763 = vld [vmem:[#allocation2 + $0x7a0] sm:$0xff]
        %v764 = vld [vmem:[#allocation2 + $0x7a8] sm:$0xff]
        %v765 = vld [vmem:[#allocation2 + $0x7b0] sm:$0xff]
        %v766 = vld [vmem:[#allocation2 + $0x7b8] sm:$0xff]
        %v767 = vld [vmem:[#allocation2 + $0x7c0] sm:$0xff]
        %v768 = vld [vmem:[#allocation2 + $0x7c8] sm:$0xff]
        %v769 = vld [vmem:[#allocation2 + $0x7d0] sm:$0xff]
        %v770 = vld [vmem:[#allocation2 + $0x7d8] sm:$0xff]
        %v771 = vld [vmem:[#allocation2 + $0x7e0] sm:$0xff]
        %v772 = vld [vmem:[#allocation2 + $0x7e8] sm:$0xff]
        %v773 = vld [vmem:[#allocation2 + $0x7f0] sm:$0xff]
        %v774 = vld [vmem:[#allocation2 + $0x7f8] sm:$0xff]
        %v775 = vld [vmem:[%s6] sm:$0x3]
        %v777 = vperm.slane %v775, 0
        %v778 = vperm.slane %v775, 1
        %v797 = vunpack.c.l.b16 %v503
        %v798 = vunpack.c.h.b16 %v503
        %v799 = vunpack.c.l.b16 %v504
        %v800 = vunpack.c.h.b16 %v504
        %v801 = vunpack.c.l.b16 %v505
        %v802 = vunpack.c.h.b16 %v505
        %v803 = vunpack.c.l.b16 %v506
        %v804 = vunpack.c.h.b16 %v506
        %v805 = vunpack.c.l.b16 %v507
        %v806 = vunpack.c.h.b16 %v507
        %v807 = vunpack.c.l.b16 %v508
        %v808 = vunpack.c.h.b16 %v508
        %v809 = vunpack.c.l.b16 %v509
        %v810 = vunpack.c.h.b16 %v509
        %v811 = vunpack.c.l.b16 %v510
        %v812 = vunpack.c.h.b16 %v510
        %v813 = vunpack.c.l.b16 %v511
        %v814 = vunpack.c.h.b16 %v511
        %v815 = vunpack.c.l.b16 %v512
        %v816 = vunpack.c.h.b16 %v512
        %v817 = vunpack.c.l.b16 %v513
        %v818 = vunpack.c.h.b16 %v513
        %v819 = vunpack.c.l.b16 %v514
        %v820 = vunpack.c.h.b16 %v514
        %v821 = vunpack.c.l.b16 %v515
        %v822 = vunpack.c.h.b16 %v515
        %v823 = vunpack.c.l.b16 %v516
        %v824 = vunpack.c.h.b16 %v516
        %v825 = vunpack.c.l.b16 %v517
        %v826 = vunpack.c.h.b16 %v517
        %v827 = vunpack.c.l.b16 %v518
        %v828 = vunpack.c.h.b16 %v518
        %v829 = vpack.c.b16 %v813, %v797
        %v830 = vpack.c.b16 %v814, %v798
        %v831 = vpack.c.b16 %v815, %v799
        %v832 = vpack.c.b16 %v816, %v800
        %v833 = vpack.c.b16 %v817, %v801
        %v834 = vpack.c.b16 %v818, %v802
        %v835 = vpack.c.b16 %v819, %v803
        %v836 = vpack.c.b16 %v820, %v804
        %v837 = vpack.c.b16 %v821, %v805
        %v838 = vpack.c.b16 %v822, %v806
        %v839 = vpack.c.b16 %v823, %v807
        %v840 = vpack.c.b16 %v824, %v808
        %v841 = vpack.c.b16 %v825, %v809
        %v842 = vpack.c.b16 %v826, %v810
        %v843 = vpack.c.b16 %v827, %v811
        %v844 = vpack.c.b16 %v828, %v812
        %v1117 = vunpack.c.l.b16 %v519
        %v1118 = vunpack.c.h.b16 %v519
        %v1119 = vunpack.c.l.b16 %v520
        %v1120 = vunpack.c.h.b16 %v520
        %v1121 = vunpack.c.l.b16 %v521
        %v1122 = vunpack.c.h.b16 %v521
        %v1123 = vunpack.c.l.b16 %v522
        %v1124 = vunpack.c.h.b16 %v522
        %v1125 = vunpack.c.l.b16 %v523
        %v1126 = vunpack.c.h.b16 %v523
        %v1127 = vunpack.c.l.b16 %v524
        %v1128 = vunpack.c.h.b16 %v524
        %v1129 = vunpack.c.l.b16 %v525
        %v1130 = vunpack.c.h.b16 %v525
        %v1131 = vunpack.c.l.b16 %v526
        %v1132 = vunpack.c.h.b16 %v526
        %v1133 = vunpack.c.l.b16 %v527
        %v1134 = vunpack.c.h.b16 %v527
        %v1135 = vunpack.c.l.b16 %v528
        %v1136 = vunpack.c.h.b16 %v528
        %v1137 = vunpack.c.l.b16 %v529
        %v1138 = vunpack.c.h.b16 %v529
        %v1139 = vunpack.c.l.b16 %v530
        %v1140 = vunpack.c.h.b16 %v530
        %v1141 = vunpack.c.l.b16 %v531
        %v1142 = vunpack.c.h.b16 %v531
        %v1143 = vunpack.c.l.b16 %v532
        %v1144 = vunpack.c.h.b16 %v532
        %v1145 = vunpack.c.l.b16 %v533
        %v1146 = vunpack.c.h.b16 %v533
        %v1147 = vunpack.c.l.b16 %v534
        %v1148 = vunpack.c.h.b16 %v534
        %v1149 = vunpack.c.l.b16 %v535
        %v1150 = vunpack.c.h.b16 %v535
        %v1151 = vunpack.c.l.b16 %v536
        %v1152 = vunpack.c.h.b16 %v536
        %v1153 = vunpack.c.l.b16 %v537
        %v1154 = vunpack.c.h.b16 %v537
        %v1155 = vunpack.c.l.b16 %v538
        %v1156 = vunpack.c.h.b16 %v538
        %v1157 = vunpack.c.l.b16 %v539
        %v1158 = vunpack.c.h.b16 %v539
        %v1159 = vunpack.c.l.b16 %v540
        %v1160 = vunpack.c.h.b16 %v540
        %v1161 = vunpack.c.l.b16 %v541
        %v1162 = vunpack.c.h.b16 %v541
        %v1163 = vunpack.c.l.b16 %v542
        %v1164 = vunpack.c.h.b16 %v542
        %v1165 = vunpack.c.l.b16 %v543
        %v1166 = vunpack.c.h.b16 %v543
        %v1167 = vunpack.c.l.b16 %v544
        %v1168 = vunpack.c.h.b16 %v544
        %v1169 = vunpack.c.l.b16 %v545
        %v1170 = vunpack.c.h.b16 %v545
        %v1171 = vunpack.c.l.b16 %v546
        %v1172 = vunpack.c.h.b16 %v546
        %v1173 = vunpack.c.l.b16 %v547
        %v1174 = vunpack.c.h.b16 %v547
        %v1175 = vunpack.c.l.b16 %v548
        %v1176 = vunpack.c.h.b16 %v548
        %v1177 = vunpack.c.l.b16 %v549
        %v1178 = vunpack.c.h.b16 %v549
        %v1179 = vunpack.c.l.b16 %v550
        %v1180 = vunpack.c.h.b16 %v550
        %v1181 = vunpack.c.l.b16 %v551
        %v1182 = vunpack.c.h.b16 %v551
        %v1183 = vunpack.c.l.b16 %v552
        %v1184 = vunpack.c.h.b16 %v552
        %v1185 = vunpack.c.l.b16 %v553
        %v1186 = vunpack.c.h.b16 %v553
        %v1187 = vunpack.c.l.b16 %v554
        %v1188 = vunpack.c.h.b16 %v554
        %v1189 = vunpack.c.l.b16 %v555
        %v1190 = vunpack.c.h.b16 %v555
        %v1191 = vunpack.c.l.b16 %v556
        %v1192 = vunpack.c.h.b16 %v556
        %v1193 = vunpack.c.l.b16 %v557
        %v1194 = vunpack.c.h.b16 %v557
        %v1195 = vunpack.c.l.b16 %v558
        %v1196 = vunpack.c.h.b16 %v558
        %v1197 = vunpack.c.l.b16 %v559
        %v1198 = vunpack.c.h.b16 %v559
        %v1199 = vunpack.c.l.b16 %v560
        %v1200 = vunpack.c.h.b16 %v560
        %v1201 = vunpack.c.l.b16 %v561
        %v1202 = vunpack.c.h.b16 %v561
        %v1203 = vunpack.c.l.b16 %v562
        %v1204 = vunpack.c.h.b16 %v562
        %v1205 = vunpack.c.l.b16 %v563
        %v1206 = vunpack.c.h.b16 %v563
        %v1207 = vunpack.c.l.b16 %v564
        %v1208 = vunpack.c.h.b16 %v564
        %v1209 = vunpack.c.l.b16 %v565
        %v1210 = vunpack.c.h.b16 %v565
        %v1211 = vunpack.c.l.b16 %v566
        %v1212 = vunpack.c.h.b16 %v566
        %v1213 = vunpack.c.l.b16 %v567
        %v1214 = vunpack.c.h.b16 %v567
        %v1215 = vunpack.c.l.b16 %v568
        %v1216 = vunpack.c.h.b16 %v568
        %v1217 = vunpack.c.l.b16 %v569
        %v1218 = vunpack.c.h.b16 %v569
        %v1219 = vunpack.c.l.b16 %v570
        %v1220 = vunpack.c.h.b16 %v570
        %v1221 = vunpack.c.l.b16 %v571
        %v1222 = vunpack.c.h.b16 %v571
        %v1223 = vunpack.c.l.b16 %v572
        %v1224 = vunpack.c.h.b16 %v572
        %v1225 = vunpack.c.l.b16 %v573
        %v1226 = vunpack.c.h.b16 %v573
        %v1227 = vunpack.c.l.b16 %v574
        %v1228 = vunpack.c.h.b16 %v574
        %v1229 = vunpack.c.l.b16 %v575
        %v1230 = vunpack.c.h.b16 %v575
        %v1231 = vunpack.c.l.b16 %v576
        %v1232 = vunpack.c.h.b16 %v576
        %v1233 = vunpack.c.l.b16 %v577
        %v1234 = vunpack.c.h.b16 %v577
        %v1235 = vunpack.c.l.b16 %v578
        %v1236 = vunpack.c.h.b16 %v578
        %v1237 = vunpack.c.l.b16 %v579
        %v1238 = vunpack.c.h.b16 %v579
        %v1239 = vunpack.c.l.b16 %v580
        %v1240 = vunpack.c.h.b16 %v580
        %v1241 = vunpack.c.l.b16 %v581
        %v1242 = vunpack.c.h.b16 %v581
        %v1243 = vunpack.c.l.b16 %v582
        %v1244 = vunpack.c.h.b16 %v582
        %v1245 = vunpack.c.l.b16 %v583
        %v1246 = vunpack.c.h.b16 %v583
        %v1247 = vunpack.c.l.b16 %v584
        %v1248 = vunpack.c.h.b16 %v584
        %v1249 = vunpack.c.l.b16 %v585
        %v1250 = vunpack.c.h.b16 %v585
        %v1251 = vunpack.c.l.b16 %v586
        %v1252 = vunpack.c.h.b16 %v586
        %v1253 = vunpack.c.l.b16 %v587
        %v1254 = vunpack.c.h.b16 %v587
        %v1255 = vunpack.c.l.b16 %v588
        %v1256 = vunpack.c.h.b16 %v588
        %v1257 = vunpack.c.l.b16 %v589
        %v1258 = vunpack.c.h.b16 %v589
        %v1259 = vunpack.c.l.b16 %v590
        %v1260 = vunpack.c.h.b16 %v590
        %v1261 = vunpack.c.l.b16 %v591
        %v1262 = vunpack.c.h.b16 %v591
        %v1263 = vunpack.c.l.b16 %v592
        %v1264 = vunpack.c.h.b16 %v592
        %v1265 = vunpack.c.l.b16 %v593
        %v1266 = vunpack.c.h.b16 %v593
        %v1267 = vunpack.c.l.b16 %v594
        %v1268 = vunpack.c.h.b16 %v594
        %v1269 = vunpack.c.l.b16 %v595
        %v1270 = vunpack.c.h.b16 %v595
        %v1271 = vunpack.c.l.b16 %v596
        %v1272 = vunpack.c.h.b16 %v596
        %v1273 = vunpack.c.l.b16 %v597
        %v1274 = vunpack.c.h.b16 %v597
        %v1275 = vunpack.c.l.b16 %v598
        %v1276 = vunpack.c.h.b16 %v598
        %v1277 = vunpack.c.l.b16 %v599
        %v1278 = vunpack.c.h.b16 %v599
        %v1279 = vunpack.c.l.b16 %v600
        %v1280 = vunpack.c.h.b16 %v600
        %v1281 = vunpack.c.l.b16 %v601
        %v1282 = vunpack.c.h.b16 %v601
        %v1283 = vunpack.c.l.b16 %v602
        %v1284 = vunpack.c.h.b16 %v602
        %v1285 = vunpack.c.l.b16 %v603
        %v1286 = vunpack.c.h.b16 %v603
        %v1287 = vunpack.c.l.b16 %v604
        %v1288 = vunpack.c.h.b16 %v604
        %v1289 = vunpack.c.l.b16 %v605
        %v1290 = vunpack.c.h.b16 %v605
        %v1291 = vunpack.c.l.b16 %v606
        %v1292 = vunpack.c.h.b16 %v606
        %v1293 = vunpack.c.l.b16 %v607
        %v1294 = vunpack.c.h.b16 %v607
        %v1295 = vunpack.c.l.b16 %v608
        %v1296 = vunpack.c.h.b16 %v608
        %v1297 = vunpack.c.l.b16 %v609
        %v1298 = vunpack.c.h.b16 %v609
        %v1299 = vunpack.c.l.b16 %v610
        %v1300 = vunpack.c.h.b16 %v610
        %v1301 = vunpack.c.l.b16 %v611
        %v1302 = vunpack.c.h.b16 %v611
        %v1303 = vunpack.c.l.b16 %v612
        %v1304 = vunpack.c.h.b16 %v612
        %v1305 = vunpack.c.l.b16 %v613
        %v1306 = vunpack.c.h.b16 %v613
        %v1307 = vunpack.c.l.b16 %v614
        %v1308 = vunpack.c.h.b16 %v614
        %v1309 = vunpack.c.l.b16 %v615
        %v1310 = vunpack.c.h.b16 %v615
        %v1311 = vunpack.c.l.b16 %v616
        %v1312 = vunpack.c.h.b16 %v616
        %v1313 = vunpack.c.l.b16 %v617
        %v1314 = vunpack.c.h.b16 %v617
        %v1315 = vunpack.c.l.b16 %v618
        %v1316 = vunpack.c.h.b16 %v618
        %v1317 = vunpack.c.l.b16 %v619
        %v1318 = vunpack.c.h.b16 %v619
        %v1319 = vunpack.c.l.b16 %v620
        %v1320 = vunpack.c.h.b16 %v620
        %v1321 = vunpack.c.l.b16 %v621
        %v1322 = vunpack.c.h.b16 %v621
        %v1323 = vunpack.c.l.b16 %v622
        %v1324 = vunpack.c.h.b16 %v622
        %v1325 = vunpack.c.l.b16 %v623
        %v1326 = vunpack.c.h.b16 %v623
        %v1327 = vunpack.c.l.b16 %v624
        %v1328 = vunpack.c.h.b16 %v624
        %v1329 = vunpack.c.l.b16 %v625
        %v1330 = vunpack.c.h.b16 %v625
        %v1331 = vunpack.c.l.b16 %v626
        %v1332 = vunpack.c.h.b16 %v626
        %v1333 = vunpack.c.l.b16 %v627
        %v1334 = vunpack.c.h.b16 %v627
        %v1335 = vunpack.c.l.b16 %v628
        %v1336 = vunpack.c.h.b16 %v628
        %v1337 = vunpack.c.l.b16 %v629
        %v1338 = vunpack.c.h.b16 %v629
        %v1339 = vunpack.c.l.b16 %v630
        %v1340 = vunpack.c.h.b16 %v630
        %v1341 = vunpack.c.l.b16 %v631
        %v1342 = vunpack.c.h.b16 %v631
        %v1343 = vunpack.c.l.b16 %v632
        %v1344 = vunpack.c.h.b16 %v632
        %v1345 = vunpack.c.l.b16 %v633
        %v1346 = vunpack.c.h.b16 %v633
        %v1347 = vunpack.c.l.b16 %v634
        %v1348 = vunpack.c.h.b16 %v634
        %v1349 = vunpack.c.l.b16 %v635
        %v1350 = vunpack.c.h.b16 %v635
        %v1351 = vunpack.c.l.b16 %v636
        %v1352 = vunpack.c.h.b16 %v636
        %v1353 = vunpack.c.l.b16 %v637
        %v1354 = vunpack.c.h.b16 %v637
        %v1355 = vunpack.c.l.b16 %v638
        %v1356 = vunpack.c.h.b16 %v638
        %v1357 = vunpack.c.l.b16 %v639
        %v1358 = vunpack.c.h.b16 %v639
        %v1359 = vunpack.c.l.b16 %v640
        %v1360 = vunpack.c.h.b16 %v640
        %v1361 = vunpack.c.l.b16 %v641
        %v1362 = vunpack.c.h.b16 %v641
        %v1363 = vunpack.c.l.b16 %v642
        %v1364 = vunpack.c.h.b16 %v642
        %v1365 = vunpack.c.l.b16 %v643
        %v1366 = vunpack.c.h.b16 %v643
        %v1367 = vunpack.c.l.b16 %v644
        %v1368 = vunpack.c.h.b16 %v644
        %v1369 = vunpack.c.l.b16 %v645
        %v1370 = vunpack.c.h.b16 %v645
        %v1371 = vunpack.c.l.b16 %v646
        %v1372 = vunpack.c.h.b16 %v646
        %v1373 = vunpack.c.l.b16 %v647
        %v1374 = vunpack.c.h.b16 %v647
        %v1375 = vunpack.c.l.b16 %v648
        %v1376 = vunpack.c.h.b16 %v648
        %v1377 = vunpack.c.l.b16 %v649
        %v1378 = vunpack.c.h.b16 %v649
        %v1379 = vunpack.c.l.b16 %v650
        %v1380 = vunpack.c.h.b16 %v650
        %v1381 = vunpack.c.l.b16 %v651
        %v1382 = vunpack.c.h.b16 %v651
        %v1383 = vunpack.c.l.b16 %v652
        %v1384 = vunpack.c.h.b16 %v652
        %v1385 = vunpack.c.l.b16 %v653
        %v1386 = vunpack.c.h.b16 %v653
        %v1387 = vunpack.c.l.b16 %v654
        %v1388 = vunpack.c.h.b16 %v654
        %v1389 = vunpack.c.l.b16 %v655
        %v1390 = vunpack.c.h.b16 %v655
        %v1391 = vunpack.c.l.b16 %v656
        %v1392 = vunpack.c.h.b16 %v656
        %v1393 = vunpack.c.l.b16 %v657
        %v1394 = vunpack.c.h.b16 %v657
        %v1395 = vunpack.c.l.b16 %v658
        %v1396 = vunpack.c.h.b16 %v658
        %v1397 = vunpack.c.l.b16 %v659
        %v1398 = vunpack.c.h.b16 %v659
        %v1399 = vunpack.c.l.b16 %v660
        %v1400 = vunpack.c.h.b16 %v660
        %v1401 = vunpack.c.l.b16 %v661
        %v1402 = vunpack.c.h.b16 %v661
        %v1403 = vunpack.c.l.b16 %v662
        %v1404 = vunpack.c.h.b16 %v662
        %v1405 = vunpack.c.l.b16 %v663
        %v1406 = vunpack.c.h.b16 %v663
        %v1407 = vunpack.c.l.b16 %v664
        %v1408 = vunpack.c.h.b16 %v664
        %v1409 = vunpack.c.l.b16 %v665
        %v1410 = vunpack.c.h.b16 %v665
        %v1411 = vunpack.c.l.b16 %v666
        %v1412 = vunpack.c.h.b16 %v666
        %v1413 = vunpack.c.l.b16 %v667
        %v1414 = vunpack.c.h.b16 %v667
        %v1415 = vunpack.c.l.b16 %v668
        %v1416 = vunpack.c.h.b16 %v668
        %v1417 = vunpack.c.l.b16 %v669
        %v1418 = vunpack.c.h.b16 %v669
        %v1419 = vunpack.c.l.b16 %v670
        %v1420 = vunpack.c.h.b16 %v670
        %v1421 = vunpack.c.l.b16 %v671
        %v1422 = vunpack.c.h.b16 %v671
        %v1423 = vunpack.c.l.b16 %v672
        %v1424 = vunpack.c.h.b16 %v672
        %v1425 = vunpack.c.l.b16 %v673
        %v1426 = vunpack.c.h.b16 %v673
        %v1427 = vunpack.c.l.b16 %v674
        %v1428 = vunpack.c.h.b16 %v674
        %v1429 = vunpack.c.l.b16 %v675
        %v1430 = vunpack.c.h.b16 %v675
        %v1431 = vunpack.c.l.b16 %v676
        %v1432 = vunpack.c.h.b16 %v676
        %v1433 = vunpack.c.l.b16 %v677
        %v1434 = vunpack.c.h.b16 %v677
        %v1435 = vunpack.c.l.b16 %v678
        %v1436 = vunpack.c.h.b16 %v678
        %v1437 = vunpack.c.l.b16 %v679
        %v1438 = vunpack.c.h.b16 %v679
        %v1439 = vunpack.c.l.b16 %v680
        %v1440 = vunpack.c.h.b16 %v680
        %v1441 = vunpack.c.l.b16 %v681
        %v1442 = vunpack.c.h.b16 %v681
        %v1443 = vunpack.c.l.b16 %v682
        %v1444 = vunpack.c.h.b16 %v682
        %v1445 = vunpack.c.l.b16 %v683
        %v1446 = vunpack.c.h.b16 %v683
        %v1447 = vunpack.c.l.b16 %v684
        %v1448 = vunpack.c.h.b16 %v684
        %v1449 = vunpack.c.l.b16 %v685
        %v1450 = vunpack.c.h.b16 %v685
        %v1451 = vunpack.c.l.b16 %v686
        %v1452 = vunpack.c.h.b16 %v686
        %v1453 = vunpack.c.l.b16 %v687
        %v1454 = vunpack.c.h.b16 %v687
        %v1455 = vunpack.c.l.b16 %v688
        %v1456 = vunpack.c.h.b16 %v688
        %v1457 = vunpack.c.l.b16 %v689
        %v1458 = vunpack.c.h.b16 %v689
        %v1459 = vunpack.c.l.b16 %v690
        %v1460 = vunpack.c.h.b16 %v690
        %v1461 = vunpack.c.l.b16 %v691
        %v1462 = vunpack.c.h.b16 %v691
        %v1463 = vunpack.c.l.b16 %v692
        %v1464 = vunpack.c.h.b16 %v692
        %v1465 = vunpack.c.l.b16 %v693
        %v1466 = vunpack.c.h.b16 %v693
        %v1467 = vunpack.c.l.b16 %v694
        %v1468 = vunpack.c.h.b16 %v694
        %v1469 = vunpack.c.l.b16 %v695
        %v1470 = vunpack.c.h.b16 %v695
        %v1471 = vunpack.c.l.b16 %v696
        %v1472 = vunpack.c.h.b16 %v696
        %v1473 = vunpack.c.l.b16 %v697
        %v1474 = vunpack.c.h.b16 %v697
        %v1475 = vunpack.c.l.b16 %v698
        %v1476 = vunpack.c.h.b16 %v698
        %v1477 = vunpack.c.l.b16 %v699
        %v1478 = vunpack.c.h.b16 %v699
        %v1479 = vunpack.c.l.b16 %v700
        %v1480 = vunpack.c.h.b16 %v700
        %v1481 = vunpack.c.l.b16 %v701
        %v1482 = vunpack.c.h.b16 %v701
        %v1483 = vunpack.c.l.b16 %v702
        %v1484 = vunpack.c.h.b16 %v702
        %v1485 = vunpack.c.l.b16 %v703
        %v1486 = vunpack.c.h.b16 %v703
        %v1487 = vunpack.c.l.b16 %v704
        %v1488 = vunpack.c.h.b16 %v704
        %v1489 = vunpack.c.l.b16 %v705
        %v1490 = vunpack.c.h.b16 %v705
        %v1491 = vunpack.c.l.b16 %v706
        %v1492 = vunpack.c.h.b16 %v706
        %v1493 = vunpack.c.l.b16 %v707
        %v1494 = vunpack.c.h.b16 %v707
        %v1495 = vunpack.c.l.b16 %v708
        %v1496 = vunpack.c.h.b16 %v708
        %v1497 = vunpack.c.l.b16 %v709
        %v1498 = vunpack.c.h.b16 %v709
        %v1499 = vunpack.c.l.b16 %v710
        %v1500 = vunpack.c.h.b16 %v710
        %v1501 = vunpack.c.l.b16 %v711
        %v1502 = vunpack.c.h.b16 %v711
        %v1503 = vunpack.c.l.b16 %v712
        %v1504 = vunpack.c.h.b16 %v712
        %v1505 = vunpack.c.l.b16 %v713
        %v1506 = vunpack.c.h.b16 %v713
        %v1507 = vunpack.c.l.b16 %v714
        %v1508 = vunpack.c.h.b16 %v714
        %v1509 = vunpack.c.l.b16 %v715
        %v1510 = vunpack.c.h.b16 %v715
        %v1511 = vunpack.c.l.b16 %v716
        %v1512 = vunpack.c.h.b16 %v716
        %v1513 = vunpack.c.l.b16 %v717
        %v1514 = vunpack.c.h.b16 %v717
        %v1515 = vunpack.c.l.b16 %v718
        %v1516 = vunpack.c.h.b16 %v718
        %v1517 = vunpack.c.l.b16 %v719
        %v1518 = vunpack.c.h.b16 %v719
        %v1519 = vunpack.c.l.b16 %v720
        %v1520 = vunpack.c.h.b16 %v720
        %v1521 = vunpack.c.l.b16 %v721
        %v1522 = vunpack.c.h.b16 %v721
        %v1523 = vunpack.c.l.b16 %v722
        %v1524 = vunpack.c.h.b16 %v722
        %v1525 = vunpack.c.l.b16 %v723
        %v1526 = vunpack.c.h.b16 %v723
        %v1527 = vunpack.c.l.b16 %v724
        %v1528 = vunpack.c.h.b16 %v724
        %v1529 = vunpack.c.l.b16 %v725
        %v1530 = vunpack.c.h.b16 %v725
        %v1531 = vunpack.c.l.b16 %v726
        %v1532 = vunpack.c.h.b16 %v726
        %v1533 = vunpack.c.l.b16 %v727
        %v1534 = vunpack.c.h.b16 %v727
        %v1535 = vunpack.c.l.b16 %v728
        %v1536 = vunpack.c.h.b16 %v728
        %v1537 = vunpack.c.l.b16 %v729
        %v1538 = vunpack.c.h.b16 %v729
        %v1539 = vunpack.c.l.b16 %v730
        %v1540 = vunpack.c.h.b16 %v730
        %v1541 = vunpack.c.l.b16 %v731
        %v1542 = vunpack.c.h.b16 %v731
        %v1543 = vunpack.c.l.b16 %v732
        %v1544 = vunpack.c.h.b16 %v732
        %v1545 = vunpack.c.l.b16 %v733
        %v1546 = vunpack.c.h.b16 %v733
        %v1547 = vunpack.c.l.b16 %v734
        %v1548 = vunpack.c.h.b16 %v734
        %v1549 = vunpack.c.l.b16 %v735
        %v1550 = vunpack.c.h.b16 %v735
        %v1551 = vunpack.c.l.b16 %v736
        %v1552 = vunpack.c.h.b16 %v736
        %v1553 = vunpack.c.l.b16 %v737
        %v1554 = vunpack.c.h.b16 %v737
        %v1555 = vunpack.c.l.b16 %v738
        %v1556 = vunpack.c.h.b16 %v738
        %v1557 = vunpack.c.l.b16 %v739
        %v1558 = vunpack.c.h.b16 %v739
        %v1559 = vunpack.c.l.b16 %v740
        %v1560 = vunpack.c.h.b16 %v740
        %v1561 = vunpack.c.l.b16 %v741
        %v1562 = vunpack.c.h.b16 %v741
        %v1563 = vunpack.c.l.b16 %v742
        %v1564 = vunpack.c.h.b16 %v742
        %v1565 = vunpack.c.l.b16 %v743
        %v1566 = vunpack.c.h.b16 %v743
        %v1567 = vunpack.c.l.b16 %v744
        %v1568 = vunpack.c.h.b16 %v744
        %v1569 = vunpack.c.l.b16 %v745
        %v1570 = vunpack.c.h.b16 %v745
        %v1571 = vunpack.c.l.b16 %v746
        %v1572 = vunpack.c.h.b16 %v746
        %v1573 = vunpack.c.l.b16 %v747
        %v1574 = vunpack.c.h.b16 %v747
        %v1575 = vunpack.c.l.b16 %v748
        %v1576 = vunpack.c.h.b16 %v748
        %v1577 = vunpack.c.l.b16 %v749
        %v1578 = vunpack.c.h.b16 %v749
        %v1579 = vunpack.c.l.b16 %v750
        %v1580 = vunpack.c.h.b16 %v750
        %v1581 = vunpack.c.l.b16 %v751
        %v1582 = vunpack.c.h.b16 %v751
        %v1583 = vunpack.c.l.b16 %v752
        %v1584 = vunpack.c.h.b16 %v752
        %v1585 = vunpack.c.l.b16 %v753
        %v1586 = vunpack.c.h.b16 %v753
        %v1587 = vunpack.c.l.b16 %v754
        %v1588 = vunpack.c.h.b16 %v754
        %v1589 = vunpack.c.l.b16 %v755
        %v1590 = vunpack.c.h.b16 %v755
        %v1591 = vunpack.c.l.b16 %v756
        %v1592 = vunpack.c.h.b16 %v756
        %v1593 = vunpack.c.l.b16 %v757
        %v1594 = vunpack.c.h.b16 %v757
        %v1595 = vunpack.c.l.b16 %v758
        %v1596 = vunpack.c.h.b16 %v758
        %v1597 = vunpack.c.l.b16 %v759
        %v1598 = vunpack.c.h.b16 %v759
        %v1599 = vunpack.c.l.b16 %v760
        %v1600 = vunpack.c.h.b16 %v760
        %v1601 = vunpack.c.l.b16 %v761
        %v1602 = vunpack.c.h.b16 %v761
        %v1603 = vunpack.c.l.b16 %v762
        %v1604 = vunpack.c.h.b16 %v762
        %v1605 = vunpack.c.l.b16 %v763
        %v1606 = vunpack.c.h.b16 %v763
        %v1607 = vunpack.c.l.b16 %v764
        %v1608 = vunpack.c.h.b16 %v764
        %v1609 = vunpack.c.l.b16 %v765
        %v1610 = vunpack.c.h.b16 %v765
        %v1611 = vunpack.c.l.b16 %v766
        %v1612 = vunpack.c.h.b16 %v766
        %v1613 = vunpack.c.l.b16 %v767
        %v1614 = vunpack.c.h.b16 %v767
        %v1615 = vunpack.c.l.b16 %v768
        %v1616 = vunpack.c.h.b16 %v768
        %v1617 = vunpack.c.l.b16 %v769
        %v1618 = vunpack.c.h.b16 %v769
        %v1619 = vunpack.c.l.b16 %v770
        %v1620 = vunpack.c.h.b16 %v770
        %v1621 = vunpack.c.l.b16 %v771
        %v1622 = vunpack.c.h.b16 %v771
        %v1623 = vunpack.c.l.b16 %v772
        %v1624 = vunpack.c.h.b16 %v772
        %v1625 = vunpack.c.l.b16 %v773
        %v1626 = vunpack.c.h.b16 %v773
        %v1627 = vunpack.c.l.b16 %v774
        %v1628 = vunpack.c.h.b16 %v774
        %v1629 = vpack.c.b16 %v1119, %v1117
        %v1630 = vpack.c.b16 %v1120, %v1118
        %v1631 = vpack.c.b16 %v1123, %v1121
        %v1632 = vpack.c.b16 %v1124, %v1122
        %v1633 = vpack.c.b16 %v1127, %v1125
        %v1634 = vpack.c.b16 %v1128, %v1126
        %v1635 = vpack.c.b16 %v1131, %v1129
        %v1636 = vpack.c.b16 %v1132, %v1130
        %v1637 = vpack.c.b16 %v1135, %v1133
        %v1638 = vpack.c.b16 %v1136, %v1134
        %v1639 = vpack.c.b16 %v1139, %v1137
        %v1640 = vpack.c.b16 %v1140, %v1138
        %v1641 = vpack.c.b16 %v1143, %v1141
        %v1642 = vpack.c.b16 %v1144, %v1142
        %v1643 = vpack.c.b16 %v1147, %v1145
        %v1644 = vpack.c.b16 %v1148, %v1146
        %v1645 = vpack.c.b16 %v1151, %v1149
        %v1646 = vpack.c.b16 %v1152, %v1150
        %v1647 = vpack.c.b16 %v1155, %v1153
        %v1648 = vpack.c.b16 %v1156, %v1154
        %v1649 = vpack.c.b16 %v1159, %v1157
        %v1650 = vpack.c.b16 %v1160, %v1158
        %v1651 = vpack.c.b16 %v1163, %v1161
        %v1652 = vpack.c.b16 %v1164, %v1162
        %v1653 = vpack.c.b16 %v1167, %v1165
        %v1654 = vpack.c.b16 %v1168, %v1166
        %v1655 = vpack.c.b16 %v1171, %v1169
        %v1656 = vpack.c.b16 %v1172, %v1170
        %v1657 = vpack.c.b16 %v1175, %v1173
        %v1658 = vpack.c.b16 %v1176, %v1174
        %v1659 = vpack.c.b16 %v1179, %v1177
        %v1660 = vpack.c.b16 %v1180, %v1178
        %v1661 = vpack.c.b16 %v1183, %v1181
        %v1662 = vpack.c.b16 %v1184, %v1182
        %v1663 = vpack.c.b16 %v1187, %v1185
        %v1664 = vpack.c.b16 %v1188, %v1186
        %v1665 = vpack.c.b16 %v1191, %v1189
        %v1666 = vpack.c.b16 %v1192, %v1190
        %v1667 = vpack.c.b16 %v1195, %v1193
        %v1668 = vpack.c.b16 %v1196, %v1194
        %v1669 = vpack.c.b16 %v1199, %v1197
        %v1670 = vpack.c.b16 %v1200, %v1198
        %v1671 = vpack.c.b16 %v1203, %v1201
        %v1672 = vpack.c.b16 %v1204, %v1202
        %v1673 = vpack.c.b16 %v1207, %v1205
        %v1674 = vpack.c.b16 %v1208, %v1206
        %v1675 = vpack.c.b16 %v1211, %v1209
        %v1676 = vpack.c.b16 %v1212, %v1210
        %v1677 = vpack.c.b16 %v1215, %v1213
        %v1678 = vpack.c.b16 %v1216, %v1214
        %v1679 = vpack.c.b16 %v1219, %v1217
        %v1680 = vpack.c.b16 %v1220, %v1218
        %v1681 = vpack.c.b16 %v1223, %v1221
        %v1682 = vpack.c.b16 %v1224, %v1222
        %v1683 = vpack.c.b16 %v1227, %v1225
        %v1684 = vpack.c.b16 %v1228, %v1226
        %v1685 = vpack.c.b16 %v1231, %v1229
        %v1686 = vpack.c.b16 %v1232, %v1230
        %v1687 = vpack.c.b16 %v1235, %v1233
        %v1688 = vpack.c.b16 %v1236, %v1234
        %v1689 = vpack.c.b16 %v1239, %v1237
        %v1690 = vpack.c.b16 %v1240, %v1238
        %v1691 = vpack.c.b16 %v1243, %v1241
        %v1692 = vpack.c.b16 %v1244, %v1242
        %v1693 = vpack.c.b16 %v1247, %v1245
        %v1694 = vpack.c.b16 %v1248, %v1246
        %v1695 = vpack.c.b16 %v1251, %v1249
        %v1696 = vpack.c.b16 %v1252, %v1250
        %v1697 = vpack.c.b16 %v1255, %v1253
        %v1698 = vpack.c.b16 %v1256, %v1254
        %v1699 = vpack.c.b16 %v1259, %v1257
        %v1700 = vpack.c.b16 %v1260, %v1258
        %v1701 = vpack.c.b16 %v1263, %v1261
        %v1702 = vpack.c.b16 %v1264, %v1262
        %v1703 = vpack.c.b16 %v1267, %v1265
        %v1704 = vpack.c.b16 %v1268, %v1266
        %v1705 = vpack.c.b16 %v1271, %v1269
        %v1706 = vpack.c.b16 %v1272, %v1270
        %v1707 = vpack.c.b16 %v1275, %v1273
        %v1708 = vpack.c.b16 %v1276, %v1274
        %v1709 = vpack.c.b16 %v1279, %v1277
        %v1710 = vpack.c.b16 %v1280, %v1278
        %v1711 = vpack.c.b16 %v1283, %v1281
        %v1712 = vpack.c.b16 %v1284, %v1282
        %v1713 = vpack.c.b16 %v1287, %v1285
        %v1714 = vpack.c.b16 %v1288, %v1286
        %v1715 = vpack.c.b16 %v1291, %v1289
        %v1716 = vpack.c.b16 %v1292, %v1290
        %v1717 = vpack.c.b16 %v1295, %v1293
        %v1718 = vpack.c.b16 %v1296, %v1294
        %v1719 = vpack.c.b16 %v1299, %v1297
        %v1720 = vpack.c.b16 %v1300, %v1298
        %v1721 = vpack.c.b16 %v1303, %v1301
        %v1722 = vpack.c.b16 %v1304, %v1302
        %v1723 = vpack.c.b16 %v1307, %v1305
        %v1724 = vpack.c.b16 %v1308, %v1306
        %v1725 = vpack.c.b16 %v1311, %v1309
        %v1726 = vpack.c.b16 %v1312, %v1310
        %v1727 = vpack.c.b16 %v1315, %v1313
        %v1728 = vpack.c.b16 %v1316, %v1314
        %v1729 = vpack.c.b16 %v1319, %v1317
        %v1730 = vpack.c.b16 %v1320, %v1318
        %v1731 = vpack.c.b16 %v1323, %v1321
        %v1732 = vpack.c.b16 %v1324, %v1322
        %v1733 = vpack.c.b16 %v1327, %v1325
        %v1734 = vpack.c.b16 %v1328, %v1326
        %v1735 = vpack.c.b16 %v1331, %v1329
        %v1736 = vpack.c.b16 %v1332, %v1330
        %v1737 = vpack.c.b16 %v1335, %v1333
        %v1738 = vpack.c.b16 %v1336, %v1334
        %v1739 = vpack.c.b16 %v1339, %v1337
        %v1740 = vpack.c.b16 %v1340, %v1338
        %v1741 = vpack.c.b16 %v1343, %v1341
        %v1742 = vpack.c.b16 %v1344, %v1342
        %v1743 = vpack.c.b16 %v1347, %v1345
        %v1744 = vpack.c.b16 %v1348, %v1346
        %v1745 = vpack.c.b16 %v1351, %v1349
        %v1746 = vpack.c.b16 %v1352, %v1350
        %v1747 = vpack.c.b16 %v1355, %v1353
        %v1748 = vpack.c.b16 %v1356, %v1354
        %v1749 = vpack.c.b16 %v1359, %v1357
        %v1750 = vpack.c.b16 %v1360, %v1358
        %v1751 = vpack.c.b16 %v1363, %v1361
        %v1752 = vpack.c.b16 %v1364, %v1362
        %v1753 = vpack.c.b16 %v1367, %v1365
        %v1754 = vpack.c.b16 %v1368, %v1366
        %v1755 = vpack.c.b16 %v1371, %v1369
        %v1756 = vpack.c.b16 %v1372, %v1370
        %v1757 = vpack.c.b16 %v1375, %v1373
        %v1758 = vpack.c.b16 %v1376, %v1374
        %v1759 = vpack.c.b16 %v1379, %v1377
        %v1760 = vpack.c.b16 %v1380, %v1378
        %v1761 = vpack.c.b16 %v1383, %v1381
        %v1762 = vpack.c.b16 %v1384, %v1382
        %v1763 = vpack.c.b16 %v1387, %v1385
        %v1764 = vpack.c.b16 %v1388, %v1386
        %v1765 = vpack.c.b16 %v1391, %v1389
        %v1766 = vpack.c.b16 %v1392, %v1390
        %v1767 = vpack.c.b16 %v1395, %v1393
        %v1768 = vpack.c.b16 %v1396, %v1394
        %v1769 = vpack.c.b16 %v1399, %v1397
        %v1770 = vpack.c.b16 %v1400, %v1398
        %v1771 = vpack.c.b16 %v1403, %v1401
        %v1772 = vpack.c.b16 %v1404, %v1402
        %v1773 = vpack.c.b16 %v1407, %v1405
        %v1774 = vpack.c.b16 %v1408, %v1406
        %v1775 = vpack.c.b16 %v1411, %v1409
        %v1776 = vpack.c.b16 %v1412, %v1410
        %v1777 = vpack.c.b16 %v1415, %v1413
        %v1778 = vpack.c.b16 %v1416, %v1414
        %v1779 = vpack.c.b16 %v1419, %v1417
        %v1780 = vpack.c.b16 %v1420, %v1418
        %v1781 = vpack.c.b16 %v1423, %v1421
        %v1782 = vpack.c.b16 %v1424, %v1422
        %v1783 = vpack.c.b16 %v1427, %v1425
        %v1784 = vpack.c.b16 %v1428, %v1426
        %v1785 = vpack.c.b16 %v1431, %v1429
        %v1786 = vpack.c.b16 %v1432, %v1430
        %v1787 = vpack.c.b16 %v1435, %v1433
        %v1788 = vpack.c.b16 %v1436, %v1434
        %v1789 = vpack.c.b16 %v1439, %v1437
        %v1790 = vpack.c.b16 %v1440, %v1438
        %v1791 = vpack.c.b16 %v1443, %v1441
        %v1792 = vpack.c.b16 %v1444, %v1442
        %v1793 = vpack.c.b16 %v1447, %v1445
        %v1794 = vpack.c.b16 %v1448, %v1446
        %v1795 = vpack.c.b16 %v1451, %v1449
        %v1796 = vpack.c.b16 %v1452, %v1450
        %v1797 = vpack.c.b16 %v1455, %v1453
        %v1798 = vpack.c.b16 %v1456, %v1454
        %v1799 = vpack.c.b16 %v1459, %v1457
        %v1800 = vpack.c.b16 %v1460, %v1458
        %v1801 = vpack.c.b16 %v1463, %v1461
        %v1802 = vpack.c.b16 %v1464, %v1462
        %v1803 = vpack.c.b16 %v1467, %v1465
        %v1804 = vpack.c.b16 %v1468, %v1466
        %v1805 = vpack.c.b16 %v1471, %v1469
        %v1806 = vpack.c.b16 %v1472, %v1470
        %v1807 = vpack.c.b16 %v1475, %v1473
        %v1808 = vpack.c.b16 %v1476, %v1474
        %v1809 = vpack.c.b16 %v1479, %v1477
        %v1810 = vpack.c.b16 %v1480, %v1478
        %v1811 = vpack.c.b16 %v1483, %v1481
        %v1812 = vpack.c.b16 %v1484, %v1482
        %v1813 = vpack.c.b16 %v1487, %v1485
        %v1814 = vpack.c.b16 %v1488, %v1486
        %v1815 = vpack.c.b16 %v1491, %v1489
        %v1816 = vpack.c.b16 %v1492, %v1490
        %v1817 = vpack.c.b16 %v1495, %v1493
        %v1818 = vpack.c.b16 %v1496, %v1494
        %v1819 = vpack.c.b16 %v1499, %v1497
        %v1820 = vpack.c.b16 %v1500, %v1498
        %v1821 = vpack.c.b16 %v1503, %v1501
        %v1822 = vpack.c.b16 %v1504, %v1502
        %v1823 = vpack.c.b16 %v1507, %v1505
        %v1824 = vpack.c.b16 %v1508, %v1506
        %v1825 = vpack.c.b16 %v1511, %v1509
        %v1826 = vpack.c.b16 %v1512, %v1510
        %v1827 = vpack.c.b16 %v1515, %v1513
        %v1828 = vpack.c.b16 %v1516, %v1514
        %v1829 = vpack.c.b16 %v1519, %v1517
        %v1830 = vpack.c.b16 %v1520, %v1518
        %v1831 = vpack.c.b16 %v1523, %v1521
        %v1832 = vpack.c.b16 %v1524, %v1522
        %v1833 = vpack.c.b16 %v1527, %v1525
        %v1834 = vpack.c.b16 %v1528, %v1526
        %v1835 = vpack.c.b16 %v1531, %v1529
        %v1836 = vpack.c.b16 %v1532, %v1530
        %v1837 = vpack.c.b16 %v1535, %v1533
        %v1838 = vpack.c.b16 %v1536, %v1534
        %v1839 = vpack.c.b16 %v1539, %v1537
        %v1840 = vpack.c.b16 %v1540, %v1538
        %v1841 = vpack.c.b16 %v1543, %v1541
        %v1842 = vpack.c.b16 %v1544, %v1542
        %v1843 = vpack.c.b16 %v1547, %v1545
        %v1844 = vpack.c.b16 %v1548, %v1546
        %v1845 = vpack.c.b16 %v1551, %v1549
        %v1846 = vpack.c.b16 %v1552, %v1550
        %v1847 = vpack.c.b16 %v1555, %v1553
        %v1848 = vpack.c.b16 %v1556, %v1554
        %v1849 = vpack.c.b16 %v1559, %v1557
        %v1850 = vpack.c.b16 %v1560, %v1558
        %v1851 = vpack.c.b16 %v1563, %v1561
        %v1852 = vpack.c.b16 %v1564, %v1562
        %v1853 = vpack.c.b16 %v1567, %v1565
        %v1854 = vpack.c.b16 %v1568, %v1566
        %v1855 = vpack.c.b16 %v1571, %v1569
        %v1856 = vpack.c.b16 %v1572, %v1570
        %v1857 = vpack.c.b16 %v1575, %v1573
        %v1858 = vpack.c.b16 %v1576, %v1574
        %v1859 = vpack.c.b16 %v1579, %v1577
        %v1860 = vpack.c.b16 %v1580, %v1578
        %v1861 = vpack.c.b16 %v1583, %v1581
        %v1862 = vpack.c.b16 %v1584, %v1582
        %v1863 = vpack.c.b16 %v1587, %v1585
        %v1864 = vpack.c.b16 %v1588, %v1586
        %v1865 = vpack.c.b16 %v1591, %v1589
        %v1866 = vpack.c.b16 %v1592, %v1590
        %v1867 = vpack.c.b16 %v1595, %v1593
        %v1868 = vpack.c.b16 %v1596, %v1594
        %v1869 = vpack.c.b16 %v1599, %v1597
        %v1870 = vpack.c.b16 %v1600, %v1598
        %v1871 = vpack.c.b16 %v1603, %v1601
        %v1872 = vpack.c.b16 %v1604, %v1602
        %v1873 = vpack.c.b16 %v1607, %v1605
        %v1874 = vpack.c.b16 %v1608, %v1606
        %v1875 = vpack.c.b16 %v1611, %v1609
        %v1876 = vpack.c.b16 %v1612, %v1610
        %v1877 = vpack.c.b16 %v1615, %v1613
        %v1878 = vpack.c.b16 %v1616, %v1614
        %v1879 = vpack.c.b16 %v1619, %v1617
        %v1880 = vpack.c.b16 %v1620, %v1618
        %v1881 = vpack.c.b16 %v1623, %v1621
        %v1882 = vpack.c.b16 %v1624, %v1622
        %v1883 = vpack.c.b16 %v1627, %v1625
        %v1884 = vpack.c.b16 %v1628, %v1626
        %2141 = vmatpush.bf16.msra.mxu0 %v1643
        %2142 = vmatpush.bf16.msra.mxu0 %v1641
        %2143 = vmatpush.bf16.msra.mxu0 %v1639
        %2144 = vmatpush.bf16.msra.mxu0 %v1637
        %2145 = vmatpush.bf16.msra.mxu0 %v1635
        %2146 = vmatpush.bf16.msra.mxu0 %v1633
        %2147 = vmatpush.bf16.msra.mxu0 %v1631
        %2148 = vmatpush.bf16.msra.mxu0 %v1629
        %2149 = vmatmul.bf16.gmra.mxu0 %v829
        %v2150 = vpop.f32.mrf.mxu0
        %v2151 = vadd.f32 %v777, %v2150
        %v2152 = vpop.f32.mrf.mxu0
        %v2153 = vadd.f32 %v777, %v2152
        %2154 = vdwg.mxu0
        %2155 = vmatpush.bf16.msra.mxu0 %v1659
        %2156 = vmatpush.bf16.msra.mxu0 %v1657
        %2157 = vmatpush.bf16.msra.mxu0 %v1655
        %2158 = vmatpush.bf16.msra.mxu0 %v1653
        %2159 = vmatpush.bf16.msra.mxu0 %v1651
        %2160 = vmatpush.bf16.msra.mxu0 %v1649
        %2161 = vmatpush.bf16.msra.mxu0 %v1647
        %2162 = vmatpush.bf16.msra.mxu0 %v1645
        %2163 = vmatmul.bf16.gmra.mxu0 %v830
        %v2164 = vpop.f32.mrf.mxu0
        %v2165 = vadd.f32 %v2151, %v2164
        %v2166 = vpop.f32.mrf.mxu0
        %v2167 = vadd.f32 %v2153, %v2166
        %2168 = vdwg.mxu0
        %2169 = vmatpush.bf16.msra.mxu0 %v1675
        %2170 = vmatpush.bf16.msra.mxu0 %v1673
        %2171 = vmatpush.bf16.msra.mxu0 %v1671
        %2172 = vmatpush.bf16.msra.mxu0 %v1669
        %2173 = vmatpush.bf16.msra.mxu0 %v1667
        %2174 = vmatpush.bf16.msra.mxu0 %v1665
        %2175 = vmatpush.bf16.msra.mxu0 %v1663
        %2176 = vmatpush.bf16.msra.mxu0 %v1661
        %2177 = vmatmul.bf16.gmra.mxu0 %v831
        %v2178 = vpop.f32.mrf.mxu0
        %v2179 = vadd.f32 %v2165, %v2178
        %v2180 = vpop.f32.mrf.mxu0
        %v2181 = vadd.f32 %v2167, %v2180
        %2182 = vdwg.mxu0
        %2183 = vmatpush.bf16.msra.mxu0 %v1691
        %2184 = vmatpush.bf16.msra.mxu0 %v1689
        %2185 = vmatpush.bf16.msra.mxu0 %v1687
        %2186 = vmatpush.bf16.msra.mxu0 %v1685
        %2187 = vmatpush.bf16.msra.mxu0 %v1683
        %2188 = vmatpush.bf16.msra.mxu0 %v1681
        %2189 = vmatpush.bf16.msra.mxu0 %v1679
        %2190 = vmatpush.bf16.msra.mxu0 %v1677
        %2191 = vmatmul.bf16.gmra.mxu0 %v832
        %v2192 = vpop.f32.mrf.mxu0
        %v2193 = vadd.f32 %v2179, %v2192
        %v2194 = vpop.f32.mrf.mxu0
        %v2195 = vadd.f32 %v2181, %v2194
        %2196 = vdwg.mxu0
        %2197 = vmatpush.bf16.msra.mxu0 %v1707
        %2198 = vmatpush.bf16.msra.mxu0 %v1705
        %2199 = vmatpush.bf16.msra.mxu0 %v1703
        %2200 = vmatpush.bf16.msra.mxu0 %v1701
        %2201 = vmatpush.bf16.msra.mxu0 %v1699
        %2202 = vmatpush.bf16.msra.mxu0 %v1697
        %2203 = vmatpush.bf16.msra.mxu0 %v1695
        %2204 = vmatpush.bf16.msra.mxu0 %v1693
        %2205 = vmatmul.bf16.gmra.mxu0 %v833
        %v2206 = vpop.f32.mrf.mxu0
        %v2207 = vadd.f32 %v2193, %v2206
        %v2208 = vpop.f32.mrf.mxu0
        %v2209 = vadd.f32 %v2195, %v2208
        %2210 = vdwg.mxu0
        %2211 = vmatpush.bf16.msra.mxu0 %v1723
        %2212 = vmatpush.bf16.msra.mxu0 %v1721
        %2213 = vmatpush.bf16.msra.mxu0 %v1719
        %2214 = vmatpush.bf16.msra.mxu0 %v1717
        %2215 = vmatpush.bf16.msra.mxu0 %v1715
        %2216 = vmatpush.bf16.msra.mxu0 %v1713
        %2217 = vmatpush.bf16.msra.mxu0 %v1711
        %2218 = vmatpush.bf16.msra.mxu0 %v1709
        %2219 = vmatmul.bf16.gmra.mxu0 %v834
        %v2220 = vpop.f32.mrf.mxu0
        %v2221 = vadd.f32 %v2207, %v2220
        %v2222 = vpop.f32.mrf.mxu0
        %v2223 = vadd.f32 %v2209, %v2222
        %2224 = vdwg.mxu0
        %2225 = vmatpush.bf16.msra.mxu0 %v1739
        %2226 = vmatpush.bf16.msra.mxu0 %v1737
        %2227 = vmatpush.bf16.msra.mxu0 %v1735
        %2228 = vmatpush.bf16.msra.mxu0 %v1733
        %2229 = vmatpush.bf16.msra.mxu0 %v1731
        %2230 = vmatpush.bf16.msra.mxu0 %v1729
        %2231 = vmatpush.bf16.msra.mxu0 %v1727
        %2232 = vmatpush.bf16.msra.mxu0 %v1725
        %2233 = vmatmul.bf16.gmra.mxu0 %v835
        %v2234 = vpop.f32.mrf.mxu0
        %v2235 = vadd.f32 %v2221, %v2234
        %v2236 = vpop.f32.mrf.mxu0
        %v2237 = vadd.f32 %v2223, %v2236
        %2238 = vdwg.mxu0
        %2239 = vmatpush.bf16.msra.mxu0 %v1755
        %2240 = vmatpush.bf16.msra.mxu0 %v1753
        %2241 = vmatpush.bf16.msra.mxu0 %v1751
        %2242 = vmatpush.bf16.msra.mxu0 %v1749
        %2243 = vmatpush.bf16.msra.mxu0 %v1747
        %2244 = vmatpush.bf16.msra.mxu0 %v1745
        %2245 = vmatpush.bf16.msra.mxu0 %v1743
        %2246 = vmatpush.bf16.msra.mxu0 %v1741
        %2247 = vmatmul.bf16.gmra.mxu0 %v836
        %v2248 = vpop.f32.mrf.mxu0
        %v2249 = vadd.f32 %v2235, %v2248
        %v2250 = vpop.f32.mrf.mxu0
        %v2251 = vadd.f32 %v2237, %v2250
        %2252 = vdwg.mxu0
        %2253 = vmatpush.bf16.msra.mxu0 %v1771
        %2254 = vmatpush.bf16.msra.mxu0 %v1769
        %2255 = vmatpush.bf16.msra.mxu0 %v1767
        %2256 = vmatpush.bf16.msra.mxu0 %v1765
        %2257 = vmatpush.bf16.msra.mxu0 %v1763
        %2258 = vmatpush.bf16.msra.mxu0 %v1761
        %2259 = vmatpush.bf16.msra.mxu0 %v1759
        %2260 = vmatpush.bf16.msra.mxu0 %v1757
        %2261 = vmatmul.bf16.gmra.mxu0 %v837
        %v2262 = vpop.f32.mrf.mxu0
        %v2263 = vadd.f32 %v2249, %v2262
        %v2264 = vpop.f32.mrf.mxu0
        %v2265 = vadd.f32 %v2251, %v2264
        %2266 = vdwg.mxu0
        %2267 = vmatpush.bf16.msra.mxu0 %v1787
        %2268 = vmatpush.bf16.msra.mxu0 %v1785
        %2269 = vmatpush.bf16.msra.mxu0 %v1783
        %2270 = vmatpush.bf16.msra.mxu0 %v1781
        %2271 = vmatpush.bf16.msra.mxu0 %v1779
        %2272 = vmatpush.bf16.msra.mxu0 %v1777
        %2273 = vmatpush.bf16.msra.mxu0 %v1775
        %2274 = vmatpush.bf16.msra.mxu0 %v1773
        %2275 = vmatmul.bf16.gmra.mxu0 %v838
        %v2276 = vpop.f32.mrf.mxu0
        %v2277 = vadd.f32 %v2263, %v2276
        %v2278 = vpop.f32.mrf.mxu0
        %v2279 = vadd.f32 %v2265, %v2278
        %2280 = vdwg.mxu0
        %2281 = vmatpush.bf16.msra.mxu0 %v1803
        %2282 = vmatpush.bf16.msra.mxu0 %v1801
        %2283 = vmatpush.bf16.msra.mxu0 %v1799
        %2284 = vmatpush.bf16.msra.mxu0 %v1797
        %2285 = vmatpush.bf16.msra.mxu0 %v1795
        %2286 = vmatpush.bf16.msra.mxu0 %v1793
        %2287 = vmatpush.bf16.msra.mxu0 %v1791
        %2288 = vmatpush.bf16.msra.mxu0 %v1789
        %2289 = vmatmul.bf16.gmra.mxu0 %v839
        %v2290 = vpop.f32.mrf.mxu0
        %v2291 = vadd.f32 %v2277, %v2290
        %v2292 = vpop.f32.mrf.mxu0
        %v2293 = vadd.f32 %v2279, %v2292
        %2294 = vdwg.mxu0
        %2295 = vmatpush.bf16.msra.mxu0 %v1819
        %2296 = vmatpush.bf16.msra.mxu0 %v1817
        %2297 = vmatpush.bf16.msra.mxu0 %v1815
        %2298 = vmatpush.bf16.msra.mxu0 %v1813
        %2299 = vmatpush.bf16.msra.mxu0 %v1811
        %2300 = vmatpush.bf16.msra.mxu0 %v1809
        %2301 = vmatpush.bf16.msra.mxu0 %v1807
        %2302 = vmatpush.bf16.msra.mxu0 %v1805
        %2303 = vmatmul.bf16.gmra.mxu0 %v840
        %v2304 = vpop.f32.mrf.mxu0
        %v2305 = vadd.f32 %v2291, %v2304
        %v2306 = vpop.f32.mrf.mxu0
        %v2307 = vadd.f32 %v2293, %v2306
        %2308 = vdwg.mxu0
        %2309 = vmatpush.bf16.msra.mxu0 %v1835
        %2310 = vmatpush.bf16.msra.mxu0 %v1833
        %2311 = vmatpush.bf16.msra.mxu0 %v1831
        %2312 = vmatpush.bf16.msra.mxu0 %v1829
        %2313 = vmatpush.bf16.msra.mxu0 %v1827
        %2314 = vmatpush.bf16.msra.mxu0 %v1825
        %2315 = vmatpush.bf16.msra.mxu0 %v1823
        %2316 = vmatpush.bf16.msra.mxu0 %v1821
        %2317 = vmatmul.bf16.gmra.mxu0 %v841
        %v2318 = vpop.f32.mrf.mxu0
        %v2319 = vadd.f32 %v2305, %v2318
        %v2320 = vpop.f32.mrf.mxu0
        %v2321 = vadd.f32 %v2307, %v2320
        %2322 = vdwg.mxu0
        %2323 = vmatpush.bf16.msra.mxu0 %v1851
        %2324 = vmatpush.bf16.msra.mxu0 %v1849
        %2325 = vmatpush.bf16.msra.mxu0 %v1847
        %2326 = vmatpush.bf16.msra.mxu0 %v1845
        %2327 = vmatpush.bf16.msra.mxu0 %v1843
        %2328 = vmatpush.bf16.msra.mxu0 %v1841
        %2329 = vmatpush.bf16.msra.mxu0 %v1839
        %2330 = vmatpush.bf16.msra.mxu0 %v1837
        %2331 = vmatmul.bf16.gmra.mxu0 %v842
        %v2332 = vpop.f32.mrf.mxu0
        %v2333 = vadd.f32 %v2319, %v2332
        %v2334 = vpop.f32.mrf.mxu0
        %v2335 = vadd.f32 %v2321, %v2334
        %2336 = vdwg.mxu0
        %2337 = vmatpush.bf16.msra.mxu0 %v1867
        %2338 = vmatpush.bf16.msra.mxu0 %v1865
        %2339 = vmatpush.bf16.msra.mxu0 %v1863
        %2340 = vmatpush.bf16.msra.mxu0 %v1861
        %2341 = vmatpush.bf16.msra.mxu0 %v1859
        %2342 = vmatpush.bf16.msra.mxu0 %v1857
        %2343 = vmatpush.bf16.msra.mxu0 %v1855
        %2344 = vmatpush.bf16.msra.mxu0 %v1853
        %2345 = vmatmul.bf16.gmra.mxu0 %v843
        %v2346 = vpop.f32.mrf.mxu0
        %v2347 = vadd.f32 %v2333, %v2346
        %v2348 = vpop.f32.mrf.mxu0
        %v2349 = vadd.f32 %v2335, %v2348
        %2350 = vdwg.mxu0
        %2351 = vmatpush.bf16.msra.mxu0 %v1883
        %2352 = vmatpush.bf16.msra.mxu0 %v1881
        %2353 = vmatpush.bf16.msra.mxu0 %v1879
        %2354 = vmatpush.bf16.msra.mxu0 %v1877
        %2355 = vmatpush.bf16.msra.mxu0 %v1875
        %2356 = vmatpush.bf16.msra.mxu0 %v1873
        %2357 = vmatpush.bf16.msra.mxu0 %v1871
        %2358 = vmatpush.bf16.msra.mxu0 %v1869
        %2359 = vmatmul.bf16.gmra.mxu0 %v844
        %v2360 = vpop.f32.mrf.mxu0
        %v2361 = vadd.f32 %v2347, %v2360
        %v2362 = vpop.f32.mrf.mxu0
        %v2363 = vadd.f32 %v2349, %v2362
        %2364 = vdwg.mxu0
        %2365 = vmatpush.bf16.msra.mxu0 %v1644
        %2366 = vmatpush.bf16.msra.mxu0 %v1642
        %2367 = vmatpush.bf16.msra.mxu0 %v1640
        %2368 = vmatpush.bf16.msra.mxu0 %v1638
        %2369 = vmatpush.bf16.msra.mxu0 %v1636
        %2370 = vmatpush.bf16.msra.mxu0 %v1634
        %2371 = vmatpush.bf16.msra.mxu0 %v1632
        %2372 = vmatpush.bf16.msra.mxu0 %v1630
        %2373 = vmatmul.bf16.gmra.mxu0 %v829
        %v2374 = vpop.f32.mrf.mxu0
        %v2375 = vadd.f32 %v778, %v2374
        %v2376 = vpop.f32.mrf.mxu0
        %v2377 = vadd.f32 %v778, %v2376
        %2378 = vdwg.mxu0
        %2379 = vmatpush.bf16.msra.mxu0 %v1660
        %2380 = vmatpush.bf16.msra.mxu0 %v1658
        %2381 = vmatpush.bf16.msra.mxu0 %v1656
        %2382 = vmatpush.bf16.msra.mxu0 %v1654
        %2383 = vmatpush.bf16.msra.mxu0 %v1652
        %2384 = vmatpush.bf16.msra.mxu0 %v1650
        %2385 = vmatpush.bf16.msra.mxu0 %v1648
        %2386 = vmatpush.bf16.msra.mxu0 %v1646
        %2387 = vmatmul.bf16.gmra.mxu0 %v830
        %v2388 = vpop.f32.mrf.mxu0
        %v2389 = vadd.f32 %v2375, %v2388
        %v2390 = vpop.f32.mrf.mxu0
        %v2391 = vadd.f32 %v2377, %v2390
        %2392 = vdwg.mxu0
        %2393 = vmatpush.bf16.msra.mxu0 %v1676
        %2394 = vmatpush.bf16.msra.mxu0 %v1674
        %2395 = vmatpush.bf16.msra.mxu0 %v1672
        %2396 = vmatpush.bf16.msra.mxu0 %v1670
        %2397 = vmatpush.bf16.msra.mxu0 %v1668
        %2398 = vmatpush.bf16.msra.mxu0 %v1666
        %2399 = vmatpush.bf16.msra.mxu0 %v1664
        %2400 = vmatpush.bf16.msra.mxu0 %v1662
        %2401 = vmatmul.bf16.gmra.mxu0 %v831
        %v2402 = vpop.f32.mrf.mxu0
        %v2403 = vadd.f32 %v2389, %v2402
        %v2404 = vpop.f32.mrf.mxu0
        %v2405 = vadd.f32 %v2391, %v2404
        %2406 = vdwg.mxu0
        %2407 = vmatpush.bf16.msra.mxu0 %v1692
        %2408 = vmatpush.bf16.msra.mxu0 %v1690
        %2409 = vmatpush.bf16.msra.mxu0 %v1688
        %2410 = vmatpush.bf16.msra.mxu0 %v1686
        %2411 = vmatpush.bf16.msra.mxu0 %v1684
        %2412 = vmatpush.bf16.msra.mxu0 %v1682
        %2413 = vmatpush.bf16.msra.mxu0 %v1680
        %2414 = vmatpush.bf16.msra.mxu0 %v1678
        %2415 = vmatmul.bf16.gmra.mxu0 %v832
        %v2416 = vpop.f32.mrf.mxu0
        %v2417 = vadd.f32 %v2403, %v2416
        %v2418 = vpop.f32.mrf.mxu0
        %v2419 = vadd.f32 %v2405, %v2418
        %2420 = vdwg.mxu0
        %2421 = vmatpush.bf16.msra.mxu0 %v1708
        %2422 = vmatpush.bf16.msra.mxu0 %v1706
        %2423 = vmatpush.bf16.msra.mxu0 %v1704
        %2424 = vmatpush.bf16.msra.mxu0 %v1702
        %2425 = vmatpush.bf16.msra.mxu0 %v1700
        %2426 = vmatpush.bf16.msra.mxu0 %v1698
        %2427 = vmatpush.bf16.msra.mxu0 %v1696
        %2428 = vmatpush.bf16.msra.mxu0 %v1694
        %2429 = vmatmul.bf16.gmra.mxu0 %v833
        %v2430 = vpop.f32.mrf.mxu0
        %v2431 = vadd.f32 %v2417, %v2430
        %v2432 = vpop.f32.mrf.mxu0
        %v2433 = vadd.f32 %v2419, %v2432
        %2434 = vdwg.mxu0
        %2435 = vmatpush.bf16.msra.mxu0 %v1724
        %2436 = vmatpush.bf16.msra.mxu0 %v1722
        %2437 = vmatpush.bf16.msra.mxu0 %v1720
        %2438 = vmatpush.bf16.msra.mxu0 %v1718
        %2439 = vmatpush.bf16.msra.mxu0 %v1716
        %2440 = vmatpush.bf16.msra.mxu0 %v1714
        %2441 = vmatpush.bf16.msra.mxu0 %v1712
        %2442 = vmatpush.bf16.msra.mxu0 %v1710
        %2443 = vmatmul.bf16.gmra.mxu0 %v834
        %v2444 = vpop.f32.mrf.mxu0
        %v2445 = vadd.f32 %v2431, %v2444
        %v2446 = vpop.f32.mrf.mxu0
        %v2447 = vadd.f32 %v2433, %v2446
        %2448 = vdwg.mxu0
        %2449 = vmatpush.bf16.msra.mxu0 %v1740
        %2450 = vmatpush.bf16.msra.mxu0 %v1738
        %2451 = vmatpush.bf16.msra.mxu0 %v1736
        %2452 = vmatpush.bf16.msra.mxu0 %v1734
        %2453 = vmatpush.bf16.msra.mxu0 %v1732
        %2454 = vmatpush.bf16.msra.mxu0 %v1730
        %2455 = vmatpush.bf16.msra.mxu0 %v1728
        %2456 = vmatpush.bf16.msra.mxu0 %v1726
        %2457 = vmatmul.bf16.gmra.mxu0 %v835
        %v2458 = vpop.f32.mrf.mxu0
        %v2459 = vadd.f32 %v2445, %v2458
        %v2460 = vpop.f32.mrf.mxu0
        %v2461 = vadd.f32 %v2447, %v2460
        %2462 = vdwg.mxu0
        %2463 = vmatpush.bf16.msra.mxu0 %v1756
        %2464 = vmatpush.bf16.msra.mxu0 %v1754
        %2465 = vmatpush.bf16.msra.mxu0 %v1752
        %2466 = vmatpush.bf16.msra.mxu0 %v1750
        %2467 = vmatpush.bf16.msra.mxu0 %v1748
        %2468 = vmatpush.bf16.msra.mxu0 %v1746
        %2469 = vmatpush.bf16.msra.mxu0 %v1744
        %2470 = vmatpush.bf16.msra.mxu0 %v1742
        %2471 = vmatmul.bf16.gmra.mxu0 %v836
        %v2472 = vpop.f32.mrf.mxu0
        %v2473 = vadd.f32 %v2459, %v2472
        %v2474 = vpop.f32.mrf.mxu0
        %v2475 = vadd.f32 %v2461, %v2474
        %2476 = vdwg.mxu0
        %2477 = vmatpush.bf16.msra.mxu0 %v1772
        %2478 = vmatpush.bf16.msra.mxu0 %v1770
        %2479 = vmatpush.bf16.msra.mxu0 %v1768
        %2480 = vmatpush.bf16.msra.mxu0 %v1766
        %2481 = vmatpush.bf16.msra.mxu0 %v1764
        %2482 = vmatpush.bf16.msra.mxu0 %v1762
        %2483 = vmatpush.bf16.msra.mxu0 %v1760
        %2484 = vmatpush.bf16.msra.mxu0 %v1758
        %2485 = vmatmul.bf16.gmra.mxu0 %v837
        %v2486 = vpop.f32.mrf.mxu0
        %v2487 = vadd.f32 %v2473, %v2486
        %v2488 = vpop.f32.mrf.mxu0
        %v2489 = vadd.f32 %v2475, %v2488
        %2490 = vdwg.mxu0
        %2491 = vmatpush.bf16.msra.mxu0 %v1788
        %2492 = vmatpush.bf16.msra.mxu0 %v1786
        %2493 = vmatpush.bf16.msra.mxu0 %v1784
        %2494 = vmatpush.bf16.msra.mxu0 %v1782
        %2495 = vmatpush.bf16.msra.mxu0 %v1780
        %2496 = vmatpush.bf16.msra.mxu0 %v1778
        %2497 = vmatpush.bf16.msra.mxu0 %v1776
        %2498 = vmatpush.bf16.msra.mxu0 %v1774
        %2499 = vmatmul.bf16.gmra.mxu0 %v838
        %v2500 = vpop.f32.mrf.mxu0
        %v2501 = vadd.f32 %v2487, %v2500
        %v2502 = vpop.f32.mrf.mxu0
        %v2503 = vadd.f32 %v2489, %v2502
        %2504 = vdwg.mxu0
        %2505 = vmatpush.bf16.msra.mxu0 %v1804
        %2506 = vmatpush.bf16.msra.mxu0 %v1802
        %2507 = vmatpush.bf16.msra.mxu0 %v1800
        %2508 = vmatpush.bf16.msra.mxu0 %v1798
        %2509 = vmatpush.bf16.msra.mxu0 %v1796
        %2510 = vmatpush.bf16.msra.mxu0 %v1794
        %2511 = vmatpush.bf16.msra.mxu0 %v1792
        %2512 = vmatpush.bf16.msra.mxu0 %v1790
        %2513 = vmatmul.bf16.gmra.mxu0 %v839
        %v2514 = vpop.f32.mrf.mxu0
        %v2515 = vadd.f32 %v2501, %v2514
        %v2516 = vpop.f32.mrf.mxu0
        %v2517 = vadd.f32 %v2503, %v2516
        %2518 = vdwg.mxu0
        %2519 = vmatpush.bf16.msra.mxu0 %v1820
        %2520 = vmatpush.bf16.msra.mxu0 %v1818
        %2521 = vmatpush.bf16.msra.mxu0 %v1816
        %2522 = vmatpush.bf16.msra.mxu0 %v1814
        %2523 = vmatpush.bf16.msra.mxu0 %v1812
        %2524 = vmatpush.bf16.msra.mxu0 %v1810
        %2525 = vmatpush.bf16.msra.mxu0 %v1808
        %2526 = vmatpush.bf16.msra.mxu0 %v1806
        %2527 = vmatmul.bf16.gmra.mxu0 %v840
        %v2528 = vpop.f32.mrf.mxu0
        %v2529 = vadd.f32 %v2515, %v2528
        %v2530 = vpop.f32.mrf.mxu0
        %v2531 = vadd.f32 %v2517, %v2530
        %2532 = vdwg.mxu0
        %2533 = vmatpush.bf16.msra.mxu0 %v1836
        %2534 = vmatpush.bf16.msra.mxu0 %v1834
        %2535 = vmatpush.bf16.msra.mxu0 %v1832
        %2536 = vmatpush.bf16.msra.mxu0 %v1830
        %2537 = vmatpush.bf16.msra.mxu0 %v1828
        %2538 = vmatpush.bf16.msra.mxu0 %v1826
        %2539 = vmatpush.bf16.msra.mxu0 %v1824
        %2540 = vmatpush.bf16.msra.mxu0 %v1822
        %2541 = vmatmul.bf16.gmra.mxu0 %v841
        %v2542 = vpop.f32.mrf.mxu0
        %v2543 = vadd.f32 %v2529, %v2542
        %v2544 = vpop.f32.mrf.mxu0
        %v2545 = vadd.f32 %v2531, %v2544
        %2546 = vdwg.mxu0
        %2547 = vmatpush.bf16.msra.mxu0 %v1852
        %2548 = vmatpush.bf16.msra.mxu0 %v1850
        %2549 = vmatpush.bf16.msra.mxu0 %v1848
        %2550 = vmatpush.bf16.msra.mxu0 %v1846
        %2551 = vmatpush.bf16.msra.mxu0 %v1844
        %2552 = vmatpush.bf16.msra.mxu0 %v1842
        %2553 = vmatpush.bf16.msra.mxu0 %v1840
        %2554 = vmatpush.bf16.msra.mxu0 %v1838
        %2555 = vmatmul.bf16.gmra.mxu0 %v842
        %v2556 = vpop.f32.mrf.mxu0
        %v2557 = vadd.f32 %v2543, %v2556
        %v2558 = vpop.f32.mrf.mxu0
        %v2559 = vadd.f32 %v2545, %v2558
        %2560 = vdwg.mxu0
        %2561 = vmatpush.bf16.msra.mxu0 %v1868
        %2562 = vmatpush.bf16.msra.mxu0 %v1866
        %2563 = vmatpush.bf16.msra.mxu0 %v1864
        %2564 = vmatpush.bf16.msra.mxu0 %v1862
        %2565 = vmatpush.bf16.msra.mxu0 %v1860
        %2566 = vmatpush.bf16.msra.mxu0 %v1858
        %2567 = vmatpush.bf16.msra.mxu0 %v1856
        %2568 = vmatpush.bf16.msra.mxu0 %v1854
        %2569 = vmatmul.bf16.gmra.mxu0 %v843
        %v2570 = vpop.f32.mrf.mxu0
        %v2571 = vadd.f32 %v2557, %v2570
        %v2572 = vpop.f32.mrf.mxu0
        %v2573 = vadd.f32 %v2559, %v2572
        %2574 = vdwg.mxu0
        %2575 = vmatpush.bf16.msra.mxu0 %v1884
        %2576 = vmatpush.bf16.msra.mxu0 %v1882
        %2577 = vmatpush.bf16.msra.mxu0 %v1880
        %2578 = vmatpush.bf16.msra.mxu0 %v1878
        %2579 = vmatpush.bf16.msra.mxu0 %v1876
        %2580 = vmatpush.bf16.msra.mxu0 %v1874
        %2581 = vmatpush.bf16.msra.mxu0 %v1872
        %2582 = vmatpush.bf16.msra.mxu0 %v1870
        %2583 = vmatmul.bf16.gmra.mxu0 %v844
        %v2584 = vpop.f32.mrf.mxu0
        %v2585 = vadd.f32 %v2571, %v2584
        %v2586 = vpop.f32.mrf.mxu0
        %v2587 = vadd.f32 %v2573, %v2586
        %2588 = vdwg.mxu0
        %v2589 = vmul.f32 %v500, 0.125
        %v2590 = vpack.c.bf16 %v2589, %v2589
        %v2591 = vpack.c.bf16 %v2585, %v2361
        %v2592 = vpack.c.bf16 %v2587, %v2363
        %v2593 = vld [vmem:[%s415] sm:$0x3]
        %v2594 = vunpack.c.0.s8 %v2593
        %v2595 = vcvt.s32.f32 %v2594
        %vm2596 = vcmp.gt.f32.partialorder %v2595, 0.5
        %v2599 = vunpack.c.l.b16 %v2591
        %v2600 = vunpack.c.l.b16 %v2592
        %v2601 = vpack.c.b16 %v2600, %v2599
        %vm2602 = vcmask 523264
        %v2604 = vsel %vm2602, %v2590, 0
        %v2607 = vsel %vm2602, %v2601, 0
        %2609 = vmatpush.bf16.xpose.msra.mxu0 0
        %2610 = vmatpush.bf16.xpose.msra.mxu0 0
        %2611 = vmatpush.bf16.xpose.msra.mxu0 0
        %2612 = vmatpush.bf16.xpose.msra.mxu0 0
        %2613 = vmatpush.bf16.xpose.msra.mxu0 0
        %2614 = vmatpush.bf16.xpose.msra.mxu0 0
        %2615 = vmatpush.bf16.xpose.msra.mxu0 0
        %2616 = vmatpush.bf16.xpose.msra.mxu0 %v2607
        %2617 = vmatmul.bf16.gmra.mxu0 %v2604
        %v2618 = vpop.f32.mrf.mxu0
        %v2619 = vadd.f32 0.0, %v2618
        %v2620 = vpop.f32.mrf.mxu0
        %2621 = vdwg.mxu0
        %v2622 = vsel %vm2596, -1e+09, %v2619
        %vm2623 = vcmask 130048
        %v2624 = vsel %vm2623, %v2622, -inf
        %2625 = vmax.xlane.f32.xlu0 %v2624
        %v2626 = vpop.xlane.xlu0 %2625
        %v2627 = vsub.f32 %v2622, %v2626
        %v2628 = vmul.f32 %v2627, 1.442695
        %v2629 = vpow.pop %v2628
        %v2630 = vsel %vm2623, %v2629, 0.0
        %2631 = vadd.xlane.f32.xlu0 %v2630
        %v2632 = vpop.xlane.xlu0 %2631
        %v2633 = vrcp.pop %v2632
        %v2634 = vmul.f32 %v2629, %v2633
        %2635 = vst.msk [vmem:[%s402] sm:$0xff] %vm2623, %v2634
        %v2636 = vpack.c.bf16 %v2634, %v2634
        %v2637 = vunpack.c.h.b16 %v2591
        %v2638 = vunpack.c.h.b16 %v2592
        %v2639 = vpack.c.b16 %v2638, %v2637
        %v2642 = vsel %vm2623, %v2636, 0
        %2644 = vmatpush.bf16.msra.mxu0 0
        %2645 = vmatpush.bf16.msra.mxu0 0
        %2646 = vmatpush.bf16.msra.mxu0 0
        %2647 = vmatpush.bf16.msra.mxu0 0
        %2648 = vmatpush.bf16.msra.mxu0 0
        %2649 = vmatpush.bf16.msra.mxu0 0
        %2650 = vmatpush.bf16.msra.mxu0 0
        %2651 = vmatpush.bf16.msra.mxu0 %v2639
        %2652 = vmatmul.bf16.gmra.mxu0 %v2642
        %v2653 = vpop.f32.mrf.mxu0
        %v2654 = vadd.f32 0.0, %v2653
        %v2655 = vpop.f32.mrf.mxu0
        %2656 = vdwg.mxu0
        %v2658 = vunpack.c.l.b16 %v2590
        %v2659 = vpack.c.b16 %v2658, %v2658
        %2660 = vrot.lane.b32.xlu0 %v2659, 64
        %v2661 = vpop.permute.xlu0 %2660
        %2662 = vrot.lane.b32.xlu0 %v2601, 64
        %v2663 = vpop.permute.xlu0 %2662
        %v2665 = vsel %vm2602, %v2661, 0
        %v2668 = vsel %vm2602, %v2663, 0
        %2670 = vmatpush.bf16.xpose.msra.mxu0 0
        %2671 = vmatpush.bf16.xpose.msra.mxu0 0
        %2672 = vmatpush.bf16.xpose.msra.mxu0 0
        %2673 = vmatpush.bf16.xpose.msra.mxu0 0
        %2674 = vmatpush.bf16.xpose.msra.mxu0 0
        %2675 = vmatpush.bf16.xpose.msra.mxu0 0
        %2676 = vmatpush.bf16.xpose.msra.mxu0 0
        %2677 = vmatpush.bf16.xpose.msra.mxu0 %v2668
        %2678 = vmatmul.bf16.gmra.mxu0 %v2665
        %v2679 = vpop.f32.mrf.mxu0
        %v2680 = vadd.f32 0.0, %v2679
        %v2681 = vpop.f32.mrf.mxu0
        %2682 = vdwg.mxu0
        %v2683 = vsel %vm2596, -1e+09, %v2680
        %v2684 = vsel %vm2623, %v2683, -inf
        %2685 = vmax.xlane.f32.xlu0 %v2684
        %v2686 = vpop.xlane.xlu0 %2685
        %v2687 = vsub.f32 %v2683, %v2686
        %v2688 = vmul.f32 %v2687, 1.442695
        %v2689 = vpow.pop %v2688
        %v2690 = vsel %vm2623, %v2689, 0.0
        %2691 = vadd.xlane.f32.xlu0 %v2690
        %v2692 = vpop.xlane.xlu0 %2691
        %v2693 = vrcp.pop %v2692
        %v2694 = vmul.f32 %v2689, %v2693
        %s2695 = scalar_lea.vmem %s402, 8 [#allocation5]
        %2696 = vst.msk [vmem:[%s2695] sm:$0xff] %vm2623, %v2694
        %v2697 = vpack.c.bf16 %v2694, %v2694
        %2698 = vrot.lane.b32.xlu0 %v2639, 64
        %v2699 = vpop.permute.xlu0 %2698
        %v2702 = vsel %vm2623, %v2697, 0
        %2704 = vmatpush.bf16.msra.mxu0 0
        %2705 = vmatpush.bf16.msra.mxu0 0
        %2706 = vmatpush.bf16.msra.mxu0 0
        %2707 = vmatpush.bf16.msra.mxu0 0
        %2708 = vmatpush.bf16.msra.mxu0 0
        %2709 = vmatpush.bf16.msra.mxu0 0
        %2710 = vmatpush.bf16.msra.mxu0 0
        %2711 = vmatpush.bf16.msra.mxu0 %v2699
        %2712 = vmatmul.bf16.gmra.mxu0 %v2702
        %v2713 = vpop.f32.mrf.mxu0
        %v2714 = vadd.f32 0.0, %v2713
        %v2715 = vpop.f32.mrf.mxu0
        %2716 = vdwg.mxu0
        %2718 = vrot.lane.b32.xlu0 %v2714, 64
        %v2719 = vpop.permute.xlu0 %2718
        %v2721 = vsel %vm2602, %v2654, %v2719
        %v2722 = vpack.c.bf16 %v2721, %v2721
        %v2723 = vld [vmem:[%s7] sm:$0xf]
        %v2724 = vld [vmem:[%s7 + $0x4] sm:$0xf]
        %v2725 = vld [vmem:[%s7 + $0x8] sm:$0xf]
        %v2726 = vld [vmem:[%s7 + $0xc] sm:$0xf]
        %v2727 = vld [vmem:[%s7 + $0x10] sm:$0xf]
        %v2728 = vld [vmem:[%s7 + $0x14] sm:$0xf]
        %v2729 = vld [vmem:[%s7 + $0x18] sm:$0xf]
        %v2730 = vld [vmem:[%s7 + $0x1c] sm:$0xf]
        %v2731 = vld [vmem:[%s7 + $0x20] sm:$0xf]
        %v2732 = vld [vmem:[%s7 + $0x24] sm:$0xf]
        %v2733 = vld [vmem:[%s7 + $0x28] sm:$0xf]
        %v2734 = vld [vmem:[%s7 + $0x2c] sm:$0xf]
        %v2735 = vld [vmem:[%s7 + $0x30] sm:$0xf]
        %v2736 = vld [vmem:[%s7 + $0x34] sm:$0xf]
        %v2737 = vld [vmem:[%s7 + $0x38] sm:$0xf]
        %v2738 = vld [vmem:[%s7 + $0x3c] sm:$0xf]
        %v2739 = vld [vmem:[%s8] sm:$0x1]
        %v2741 = vperm.slane %v2739, 0
        %v2759 = vunpack.c.l.b16 %v2723
        %v2760 = vunpack.c.l.b16 %v2724
        %v2761 = vunpack.c.l.b16 %v2725
        %v2762 = vunpack.c.l.b16 %v2726
        %v2763 = vunpack.c.l.b16 %v2727
        %v2764 = vunpack.c.l.b16 %v2728
        %v2765 = vunpack.c.l.b16 %v2729
        %v2766 = vunpack.c.l.b16 %v2730
        %v2767 = vunpack.c.l.b16 %v2731
        %v2768 = vunpack.c.l.b16 %v2732
        %v2769 = vunpack.c.l.b16 %v2733
        %v2770 = vunpack.c.l.b16 %v2734
        %v2771 = vunpack.c.l.b16 %v2735
        %v2772 = vunpack.c.l.b16 %v2736
        %v2773 = vunpack.c.l.b16 %v2737
        %v2774 = vunpack.c.l.b16 %v2738
        %v2775 = vpack.c.b16 %v2760, %v2759
        %v2776 = vpack.c.b16 %v2762, %v2761
        %v2777 = vpack.c.b16 %v2764, %v2763
        %v2778 = vpack.c.b16 %v2766, %v2765
        %v2779 = vpack.c.b16 %v2768, %v2767
        %v2780 = vpack.c.b16 %v2770, %v2769
        %v2781 = vpack.c.b16 %v2772, %v2771
        %v2782 = vpack.c.b16 %v2774, %v2773
        %2791 = vmatpush.bf16.msra.mxu0 %v2782
        %2792 = vmatpush.bf16.msra.mxu0 %v2781
        %2793 = vmatpush.bf16.msra.mxu0 %v2780
        %2794 = vmatpush.bf16.msra.mxu0 %v2779
        %2795 = vmatpush.bf16.msra.mxu0 %v2778
        %2796 = vmatpush.bf16.msra.mxu0 %v2777
        %2797 = vmatpush.bf16.msra.mxu0 %v2776
        %2798 = vmatpush.bf16.msra.mxu0 %v2775
        %2799 = vmatmul.bf16.gmra.mxu0 %v2722
        %v2800 = vpop.f32.mrf.mxu0
        %v2801 = vadd.f32 %v2741, %v2800
        %v2802 = vpop.f32.mrf.mxu0
        %2803 = vdwg.mxu0
        %v2804 = vunpack.c.l.bf16 %v421
        %v2805 = vadd.f32 %v2801, %v2804
        %2806 = vadd.xlane.f32.xlu0 %v2805
        %v2807 = vpop.xlane.xlu0 %2806
        %v2808 = vrcp.pop 128.0
        %v2809 = vmul.f32 128.0, %v2808
        %v2810 = vsub.f32 1.0, %v2809
        %v2811 = vmul.f32 %v2808, %v2810
        %v2812 = vadd.f32 %v2808, %v2811
        %vm2813 = vweird.f32 %v2808
        %v2814 = vsel %vm2813, %v2808, %v2812
        %v2815 = vmul.f32 %v2807, %v2814
        %v2816 = vsub.f32 %v2805, %v2815
        %v2817 = vmul.f32 %v2816, %v2816
        %2818 = vadd.xlane.f32.xlu0 %v2817
        %v2819 = vpop.xlane.xlu0 %2818
        %v2820 = vmul.f32 %v2819, %v2814
        %v2821 = vadd.f32 %v2820, 1e-05
        %v2822 = vrsqrt.pop %v2821
        %v2823 = vmul.f32 %v2822, %v2821
        %v2824 = vmul.f32 %v2823, %v2822
        %v2825 = vmul.f32 0.5, %v2824
        %v2826 = vsub.f32 1.5, %v2825
        %v2827 = vmul.f32 %v2822, %v2826
        %vm2828 = vweird.f32 %v2821
        %vm2829 = vweird.f32 %v2822
        %vm2830 = vmor %vm2828, %vm2829
        %v2831 = vsel %vm2830, %v2822, %v2827
        %v2832 = vmul.f32 %v2816, %v2831
        %v2833 = vpack.c.bf16 %v2832, %v2832
        %2834 = vst [vmem:[%s419] sm:$0xf] %v2833
        %p2835 = scmp.lt.s32.totalorder %s26, 1
        %s2836 = scalar_select %p2835, %s26, 1
        %s2837 = smul.addr %s2836, 4
        %s2838 = scalar_lea.vmem %s9, %s2837
        %s2839 = sand.u32 %s264, 1
        %s2840 = scalar_lea.sflag [#allocation4], %s2839
        %s2841 = sand.u32 %s264, 1
        %s2842 = smul.addr %s2841, 16
        %s2843 = scalar_lea.vmem [#allocation5], %s2842
        // Predicated region
        $region61: #{_lambda_.4} parent=55 // pred_check
          %p2844 = pneg %p248
        $region62: #{_lambda_.4} parent=55 // pred_check_branch
          %2846 = sbr.rel (%p2844) target = $region64
        $region63: #{_lambda_.4} parent=55 // pred_region
          _
        $region64: #{_lambda_.4} parent=55 // pred_fallthru
          _
        // Predicated region
        $region65: #{_lambda_.4} parent=55 // pred_check
          %p2847 = pneg %p274
        $region66: #{_lambda_.4} parent=55 // pred_check_branch
          %2849 = sbr.rel (%p2847) target = $region68
        $region67: #{_lambda_.4} parent=55 // pred_region
          %2851 = vsyncadd %s2840, 0
          %s2852 = smul.addr %s26, 2
          %s2853 = smul.addr %s2852, 8
          %s2854 = scalar_lea.hbm %s10, %s2853
          %s2855 = sshll.u32 %s2843, 4
          %s2856 = int_to_ptr.vmem [resolvable:$true] %s2855
          %s2857 = sshll.u32 %s2854, 4
          %s2858 = int_to_ptr.hbm [resolvable:$true] %s2857
          %2863 = dma.vmem_to_hbm [thread:$0]  %s2856, 256, %s2858, %s2840, 128, 128, 8
        $region68: #{_lambda_.4} parent=55 // pred_fallthru
          _
      $region56: #{_lambda_.4} parent=5 // pred_fallthru
        _
      %p2864 = scmp.le.s32.totalorder 2, %s21
      // Predicated region
      $region69: #{_lambda_.4} parent=5 // pred_check
        %p2865 = pneg %p2864
      $region70: #{_lambda_.4} parent=5 // pred_check_branch
        %2867 = sbr.rel (%p2865) target = $region72
      $region71: #{_lambda_.4} parent=5 // pred_region
        %s2868 = ssub.s32 %s21, 2
        // Predicated region
        $region73: #{_lambda_.4} parent=71 // pred_check
          %p2869 = pneg %p254
        $region74: #{_lambda_.4} parent=71 // pred_check_branch
          %2871 = sbr.rel (%p2869) target = $region76
        $region75: #{_lambda_.4} parent=71 // pred_region
          %p2872 = scmp.lt.s32.totalorder %s27, 1
          %s2873 = scalar_select %p2872, %s27, 1
          %s2874 = smul.addr %s2873, 4
          %s2875 = scalar_lea.vmem %s9, %s2874
        $region76: #{_lambda_.4} parent=71 // pred_fallthru
          _
        // Predicated region
        $region77: #{_lambda_.4} parent=71 // pred_check
          %p2876 = pneg %p280
        $region78: #{_lambda_.4} parent=71 // pred_check_branch
          %2878 = sbr.rel (%p2876) target = $region80
        $region79: #{_lambda_.4} parent=71 // pred_region
          %s2879 = sand.u32 %s265, 1
          %s2880 = scalar_lea.sflag [#allocation4], %s2879
          %s2881 = sand.u32 %s265, 1
          %s2882 = smul.addr %s2881, 16
          %s2883 = scalar_lea.vmem [#allocation5], %s2882
          %2885 = dma.done %s2880, 256
        $region80: #{_lambda_.4} parent=71 // pred_fallthru
          _
      $region72: #{_lambda_.4} parent=5 // pred_fallthru
        _
    $region6: #{_lambda_.4} parent=1 // loop_footer
      %s25 = sadd.s32 1, %s21
    $region7: #{_lambda_.4} parent=1 // loop_footer_branch
      %20 = sbr.rel target = $region3
    $region8: #{_lambda_.4} parent=1 // loop_exit
      _
    %2886 = vsyncpa [#allocation3], 1
    %s2887 = scalar_lea.sflag [#allocation3], 1
    %2888 = vsyncpa %s2887, 1
    %2889 = vsyncpa [#allocation4], 1
    %s2890 = scalar_lea.sflag [#allocation4], 1
    %2891 = vsyncpa %s2890, 1

</llo_original>
